<compile_context>
chip_gen: v6e
topology: v6e:2x2x1
jax: 0.10.0
libtpu: 0.0.40
codegen_flags: <defaults>
</compile_context>

<pallas_src>
import jax
import jax.numpy as jnp
import numpy as np
from jax import lax
from jax.experimental import pallas as pl
from jax.experimental.pallas import tpu as pltpu

# Batch elements processed per grid step in the batched kernels.  With the
# 28x{28,hidden} per-element tiles this keeps per-step VMEM (inputs + outputs,
# double-buffered) around ~5 MiB -- safely inside the scoped VMEM limit on
# v5e/v6e (128 MiB physical) and v7x (64 MiB physical), while amortizing the
# ~0.35 us per-grid-step pipeline overhead over 64 elements.
_BATCH_BLOCK = 64


def _round_up(x, m):
    return ((x + m - 1) // m) * m


def _linear_sigmoid_kernel(x_ref, wt_ref, b_ref, h_ref):
    # x_ref: (TM, 28), wt_ref: (28, hidden), b_ref: (1, hidden) -> h_ref: (TM, hidden)
    z = jnp.dot(x_ref[...], wt_ref[...], preferred_element_type=jnp.float32)
    h_ref[...] = jax.nn.sigmoid(z + b_ref[...])


def _gram_kernel(h_ref, g_ref):
    # h_ref: (BB, 28, hidden) -> g_ref[b] = H_b @ H_b^T   (BB, 28, 28)
    h = h_ref[...]
    g_ref[...] = jnp.einsum("brh,bsh->brs", h, h,
                            preferred_element_type=jnp.float32)


def _recon_kernel(h_ref, yt_ref, bt_ref, x_ref):
    # h_ref: (BB, 28, hidden); yt_ref: (BB, 28, 28) holds Y^T with Y = G^{-1} x.
    #   bt = Y^T @ H = B^T      (lane-dense (BB, 28, hidden) output)
    #   X  = H @ B  = H @ bt^T
    h = h_ref[...]
    bt = jnp.einsum("bkr,brh->bkh", yt_ref[...], h,
                    preferred_element_type=jnp.float32)
    bt_ref[...] = bt
    x_ref[...] = jnp.einsum("brh,bkh->brk", h, bt,
                            preferred_element_type=jnp.float32)


@jax.jit
def elm_ae_forward(x, w, b):
    """x: (N, C, 28, 28); w: (hidden, 28); b: (hidden,).  Returns (X, B)."""
    N, C, R, K = x.shape
    hidden = w.shape[0]
    if hidden < R:
        raise ValueError("normal-equations pinv path requires hidden >= 28")

    x3 = x[:, 0, :, :].astype(jnp.float32)            # (N, R, K)
    wt = jnp.transpose(w).astype(jnp.float32)         # (K, hidden)
    b2 = b.reshape(1, hidden).astype(jnp.float32)

    # Batch blocking (padded so every grid step sees a full block).
    BB = min(_BATCH_BLOCK, N)
    Np = _round_up(N, BB)
    x3p = jnp.pad(x3, ((0, Np - N), (0, 0), (0, 0))) if Np != N else x3
    grid_b = Np // BB

    # ---- kernel 1: H = sigmoid(x @ W^T + b), batch rows flattened ----------
    x_flat = x3p.reshape(Np * R, K)
    TM = BB * R                                       # rows per grid step
    h_flat = pl.pallas_call(
        _linear_sigmoid_kernel,
        out_shape=jax.ShapeDtypeStruct((Np * R, hidden), jnp.float32),
        grid=(grid_b,),
        in_specs=[
            pl.BlockSpec((TM, K), lambda i: (i, 0)),
            pl.BlockSpec((K, hidden), lambda i: (0, 0)),
            pl.BlockSpec((1, hidden), lambda i: (0, 0)),
        ],
        out_specs=pl.BlockSpec((TM, hidden), lambda i: (i, 0)),
        compiler_params=pltpu.CompilerParams(
            dimension_semantics=("parallel",)),
    )(x_flat, wt, b2)
    h = h_flat.reshape(Np, R, hidden)

    # ---- kernel 2: per-element Gram matrices G = H H^T ---------------------
    g = pl.pallas_call(
        _gram_kernel,
        out_shape=jax.ShapeDtypeStruct((Np, R, R), jnp.float32),
        grid=(grid_b,),
        in_specs=[pl.BlockSpec((BB, R, hidden), lambda i: (i, 0, 0))],
        out_specs=pl.BlockSpec((BB, R, R), lambda i: (i, 0, 0)),
        compiler_params=pltpu.CompilerParams(
            dimension_semantics=("parallel",)),
    )(h)

    # ---- glue: normal-equations solve, replaces torch.pinverse's SVD -------
    # For the wide, full-row-rank H used here pinv(H) = H^T (H H^T)^{-1}, so
    # B = H^T Y with G Y = x.  A tiny relative ridge guards near-singular G.
    # TODO(synk): the batched 28x28 Cholesky / triangular solves have no clean
    # Pallas equivalent; they stay in plain JAX glue (they are tiny compared
    # with the batched SVD they replace).
    g_n = g[:N]
    tr = jnp.trace(g_n, axis1=-2, axis2=-1)[:, None, None]
    eye = jnp.eye(R, dtype=jnp.float32)
    g_reg = g_n + (1e-6 * tr / R + 1e-12) * eye
    chol = jnp.linalg.cholesky(g_reg)
    z = lax.linalg.triangular_solve(chol, x3, left_side=True, lower=True)
    y = lax.linalg.triangular_solve(chol, z, left_side=True, lower=True,
                                    transpose_a=True)          # Y = G^{-1} x
    yt = jnp.swapaxes(y, 1, 2)                                  # (N, K, R)
    ytp = jnp.pad(yt, ((0, Np - N), (0, 0), (0, 0))) if Np != N else yt

    # ---- kernel 3: B^T = Y^T H (lane dense) and X = H B --------------------
    bt, x_rec = pl.pallas_call(
        _recon_kernel,
        out_shape=(
            jax.ShapeDtypeStruct((Np, K, hidden), jnp.float32),
            jax.ShapeDtypeStruct((Np, R, K), jnp.float32),
        ),
        grid=(grid_b,),
        in_specs=[
            pl.BlockSpec((BB, R, hidden), lambda i: (i, 0, 0)),
            pl.BlockSpec((BB, K, R), lambda i: (i, 0, 0)),
        ],
        out_specs=(
            pl.BlockSpec((BB, K, hidden), lambda i: (i, 0, 0)),
            pl.BlockSpec((BB, R, K), lambda i: (i, 0, 0)),
        ),
        compiler_params=pltpu.CompilerParams(
            dimension_semantics=("parallel",)),
    )(h, ytp)

    b3 = jnp.swapaxes(bt[:N], 1, 2)                    # (N, hidden, K)
    x3_rec = x_rec[:N]                                 # (N, R, K)

    # Only channel 0 is ever written in the PyTorch module; build the outputs
    # without a zeros+scatter round trip.
    x_out = x3_rec[:, None]                            # (N, 1, R, K)
    b_out = b3[:, None]                                # (N, 1, hidden, R)
    if C > 1:
        x_out = jnp.concatenate(
            [x_out, jnp.zeros((N, C - 1, R, K), jnp.float32)], axis=1)
        b_out = jnp.concatenate(
            [b_out, jnp.zeros((N, C - 1, hidden, R), jnp.float32)], axis=1)
    return x_out, b_out


if __name__ == "__main__":
    key = jax.random.PRNGKey(0)
    kx, kw, kb = jax.random.split(key, 3)

    # fc1 = nn.Linear(28, hidden) pins the spatial size to 28x28; the module
    # only uses channel 0, so C = 1.  hidden = 128 (constructor arg; default
    # in the module is 100) keeps the H / B^T slabs lane-dense.
    N, C, R, K = 8, 1, 28, 28
    hidden = 128

    # Inputs scaled so the sigmoid operates well inside its nonlinear regime
    # (as with normalized image data); this keeps the per-image Gram matrices
    # H H^T well conditioned so the float32 pinverse is numerically meaningful.
    x = 4.0 * jax.random.normal(kx, (N, C, R, K), dtype=jnp.float32)
    # nn.Linear(28, hidden) init: U(-1/sqrt(28), 1/sqrt(28)) for W and b.
    bound = 1.0 / (K ** 0.5)
    w = jax.random.uniform(kw, (hidden, K), jnp.float32, -bound, bound)
    b = jax.random.uniform(kb, (hidden,), jnp.float32, -bound, bound)

    X_out, B_out = elm_ae_forward(x, w, b)
    jax.block_until_ready((X_out, B_out))

    # Host-side float64 reference (SVD pinverse, mirrors torch.pinverse),
    # independent of device matmul precision.
    x64 = np.asarray(x[:, 0], dtype=np.float64)
    w64 = np.asarray(w, dtype=np.float64)
    b64 = np.asarray(b, dtype=np.float64)
    h64 = 1.0 / (1.0 + np.exp(-(x64 @ w64.T + b64)))          # (N, 28, hidden)
    b_ref = np.stack([np.linalg.pinv(h64[i]) @ x64[i] for i in range(N)])
    x_ref = np.einsum("brh,bhk->brk", h64, b_ref)

    assert X_out.shape == (N, C, R, K)
    assert B_out.shape == (N, C, hidden, K)
    # Loose-ish tolerance: float32 kernel + normal-equations pinv vs float64
    # SVD pinv; structural bugs would show O(1) errors.
    assert np.allclose(np.asarray(X_out[:, 0]), x_ref, atol=2e-2, rtol=2e-2)
    assert np.allclose(np.asarray(B_out[:, 0]), b_ref, atol=2e-2, rtol=2e-2)

    print("KERNEL_OK")
</pallas_src>

<mosaic_0001>
module attributes {stable_mosaic.version = 11 : i64} {
  func.func @_gram_kernel(%arg0: i32, %arg1: memref<8x28x128xf32, #tpu.memory_space<vmem>>, %arg2: memref<8x28x28xf32, #tpu.memory_space<vmem>>) attributes {dimension_semantics = [#tpu.dimension_semantics<parallel>], iteration_bounds = array<i64: 1>, scalar_prefetch = 0 : i64, scratch_operands = 0 : i64, tpu.core_type = #tpu.core_type<tc>, window_params = [{transform_indices = @transform_0, window_bounds = array<i64: 8, 28, 128>}, {transform_indices = @transform_1, window_bounds = array<i64: 8, 28, 28>}]} {
    %c0 = arith.constant 0 : index
    %c0_0 = arith.constant 0 : index
    %c0_1 = arith.constant 0 : index
    %0 = vector.load %arg1[%c0, %c0_0, %c0_1] : memref<8x28x128xf32, #tpu.memory_space<vmem>>, vector<8x28x128xf32>
    "tpu.trace_start"() <{level = 10 : i32, message = "brh,bsh->brs"}> : () -> ()
    %cst = arith.constant dense<0.000000e+00> : vector<8x28x28xf32>
    %1 = tpu.matmul %0, %0, %cst {dimension_numbers = #tpu.dot_dimension_numbers<[2], [2], [1], [1], [0, 0, 0, 1, 1, 1], [0], [0]>} : vector<8x28x128xf32>, vector<8x28x128xf32>, vector<8x28x28xf32> -> vector<8x28x28xf32>
    "tpu.trace_stop"() : () -> ()
    %c0_2 = arith.constant 0 : index
    %c0_3 = arith.constant 0 : index
    %c0_4 = arith.constant 0 : index
    %2 = vector.load %arg2[%c0_2, %c0_3, %c0_4] : memref<8x28x28xf32, #tpu.memory_space<vmem>>, vector<8x28x28xf32>
    tpu.vector_store %arg2[%c0_2, %c0_3, %c0_4], %1 {strides = array<i32>} : memref<8x28x28xf32, #tpu.memory_space<vmem>>, vector<8x28x28xf32>,
    return
  }
  func.func @transform_0(%arg0: i32) -> (i32, i32, i32) {
    %c0_i32 = arith.constant 0 : i32
    %c0_i32_0 = arith.constant 0 : i32
    %c0_i32_1 = arith.constant 0 : i32
    return %arg0, %c0_i32, %c0_i32_0 : i32, i32, i32
  }
  func.func @transform_1(%arg0: i32) -> (i32, i32, i32) {
    %c0_i32 = arith.constant 0 : i32
    %c0_i32_0 = arith.constant 0 : i32
    %c0_i32_1 = arith.constant 0 : i32
    return %arg0, %c0_i32, %c0_i32_0 : i32, i32, i32
  }
}

module attributes {stable_mosaic.version = 11 : i64} {
  func.func @_linear_sigmoid_kernel(%arg0: i32, %arg1: memref<224x28xf32, #tpu.memory_space<vmem>>, %arg2: memref<28x128xf32, #tpu.memory_space<vmem>>, %arg3: memref<1x128xf32, #tpu.memory_space<vmem>>, %arg4: memref<224x128xf32, #tpu.memory_space<vmem>>) attributes {dimension_semantics = [#tpu.dimension_semantics<parallel>], iteration_bounds = array<i64: 1>, scalar_prefetch = 0 : i64, scratch_operands = 0 : i64, tpu.core_type = #tpu.core_type<tc>, window_params = [{transform_indices = @transform_0, window_bounds = array<i64: 224, 28>}, {pipeline_mode = #tpu.pipeline_mode<synchronous>, transform_indices = @transform_1, window_bounds = array<i64: 28, 128>}, {pipeline_mode = #tpu.pipeline_mode<synchronous>, transform_indices = @transform_2, window_bounds = array<i64: 1, 128>}, {transform_indices = @transform_3, window_bounds = array<i64: 224, 128>}]} {
    %c0 = arith.constant 0 : index
    %c0_0 = arith.constant 0 : index
    %0 = vector.load %arg1[%c0, %c0_0] : memref<224x28xf32, #tpu.memory_space<vmem>>, vector<224x28xf32>
    %c0_1 = arith.constant 0 : index
    %c0_2 = arith.constant 0 : index
    %1 = vector.load %arg2[%c0_1, %c0_2] : memref<28x128xf32, #tpu.memory_space<vmem>>, vector<28x128xf32>
    %cst = arith.constant dense<0.000000e+00> : vector<224x128xf32>
    %2 = tpu.matmul %0, %1, %cst {dimension_numbers = #tpu.dot_dimension_numbers<[1], [0], [0], [1], [0, 0, 1, 1], [], []>} : vector<224x28xf32>, vector<28x128xf32>, vector<224x128xf32> -> vector<224x128xf32>
    %c0_3 = arith.constant 0 : index
    %c0_4 = arith.constant 0 : index
    %3 = vector.load %arg3[%c0_3, %c0_4] : memref<1x128xf32, #tpu.memory_space<vmem>>, vector<1x128xf32>
    %4 = vector.broadcast %3 : vector<1x128xf32> to vector<224x128xf32>
    %5 = arith.addf %2, %4 : vector<224x128xf32>
    %6 = arith.negf %5 : vector<224x128xf32>
    %7 = math.exp %6 : vector<224x128xf32>
    %cst_5 = arith.constant 1.000000e+00 : f32
    %8 = vector.broadcast %cst_5 : f32 to vector<224x128xf32>
    %9 = arith.addf %8, %7 : vector<224x128xf32>
    %10 = arith.divf %8, %9 : vector<224x128xf32>
    %c0_6 = arith.constant 0 : index
    %c0_7 = arith.constant 0 : index
    %11 = vector.load %arg4[%c0_6, %c0_7] : memref<224x128xf32, #tpu.memory_space<vmem>>, vector<224x128xf32>
    tpu.vector_store %arg4[%c0_6, %c0_7], %10 {strides = array<i32>} : memref<224x128xf32, #tpu.memory_space<vmem>>, vector<224x128xf32>,
    return
  }
  func.func @transform_0(%arg0: i32) -> (i32, i32) {
    %c0_i32 = arith.constant 0 : i32
    %c0_i32_0 = arith.constant 0 : i32
    return %arg0, %c0_i32 : i32, i32
  }
  func.func @transform_1(%arg0: i32) -> (i32, i32) {
    %c0_i32 = arith.constant 0 : i32
    %c0_i32_0 = arith.constant 0 : i32
    %c0_i32_1 = arith.constant 0 : i32
    return %c0_i32, %c0_i32_0 : i32, i32
  }
  func.func @transform_2(%arg0: i32) -> (i32, i32) {
    %c0_i32 = arith.constant 0 : i32
    %c0_i32_0 = arith.constant 0 : i32
    %c0_i32_1 = arith.constant 0 : i32
    return %c0_i32, %c0_i32_0 : i32, i32
  }
  func.func @transform_3(%arg0: i32) -> (i32, i32) {
    %c0_i32 = arith.constant 0 : i32
    %c0_i32_0 = arith.constant 0 : i32
    return %arg0, %c0_i32 : i32, i32
  }
}

module attributes {stable_mosaic.version = 11 : i64} {
  func.func @_recon_kernel(%arg0: i32, %arg1: memref<8x28x128xf32, #tpu.memory_space<vmem>>, %arg2: memref<8x28x28xf32, #tpu.memory_space<vmem>>, %arg3: memref<8x28x128xf32, #tpu.memory_space<vmem>>, %arg4: memref<8x28x28xf32, #tpu.memory_space<vmem>>) attributes {dimension_semantics = [#tpu.dimension_semantics<parallel>], iteration_bounds = array<i64: 1>, scalar_prefetch = 0 : i64, scratch_operands = 0 : i64, tpu.core_type = #tpu.core_type<tc>, window_params = [{transform_indices = @transform_0, window_bounds = array<i64: 8, 28, 128>}, {transform_indices = @transform_1, window_bounds = array<i64: 8, 28, 28>}, {transform_indices = @transform_2, window_bounds = array<i64: 8, 28, 128>}, {transform_indices = @transform_3, window_bounds = array<i64: 8, 28, 28>}]} {
    %c0 = arith.constant 0 : index
    %c0_0 = arith.constant 0 : index
    %c0_1 = arith.constant 0 : index
    %0 = vector.load %arg1[%c0, %c0_0, %c0_1] : memref<8x28x128xf32, #tpu.memory_space<vmem>>, vector<8x28x128xf32>
    %c0_2 = arith.constant 0 : index
    %c0_3 = arith.constant 0 : index
    %c0_4 = arith.constant 0 : index
    %1 = vector.load %arg2[%c0_2, %c0_3, %c0_4] : memref<8x28x28xf32, #tpu.memory_space<vmem>>, vector<8x28x28xf32>
    "tpu.trace_start"() <{level = 10 : i32, message = "bkr,brh->bkh"}> : () -> ()
    %cst = arith.constant dense<0.000000e+00> : vector<8x28x128xf32>
    %2 = tpu.matmul %1, %0, %cst {dimension_numbers = #tpu.dot_dimension_numbers<[2], [1], [1], [2], [0, 0, 0, 1, 1, 2], [0], [0]>} : vector<8x28x28xf32>, vector<8x28x128xf32>, vector<8x28x128xf32> -> vector<8x28x128xf32>
    "tpu.trace_stop"() : () -> ()
    %c0_5 = arith.constant 0 : index
    %c0_6 = arith.constant 0 : index
    %c0_7 = arith.constant 0 : index
    %3 = vector.load %arg3[%c0_5, %c0_6, %c0_7] : memref<8x28x128xf32, #tpu.memory_space<vmem>>, vector<8x28x128xf32>
    tpu.vector_store %arg3[%c0_5, %c0_6, %c0_7], %2 {strides = array<i32>} : memref<8x28x128xf32, #tpu.memory_space<vmem>>, vector<8x28x128xf32>,
    "tpu.trace_start"() <{level = 10 : i32, message = "brh,bkh->brk"}> : () -> ()
    %cst_8 = arith.constant dense<0.000000e+00> : vector<8x28x28xf32>
    %4 = tpu.matmul %0, %2, %cst_8 {dimension_numbers = #tpu.dot_dimension_numbers<[2], [2], [1], [1], [0, 0, 0, 1, 1, 1], [0], [0]>} : vector<8x28x128xf32>, vector<8x28x128xf32>, vector<8x28x28xf32> -> vector<8x28x28xf32>
    "tpu.trace_stop"() : () -> ()
    %c0_9 = arith.constant 0 : index
    %c0_10 = arith.constant 0 : index
    %c0_11 = arith.constant 0 : index
    %5 = vector.load %arg4[%c0_9, %c0_10, %c0_11] : memref<8x28x28xf32, #tpu.memory_space<vmem>>, vector<8x28x28xf32>
    tpu.vector_store %arg4[%c0_9, %c0_10, %c0_11], %4 {strides = array<i32>} : memref<8x28x28xf32, #tpu.memory_space<vmem>>, vector<8x28x28xf32>,
    return
  }
  func.func @transform_0(%arg0: i32) -> (i32, i32, i32) {
    %c0_i32 = arith.constant 0 : i32
    %c0_i32_0 = arith.constant 0 : i32
    %c0_i32_1 = arith.constant 0 : i32
    return %arg0, %c0_i32, %c0_i32_0 : i32, i32, i32
  }
  func.func @transform_1(%arg0: i32) -> (i32, i32, i32) {
    %c0_i32 = arith.constant 0 : i32
    %c0_i32_0 = arith.constant 0 : i32
    %c0_i32_1 = arith.constant 0 : i32
    return %arg0, %c0_i32, %c0_i32_0 : i32, i32, i32
  }
  func.func @transform_2(%arg0: i32) -> (i32, i32, i32) {
    %c0_i32 = arith.constant 0 : i32
    %c0_i32_0 = arith.constant 0 : i32
    %c0_i32_1 = arith.constant 0 : i32
    return %arg0, %c0_i32, %c0_i32_0 : i32, i32, i32
  }
  func.func @transform_3(%arg0: i32) -> (i32, i32, i32) {
    %c0_i32 = arith.constant 0 : i32
    %c0_i32_0 = arith.constant 0 : i32
    %c0_i32_1 = arith.constant 0 : i32
    return %arg0, %c0_i32, %c0_i32_0 : i32, i32, i32
  }
}

</mosaic_0001>

<llo_original>
// kernel: elm_ae_forward.3
$region0: #{elm_ae_forward.3}
  #allocation0 [shape = 'u32[]', space=smem, size = 0x4, offset = 0x4, fixed_abs, tag = 'smem constant byte address 0x4 - core index']
  #allocation1 [shape = 'u32[144,128]{1,0:T(1,128)}', space=vmem, size = 0x12000, scoped, tag = 'internal scratch']
  %s0 = inlined_call_operand.hbm [shape: f32[224,28], index: 0, kind: input, shape index: {}]
  %s1 = inlined_call_operand.hbm [shape: f32[28,128], index: 1, kind: input, shape index: {}]
  %s2 = inlined_call_operand.vmem [shape: f32[1,128], index: 2, kind: input, shape index: {}]
  %s3 = inlined_call_operand.vmem [shape: f32[224,128], index: 3, kind: output, shape index: {}]
  %s4 = sld [smem:[#allocation0]]
  $region30: #{elm_ae_forward.3} parent=0
    _
  %s6 = ssub.s32 1, %s4
  %s7 = scalar_select 0, %s6, %s4
  $region1: #{elm_ae_forward.3} parent=0
    #allocation2 [shape = 'u8[114688]{0}', space=vmem, size = 0x1c000, scoped, tag = 'input window, operand 0, single buffered']
    #allocation3 [shape = 's32[1]{0}', space=sflag, size = 0x4, scoped, tag = 'scoped memory for elm_ae_forward.3']
    #allocation4 [shape = 'u8[16384]{0}', space=vmem, size = 0x4000, scoped, tag = 'input window, operand 1, single buffered']
    #allocation5 [shape = 's32[1]{0}', space=sflag, size = 0x4, scoped, tag = 'scoped memory for elm_ae_forward.3']
    %8 = vsyncpa [#allocation3], 0
    %9 = vsyncpa [#allocation5], 0
    // Predicated region
    $region2: #{elm_ae_forward.3} parent=1 // pred_check
      _
    $region3: #{elm_ae_forward.3} parent=1 // pred_check_branch
      %11 = sbr.rel (0) target = $region5
    $region4: #{elm_ae_forward.3} parent=1 // pred_region
      %s13 = ssub.s32 3584, 3584
      %14 = vsyncadd [#allocation3], %s13
      %s15 = sshll.u32 [#allocation2], 4
      %s16 = int_to_ptr.vmem [resolvable:$true] %s15
      %21 = dma.hbm_to_vmem [thread:$0]  %s0, 3584, %s16, [#allocation3], 128, 128, 8
    $region5: #{elm_ae_forward.3} parent=1 // pred_fallthru
      _
    // Predicated region
    $region6: #{elm_ae_forward.3} parent=1 // pred_check
      _
    $region7: #{elm_ae_forward.3} parent=1 // pred_check_branch
      %23 = sbr.rel (0) target = $region9
    $region8: #{elm_ae_forward.3} parent=1 // pred_region
      %s25 = ssub.s32 512, 512
      %26 = vsyncadd [#allocation5], %s25
      %s27 = sshll.u32 [#allocation4], 4
      %s28 = int_to_ptr.vmem [resolvable:$true] %s27
      %33 = dma.hbm_to_vmem [thread:$0]  %s1, 512, %s28, [#allocation5], 128, 128, 8
    $region9: #{elm_ae_forward.3} parent=1 // pred_fallthru
      _
    // Predicated region
    $region10: #{elm_ae_forward.3} parent=1 // pred_check
      _
    $region11: #{elm_ae_forward.3} parent=1 // pred_check_branch
      %35 = sbr.rel (0) target = $region13
    $region12: #{elm_ae_forward.3} parent=1 // pred_region
      _
    $region13: #{elm_ae_forward.3} parent=1 // pred_fallthru
      _
    // Predicated region
    $region14: #{elm_ae_forward.3} parent=1 // pred_check
      _
    $region15: #{elm_ae_forward.3} parent=1 // pred_check_branch
      %37 = sbr.rel (0) target = $region17
    $region16: #{elm_ae_forward.3} parent=1 // pred_region
      %38 = dma.done [#allocation3], 3584
    $region17: #{elm_ae_forward.3} parent=1 // pred_fallthru
      _
    // Predicated region
    $region18: #{elm_ae_forward.3} parent=1 // pred_check
      _
    $region19: #{elm_ae_forward.3} parent=1 // pred_check_branch
      %40 = sbr.rel (0) target = $region21
    $region20: #{elm_ae_forward.3} parent=1 // pred_region
      %41 = dma.done [#allocation5], 512
    $region21: #{elm_ae_forward.3} parent=1 // pred_fallthru
      _
    %v42 = vld [vmem:[#allocation2] sm:$0xff]
    %v43 = vld [vmem:[#allocation2 + $0x8] sm:$0xff]
    %v44 = vld [vmem:[#allocation2 + $0x10] sm:$0xff]
    %v45 = vld [vmem:[#allocation2 + $0x18] sm:$0xff]
    %v46 = vld [vmem:[#allocation2 + $0x20] sm:$0xff]
    %v47 = vld [vmem:[#allocation2 + $0x28] sm:$0xff]
    %v48 = vld [vmem:[#allocation2 + $0x30] sm:$0xff]
    %v49 = vld [vmem:[#allocation2 + $0x38] sm:$0xff]
    %v50 = vld [vmem:[#allocation2 + $0x40] sm:$0xff]
    %v51 = vld [vmem:[#allocation2 + $0x48] sm:$0xff]
    %v52 = vld [vmem:[#allocation2 + $0x50] sm:$0xff]
    %v53 = vld [vmem:[#allocation2 + $0x58] sm:$0xff]
    %v54 = vld [vmem:[#allocation2 + $0x60] sm:$0xff]
    %v55 = vld [vmem:[#allocation2 + $0x68] sm:$0xff]
    %v56 = vld [vmem:[#allocation2 + $0x70] sm:$0xff]
    %v57 = vld [vmem:[#allocation2 + $0x78] sm:$0xff]
    %v58 = vld [vmem:[#allocation2 + $0x80] sm:$0xff]
    %v59 = vld [vmem:[#allocation2 + $0x88] sm:$0xff]
    %v60 = vld [vmem:[#allocation2 + $0x90] sm:$0xff]
    %v61 = vld [vmem:[#allocation2 + $0x98] sm:$0xff]
    %v62 = vld [vmem:[#allocation2 + $0xa0] sm:$0xff]
    %v63 = vld [vmem:[#allocation2 + $0xa8] sm:$0xff]
    %v64 = vld [vmem:[#allocation2 + $0xb0] sm:$0xff]
    %v65 = vld [vmem:[#allocation2 + $0xb8] sm:$0xff]
    %v66 = vld [vmem:[#allocation2 + $0xc0] sm:$0xff]
    %v67 = vld [vmem:[#allocation2 + $0xc8] sm:$0xff]
    %v68 = vld [vmem:[#allocation2 + $0xd0] sm:$0xff]
    %v69 = vld [vmem:[#allocation2 + $0xd8] sm:$0xff]
    %v70 = vld [vmem:[#allocation4] sm:$0xff]
    %v71 = vld [vmem:[#allocation4 + $0x8] sm:$0xff]
    %v72 = vld [vmem:[#allocation4 + $0x10] sm:$0xff]
    %v73 = vld [vmem:[#allocation4 + $0x18] sm:$0xf]
    %v74 = vld [vmem:[%s2] sm:$0x1]
    %v76 = vlaneseq
    %v77 = vshrl.u32 %v76, 7
    %v78 = vsub.s32 0, %v77
    %v79 = vrot.slane %v74, %v78
    %vm81 = vcmask 228352
    %v83 = vsel %vm81, %v42, 0
    %v86 = vsel %vm81, %v43, 0
    %v89 = vsel %vm81, %v44, 0
    %v92 = vsel %vm81, %v45, 0
    %v95 = vsel %vm81, %v46, 0
    %v98 = vsel %vm81, %v47, 0
    %v101 = vsel %vm81, %v48, 0
    %v104 = vsel %vm81, %v49, 0
    %v107 = vsel %vm81, %v50, 0
    %v110 = vsel %vm81, %v51, 0
    %v113 = vsel %vm81, %v52, 0
    %v116 = vsel %vm81, %v53, 0
    %v119 = vsel %vm81, %v54, 0
    %v122 = vsel %vm81, %v55, 0
    %v125 = vsel %vm81, %v56, 0
    %v128 = vsel %vm81, %v57, 0
    %v131 = vsel %vm81, %v58, 0
    %v134 = vsel %vm81, %v59, 0
    %v137 = vsel %vm81, %v60, 0
    %v140 = vsel %vm81, %v61, 0
    %v143 = vsel %vm81, %v62, 0
    %v146 = vsel %vm81, %v63, 0
    %v149 = vsel %vm81, %v64, 0
    %v152 = vsel %vm81, %v65, 0
    %v155 = vsel %vm81, %v66, 0
    %v158 = vsel %vm81, %v67, 0
    %v161 = vsel %vm81, %v68, 0
    %v164 = vsel %vm81, %v69, 0
    %vm166 = vcmask 1043456
    %v168 = vsel %vm166, %v73, 0
    %170 = vmatprep.subr.mxu0 0.0
    %171 = vmatpush1.msra.mxu0 0.0
    %172 = vmatprep.subr.mxu0 0.0
    %173 = vmatpush1.msra.mxu0 0.0
    %174 = vmatprep.subr.mxu0 0.0
    %175 = vmatpush1.msra.mxu0 0.0
    %176 = vmatprep.subr.mxu0 0.0
    %177 = vmatpush1.msra.mxu0 0.0
    %178 = vmatprep.subr.mxu0 0.0
    %179 = vmatpush1.msra.mxu0 0.0
    %180 = vmatprep.subr.mxu0 0.0
    %181 = vmatpush1.msra.mxu0 0.0
    %182 = vmatprep.subr.mxu0 0.0
    %183 = vmatpush1.msra.mxu0 0.0
    %184 = vmatprep.subr.mxu0 0.0
    %185 = vmatpush1.msra.mxu0 0.0
    %186 = vmatprep.subr.mxu0 0.0
    %187 = vmatpush1.msra.mxu0 0.0
    %188 = vmatprep.subr.mxu0 0.0
    %189 = vmatpush1.msra.mxu0 0.0
    %190 = vmatprep.subr.mxu0 0.0
    %191 = vmatpush1.msra.mxu0 0.0
    %192 = vmatprep.subr.mxu0 0.0
    %193 = vmatpush1.msra.mxu0 0.0
    %194 = vmatprep.subr.mxu0 0.0
    %195 = vmatpush1.msra.mxu0 %v168
    %196 = vmatprep.subr.mxu0 0.0
    %197 = vmatpush1.msra.mxu0 %v72
    %198 = vmatprep.subr.mxu0 0.0
    %199 = vmatpush1.msra.mxu0 %v71
    %200 = vmatprep.subr.mxu0 0.0
    %201 = vmatpush1.msra.mxu0 %v70
    %202 = vmatprep.subr.mxu0 0.0
    %203 = vmatpush2.msra.mxu0 0.0
    %204 = vmatprep.subr.mxu0 0.0
    %205 = vmatpush2.msra.mxu0 0.0
    %206 = vmatprep.subr.mxu0 0.0
    %207 = vmatpush2.msra.mxu0 0.0
    %208 = vmatprep.subr.mxu0 0.0
    %209 = vmatpush2.msra.mxu0 0.0
    %210 = vmatprep.subr.mxu0 0.0
    %211 = vmatpush2.msra.mxu0 0.0
    %212 = vmatprep.subr.mxu0 0.0
    %213 = vmatpush2.msra.mxu0 0.0
    %214 = vmatprep.subr.mxu0 0.0
    %215 = vmatpush2.msra.mxu0 0.0
    %216 = vmatprep.subr.mxu0 0.0
    %217 = vmatpush2.msra.mxu0 0.0
    %218 = vmatprep.subr.mxu0 0.0
    %219 = vmatpush2.msra.mxu0 0.0
    %220 = vmatprep.subr.mxu0 0.0
    %221 = vmatpush2.msra.mxu0 0.0
    %222 = vmatprep.subr.mxu0 0.0
    %223 = vmatpush2.msra.mxu0 0.0
    %224 = vmatprep.subr.mxu0 0.0
    %225 = vmatpush2.msra.mxu0 0.0
    %226 = vmatprep.subr.mxu0 0.0
    %227 = vmatpush2.msra.mxu0 0.0
    %228 = vmatprep.subr.mxu0 0.0
    %229 = vmatpush2.msra.mxu0 0.0
    %230 = vmatprep.subr.mxu0 0.0
    %231 = vmatpush2.msra.mxu0 0.0
    %232 = vmatprep.subr.mxu0 0.0
    %233 = vmatpush2.msra.mxu0 0.0
    %234 = vmatprep.mubr.f32.mxu0 0.0
    %235 = vmatmul.mubr.f32.gmra.mxu0 %v83
    %v236 = vpop.f32.mrf.mxu0
    %v237 = vadd.f32 %v79, %v236
    %v238 = vpop.f32.mrf.mxu0
    %239 = vmatprep.mubr.f32.mxu0 0.0
    %240 = vmatmul.mubr.f32.gmra.mxu0 %v86
    %v241 = vpop.f32.mrf.mxu0
    %v242 = vadd.f32 %v79, %v241
    %v243 = vpop.f32.mrf.mxu0
    %244 = vmatprep.mubr.f32.mxu0 0.0
    %245 = vmatmul.mubr.f32.gmra.mxu0 %v89
    %v246 = vpop.f32.mrf.mxu0
    %v247 = vadd.f32 %v79, %v246
    %v248 = vpop.f32.mrf.mxu0
    %249 = vmatprep.mubr.f32.mxu0 0.0
    %250 = vmatmul.mubr.f32.gmra.mxu0 %v92
    %v251 = vpop.f32.mrf.mxu0
    %v252 = vadd.f32 %v79, %v251
    %v253 = vpop.f32.mrf.mxu0
    %254 = vmatprep.mubr.f32.mxu0 0.0
    %255 = vmatmul.mubr.f32.gmra.mxu0 %v95
    %v256 = vpop.f32.mrf.mxu0
    %v257 = vadd.f32 %v79, %v256
    %v258 = vpop.f32.mrf.mxu0
    %259 = vmatprep.mubr.f32.mxu0 0.0
    %260 = vmatmul.mubr.f32.gmra.mxu0 %v98
    %v261 = vpop.f32.mrf.mxu0
    %v262 = vadd.f32 %v79, %v261
    %v263 = vpop.f32.mrf.mxu0
    %264 = vmatprep.mubr.f32.mxu0 0.0
    %265 = vmatmul.mubr.f32.gmra.mxu0 %v101
    %v266 = vpop.f32.mrf.mxu0
    %v267 = vadd.f32 %v79, %v266
    %v268 = vpop.f32.mrf.mxu0
    %269 = vmatprep.mubr.f32.mxu0 0.0
    %270 = vmatmul.mubr.f32.gmra.mxu0 %v104
    %v271 = vpop.f32.mrf.mxu0
    %v272 = vadd.f32 %v79, %v271
    %v273 = vpop.f32.mrf.mxu0
    %274 = vmatprep.mubr.f32.mxu0 0.0
    %275 = vmatmul.mubr.f32.gmra.mxu0 %v107
    %v276 = vpop.f32.mrf.mxu0
    %v277 = vadd.f32 %v79, %v276
    %v278 = vpop.f32.mrf.mxu0
    %279 = vmatprep.mubr.f32.mxu0 0.0
    %280 = vmatmul.mubr.f32.gmra.mxu0 %v110
    %v281 = vpop.f32.mrf.mxu0
    %v282 = vadd.f32 %v79, %v281
    %v283 = vpop.f32.mrf.mxu0
    %284 = vmatprep.mubr.f32.mxu0 0.0
    %285 = vmatmul.mubr.f32.gmra.mxu0 %v113
    %v286 = vpop.f32.mrf.mxu0
    %v287 = vadd.f32 %v79, %v286
    %v288 = vpop.f32.mrf.mxu0
    %289 = vmatprep.mubr.f32.mxu0 0.0
    %290 = vmatmul.mubr.f32.gmra.mxu0 %v116
    %v291 = vpop.f32.mrf.mxu0
    %v292 = vadd.f32 %v79, %v291
    %v293 = vpop.f32.mrf.mxu0
    %294 = vmatprep.mubr.f32.mxu0 0.0
    %295 = vmatmul.mubr.f32.gmra.mxu0 %v119
    %v296 = vpop.f32.mrf.mxu0
    %v297 = vadd.f32 %v79, %v296
    %v298 = vpop.f32.mrf.mxu0
    %299 = vmatprep.mubr.f32.mxu0 0.0
    %300 = vmatmul.mubr.f32.gmra.mxu0 %v122
    %v301 = vpop.f32.mrf.mxu0
    %v302 = vadd.f32 %v79, %v301
    %v303 = vpop.f32.mrf.mxu0
    %304 = vmatprep.mubr.f32.mxu0 0.0
    %305 = vmatmul.mubr.f32.gmra.mxu0 %v125
    %v306 = vpop.f32.mrf.mxu0
    %v307 = vadd.f32 %v79, %v306
    %v308 = vpop.f32.mrf.mxu0
    %309 = vmatprep.mubr.f32.mxu0 0.0
    %310 = vmatmul.mubr.f32.gmra.mxu0 %v128
    %v311 = vpop.f32.mrf.mxu0
    %v312 = vadd.f32 %v79, %v311
    %v313 = vpop.f32.mrf.mxu0
    %314 = vmatprep.mubr.f32.mxu0 0.0
    %315 = vmatmul.mubr.f32.gmra.mxu0 %v131
    %v316 = vpop.f32.mrf.mxu0
    %v317 = vadd.f32 %v79, %v316
    %v318 = vpop.f32.mrf.mxu0
    %319 = vmatprep.mubr.f32.mxu0 0.0
    %320 = vmatmul.mubr.f32.gmra.mxu0 %v134
    %v321 = vpop.f32.mrf.mxu0
    %v322 = vadd.f32 %v79, %v321
    %v323 = vpop.f32.mrf.mxu0
    %324 = vmatprep.mubr.f32.mxu0 0.0
    %325 = vmatmul.mubr.f32.gmra.mxu0 %v137
    %v326 = vpop.f32.mrf.mxu0
    %v327 = vadd.f32 %v79, %v326
    %v328 = vpop.f32.mrf.mxu0
    %329 = vmatprep.mubr.f32.mxu0 0.0
    %330 = vmatmul.mubr.f32.gmra.mxu0 %v140
    %v331 = vpop.f32.mrf.mxu0
    %v332 = vadd.f32 %v79, %v331
    %v333 = vpop.f32.mrf.mxu0
    %334 = vmatprep.mubr.f32.mxu0 0.0
    %335 = vmatmul.mubr.f32.gmra.mxu0 %v143
    %v336 = vpop.f32.mrf.mxu0
    %v337 = vadd.f32 %v79, %v336
    %v338 = vpop.f32.mrf.mxu0
    %339 = vmatprep.mubr.f32.mxu0 0.0
    %340 = vmatmul.mubr.f32.gmra.mxu0 %v146
    %v341 = vpop.f32.mrf.mxu0
    %v342 = vadd.f32 %v79, %v341
    %v343 = vpop.f32.mrf.mxu0
    %344 = vmatprep.mubr.f32.mxu0 0.0
    %345 = vmatmul.mubr.f32.gmra.mxu0 %v149
    %v346 = vpop.f32.mrf.mxu0
    %v347 = vadd.f32 %v79, %v346
    %v348 = vpop.f32.mrf.mxu0
    %349 = vmatprep.mubr.f32.mxu0 0.0
    %350 = vmatmul.mubr.f32.gmra.mxu0 %v152
    %v351 = vpop.f32.mrf.mxu0
    %v352 = vadd.f32 %v79, %v351
    %v353 = vpop.f32.mrf.mxu0
    %354 = vmatprep.mubr.f32.mxu0 0.0
    %355 = vmatmul.mubr.f32.gmra.mxu0 %v155
    %v356 = vpop.f32.mrf.mxu0
    %v357 = vadd.f32 %v79, %v356
    %v358 = vpop.f32.mrf.mxu0
    %359 = vmatprep.mubr.f32.mxu0 0.0
    %360 = vmatmul.mubr.f32.gmra.mxu0 %v158
    %v361 = vpop.f32.mrf.mxu0
    %v362 = vadd.f32 %v79, %v361
    %v363 = vpop.f32.mrf.mxu0
    %364 = vmatprep.mubr.f32.mxu0 0.0
    %365 = vmatmul.mubr.f32.gmra.mxu0 %v161
    %v366 = vpop.f32.mrf.mxu0
    %v367 = vadd.f32 %v79, %v366
    %v368 = vpop.f32.mrf.mxu0
    %369 = vmatprep.mubr.f32.mxu0 0.0
    %370 = vmatmul.mubr.f32.gmra.mxu0 %v164
    %v371 = vpop.f32.mrf.mxu0
    %v372 = vadd.f32 %v79, %v371
    %v373 = vpop.f32.mrf.mxu0
    %374 = vdwg.mxu0
    %v375 = vxor.u32 %v237, 2147483648
    %v376 = vxor.u32 %v242, 2147483648
    %v377 = vxor.u32 %v247, 2147483648
    %v378 = vxor.u32 %v252, 2147483648
    %v379 = vxor.u32 %v257, 2147483648
    %v380 = vxor.u32 %v262, 2147483648
    %v381 = vxor.u32 %v267, 2147483648
    %v382 = vxor.u32 %v272, 2147483648
    %v383 = vxor.u32 %v277, 2147483648
    %v384 = vxor.u32 %v282, 2147483648
    %v385 = vxor.u32 %v287, 2147483648
    %v386 = vxor.u32 %v292, 2147483648
    %v387 = vxor.u32 %v297, 2147483648
    %v388 = vxor.u32 %v302, 2147483648
    %v389 = vxor.u32 %v307, 2147483648
    %v390 = vxor.u32 %v312, 2147483648
    %v391 = vxor.u32 %v317, 2147483648
    %v392 = vxor.u32 %v322, 2147483648
    %v393 = vxor.u32 %v327, 2147483648
    %v394 = vxor.u32 %v332, 2147483648
    %v395 = vxor.u32 %v337, 2147483648
    %v396 = vxor.u32 %v342, 2147483648
    %v397 = vxor.u32 %v347, 2147483648
    %v398 = vxor.u32 %v352, 2147483648
    %v399 = vxor.u32 %v357, 2147483648
    %v400 = vxor.u32 %v362, 2147483648
    %v401 = vxor.u32 %v367, 2147483648
    %v402 = vxor.u32 %v372, 2147483648
    %v403 = vmul.f32 %v375, 1.442695
    %v404 = vpow.pop %v403
    %v405 = vmul.f32 %v376, 1.442695
    %v406 = vpow.pop %v405
    %v407 = vmul.f32 %v377, 1.442695
    %v408 = vpow.pop %v407
    %v409 = vmul.f32 %v378, 1.442695
    %v410 = vpow.pop %v409
    %v411 = vmul.f32 %v379, 1.442695
    %v412 = vpow.pop %v411
    %v413 = vmul.f32 %v380, 1.442695
    %v414 = vpow.pop %v413
    %v415 = vmul.f32 %v381, 1.442695
    %v416 = vpow.pop %v415
    %v417 = vmul.f32 %v382, 1.442695
    %v418 = vpow.pop %v417
    %v419 = vmul.f32 %v383, 1.442695
    %v420 = vpow.pop %v419
    %v421 = vmul.f32 %v384, 1.442695
    %v422 = vpow.pop %v421
    %v423 = vmul.f32 %v385, 1.442695
    %v424 = vpow.pop %v423
    %v425 = vmul.f32 %v386, 1.442695
    %v426 = vpow.pop %v425
    %v427 = vmul.f32 %v387, 1.442695
    %v428 = vpow.pop %v427
    %v429 = vmul.f32 %v388, 1.442695
    %v430 = vpow.pop %v429
    %v431 = vmul.f32 %v389, 1.442695
    %v432 = vpow.pop %v431
    %v433 = vmul.f32 %v390, 1.442695
    %v434 = vpow.pop %v433
    %v435 = vmul.f32 %v391, 1.442695
    %v436 = vpow.pop %v435
    %v437 = vmul.f32 %v392, 1.442695
    %v438 = vpow.pop %v437
    %v439 = vmul.f32 %v393, 1.442695
    %v440 = vpow.pop %v439
    %v441 = vmul.f32 %v394, 1.442695
    %v442 = vpow.pop %v441
    %v443 = vmul.f32 %v395, 1.442695
    %v444 = vpow.pop %v443
    %v445 = vmul.f32 %v396, 1.442695
    %v446 = vpow.pop %v445
    %v447 = vmul.f32 %v397, 1.442695
    %v448 = vpow.pop %v447
    %v449 = vmul.f32 %v398, 1.442695
    %v450 = vpow.pop %v449
    %v451 = vmul.f32 %v399, 1.442695
    %v452 = vpow.pop %v451
    %v453 = vmul.f32 %v400, 1.442695
    %v454 = vpow.pop %v453
    %v455 = vmul.f32 %v401, 1.442695
    %v456 = vpow.pop %v455
    %v457 = vmul.f32 %v402, 1.442695
    %v458 = vpow.pop %v457
    %v459 = vadd.f32 %v404, 1.0
    %v460 = vadd.f32 %v406, 1.0
    %v461 = vadd.f32 %v408, 1.0
    %v462 = vadd.f32 %v410, 1.0
    %v463 = vadd.f32 %v412, 1.0
    %v464 = vadd.f32 %v414, 1.0
    %v465 = vadd.f32 %v416, 1.0
    %v466 = vadd.f32 %v418, 1.0
    %v467 = vadd.f32 %v420, 1.0
    %v468 = vadd.f32 %v422, 1.0
    %v469 = vadd.f32 %v424, 1.0
    %v470 = vadd.f32 %v426, 1.0
    %v471 = vadd.f32 %v428, 1.0
    %v472 = vadd.f32 %v430, 1.0
    %v473 = vadd.f32 %v432, 1.0
    %v474 = vadd.f32 %v434, 1.0
    %v475 = vadd.f32 %v436, 1.0
    %v476 = vadd.f32 %v438, 1.0
    %v477 = vadd.f32 %v440, 1.0
    %v478 = vadd.f32 %v442, 1.0
    %v479 = vadd.f32 %v444, 1.0
    %v480 = vadd.f32 %v446, 1.0
    %v481 = vadd.f32 %v448, 1.0
    %v482 = vadd.f32 %v450, 1.0
    %v483 = vadd.f32 %v452, 1.0
    %v484 = vadd.f32 %v454, 1.0
    %v485 = vadd.f32 %v456, 1.0
    %v486 = vadd.f32 %v458, 1.0
    %v487 = vrcp.pop %v459
    %v488 = vmul.f32 1.0, %v487
    %v489 = vrcp.pop %v460
    %v490 = vmul.f32 1.0, %v489
    %v491 = vrcp.pop %v461
    %v492 = vmul.f32 1.0, %v491
    %v493 = vrcp.pop %v462
    %v494 = vmul.f32 1.0, %v493
    %v495 = vrcp.pop %v463
    %v496 = vmul.f32 1.0, %v495
    %v497 = vrcp.pop %v464
    %v498 = vmul.f32 1.0, %v497
    %v499 = vrcp.pop %v465
    %v500 = vmul.f32 1.0, %v499
    %v501 = vrcp.pop %v466
    %v502 = vmul.f32 1.0, %v501
    %v503 = vrcp.pop %v467
    %v504 = vmul.f32 1.0, %v503
    %v505 = vrcp.pop %v468
    %v506 = vmul.f32 1.0, %v505
    %v507 = vrcp.pop %v469
    %v508 = vmul.f32 1.0, %v507
    %v509 = vrcp.pop %v470
    %v510 = vmul.f32 1.0, %v509
    %v511 = vrcp.pop %v471
    %v512 = vmul.f32 1.0, %v511
    %v513 = vrcp.pop %v472
    %v514 = vmul.f32 1.0, %v513
    %v515 = vrcp.pop %v473
    %v516 = vmul.f32 1.0, %v515
    %v517 = vrcp.pop %v474
    %v518 = vmul.f32 1.0, %v517
    %v519 = vrcp.pop %v475
    %v520 = vmul.f32 1.0, %v519
    %v521 = vrcp.pop %v476
    %v522 = vmul.f32 1.0, %v521
    %v523 = vrcp.pop %v477
    %v524 = vmul.f32 1.0, %v523
    %v525 = vrcp.pop %v478
    %v526 = vmul.f32 1.0, %v525
    %v527 = vrcp.pop %v479
    %v528 = vmul.f32 1.0, %v527
    %v529 = vrcp.pop %v480
    %v530 = vmul.f32 1.0, %v529
    %v531 = vrcp.pop %v481
    %v532 = vmul.f32 1.0, %v531
    %v533 = vrcp.pop %v482
    %v534 = vmul.f32 1.0, %v533
    %v535 = vrcp.pop %v483
    %v536 = vmul.f32 1.0, %v535
    %v537 = vrcp.pop %v484
    %v538 = vmul.f32 1.0, %v537
    %v539 = vrcp.pop %v485
    %v540 = vmul.f32 1.0, %v539
    %v541 = vrcp.pop %v486
    %v542 = vmul.f32 1.0, %v541
    %543 = vst [vmem:[%s3] sm:$0xff] %v488
    %544 = vst [vmem:[%s3 + $0x8] sm:$0xff] %v490
    %545 = vst [vmem:[%s3 + $0x10] sm:$0xff] %v492
    %546 = vst [vmem:[%s3 + $0x18] sm:$0xff] %v494
    %547 = vst [vmem:[%s3 + $0x20] sm:$0xff] %v496
    %548 = vst [vmem:[%s3 + $0x28] sm:$0xff] %v498
    %549 = vst [vmem:[%s3 + $0x30] sm:$0xff] %v500
    %550 = vst [vmem:[%s3 + $0x38] sm:$0xff] %v502
    %551 = vst [vmem:[%s3 + $0x40] sm:$0xff] %v504
    %552 = vst [vmem:[%s3 + $0x48] sm:$0xff] %v506
    %553 = vst [vmem:[%s3 + $0x50] sm:$0xff] %v508
    %554 = vst [vmem:[%s3 + $0x58] sm:$0xff] %v510
    %555 = vst [vmem:[%s3 + $0x60] sm:$0xff] %v512
    %556 = vst [vmem:[%s3 + $0x68] sm:$0xff] %v514
    %557 = vst [vmem:[%s3 + $0x70] sm:$0xff] %v516
    %558 = vst [vmem:[%s3 + $0x78] sm:$0xff] %v518
    %559 = vst [vmem:[%s3 + $0x80] sm:$0xff] %v520
    %560 = vst [vmem:[%s3 + $0x88] sm:$0xff] %v522
    %561 = vst [vmem:[%s3 + $0x90] sm:$0xff] %v524
    %562 = vst [vmem:[%s3 + $0x98] sm:$0xff] %v526
    %563 = vst [vmem:[%s3 + $0xa0] sm:$0xff] %v528
    %564 = vst [vmem:[%s3 + $0xa8] sm:$0xff] %v530
    %565 = vst [vmem:[%s3 + $0xb0] sm:$0xff] %v532
    %566 = vst [vmem:[%s3 + $0xb8] sm:$0xff] %v534
    %567 = vst [vmem:[%s3 + $0xc0] sm:$0xff] %v536
    %568 = vst [vmem:[%s3 + $0xc8] sm:$0xff] %v538
    %569 = vst [vmem:[%s3 + $0xd0] sm:$0xff] %v540
    %570 = vst [vmem:[%s3 + $0xd8] sm:$0xff] %v542
    // Predicated region
    $region22: #{elm_ae_forward.3} parent=1 // pred_check
      _
    $region23: #{elm_ae_forward.3} parent=1 // pred_check_branch
      %572 = sbr.rel (0) target = $region25
    $region24: #{elm_ae_forward.3} parent=1 // pred_region
      _
    $region25: #{elm_ae_forward.3} parent=1 // pred_fallthru
      _
    // Predicated region
    $region26: #{elm_ae_forward.3} parent=1 // pred_check
      _
    $region27: #{elm_ae_forward.3} parent=1 // pred_check_branch
      %574 = sbr.rel (0) target = $region29
    $region28: #{elm_ae_forward.3} parent=1 // pred_region
      _
    $region29: #{elm_ae_forward.3} parent=1 // pred_fallthru
      _
    %575 = vsyncpa [#allocation3], 1
    %576 = vsyncpa [#allocation5], 1

// kernel: elm_ae_forward.4
$region0: #{elm_ae_forward.4}
  #allocation0 [shape = 'u32[]', space=smem, size = 0x4, offset = 0x4, fixed_abs, tag = 'smem constant byte address 0x4 - core index']
  #allocation1 [shape = 'u32[144,128]{1,0:T(1,128)}', space=vmem, size = 0x12000, scoped, tag = 'internal scratch']
  %s0 = inlined_call_operand.vmem [shape: f32[8,28,128], index: 0, kind: input, shape index: {}]
  %s1 = inlined_call_operand.vmem [shape: f32[8,28,28], index: 1, kind: output, shape index: {}]
  %s2 = sld [smem:[#allocation0]]
  $region14: #{elm_ae_forward.4} parent=0
    _
  %s4 = ssub.s32 1, %s2
  %s5 = scalar_select 0, %s4, %s2
  // Predicated region
  $region2: #{elm_ae_forward.4} parent=0 // pred_check
    _
  $region3: #{elm_ae_forward.4} parent=0 // pred_check_branch
    %7 = sbr.rel (0) target = $region5
  $region4: #{elm_ae_forward.4} parent=0 // pred_region
    _
  $region5: #{elm_ae_forward.4} parent=0 // pred_fallthru
    _
  %v8 = vld [vmem:[%s0] sm:$0xff]
  %v9 = vld [vmem:[%s0 + $0x8] sm:$0xff]
  %v10 = vld [vmem:[%s0 + $0x10] sm:$0xff]
  %v11 = vld [vmem:[%s0 + $0x18] sm:$0xf]
  %v12 = vld [vmem:[%s0 + $0x20] sm:$0xff]
  %v13 = vld [vmem:[%s0 + $0x28] sm:$0xff]
  %v14 = vld [vmem:[%s0 + $0x30] sm:$0xff]
  %v15 = vld [vmem:[%s0 + $0x38] sm:$0xf]
  %v16 = vld [vmem:[%s0 + $0x40] sm:$0xff]
  %v17 = vld [vmem:[%s0 + $0x48] sm:$0xff]
  %v18 = vld [vmem:[%s0 + $0x50] sm:$0xff]
  %v19 = vld [vmem:[%s0 + $0x58] sm:$0xf]
  %v20 = vld [vmem:[%s0 + $0x60] sm:$0xff]
  %v21 = vld [vmem:[%s0 + $0x68] sm:$0xff]
  %v22 = vld [vmem:[%s0 + $0x70] sm:$0xff]
  %v23 = vld [vmem:[%s0 + $0x78] sm:$0xf]
  %v24 = vld [vmem:[%s0 + $0x80] sm:$0xff]
  %v25 = vld [vmem:[%s0 + $0x88] sm:$0xff]
  %v26 = vld [vmem:[%s0 + $0x90] sm:$0xff]
  %v27 = vld [vmem:[%s0 + $0x98] sm:$0xf]
  %v28 = vld [vmem:[%s0 + $0xa0] sm:$0xff]
  %v29 = vld [vmem:[%s0 + $0xa8] sm:$0xff]
  %v30 = vld [vmem:[%s0 + $0xb0] sm:$0xff]
  %v31 = vld [vmem:[%s0 + $0xb8] sm:$0xf]
  %v32 = vld [vmem:[%s0 + $0xc0] sm:$0xff]
  %v33 = vld [vmem:[%s0 + $0xc8] sm:$0xff]
  %v34 = vld [vmem:[%s0 + $0xd0] sm:$0xff]
  %v35 = vld [vmem:[%s0 + $0xd8] sm:$0xf]
  %v36 = vld [vmem:[%s0 + $0xe0] sm:$0xff]
  %v37 = vld [vmem:[%s0 + $0xe8] sm:$0xff]
  %v38 = vld [vmem:[%s0 + $0xf0] sm:$0xff]
  %v39 = vld [vmem:[%s0 + $0xf8] sm:$0xf]
  %40 = vmatprep.subr.mxu0 0.0
  %41 = vmatpush1.xpose.msra.mxu0 0.0
  %42 = vmatprep.subr.mxu0 0.0
  %43 = vmatpush1.xpose.msra.mxu0 0.0
  %44 = vmatprep.subr.mxu0 0.0
  %45 = vmatpush1.xpose.msra.mxu0 0.0
  %46 = vmatprep.subr.mxu0 0.0
  %47 = vmatpush1.xpose.msra.mxu0 0.0
  %48 = vmatprep.subr.mxu0 0.0
  %49 = vmatpush1.xpose.msra.mxu0 0.0
  %50 = vmatprep.subr.mxu0 0.0
  %51 = vmatpush1.xpose.msra.mxu0 0.0
  %52 = vmatprep.subr.mxu0 0.0
  %53 = vmatpush1.xpose.msra.mxu0 0.0
  %54 = vmatprep.subr.mxu0 0.0
  %55 = vmatpush1.xpose.msra.mxu0 0.0
  %56 = vmatprep.subr.mxu0 0.0
  %57 = vmatpush1.xpose.msra.mxu0 0.0
  %58 = vmatprep.subr.mxu0 0.0
  %59 = vmatpush1.xpose.msra.mxu0 0.0
  %60 = vmatprep.subr.mxu0 0.0
  %61 = vmatpush1.xpose.msra.mxu0 0.0
  %62 = vmatprep.subr.mxu0 0.0
  %63 = vmatpush1.xpose.msra.mxu0 0.0
  %64 = vmatprep.subr.mxu0 0.0
  %65 = vmatpush1.xpose.msra.mxu0 %v11
  %66 = vmatprep.subr.mxu0 0.0
  %67 = vmatpush1.xpose.msra.mxu0 %v10
  %68 = vmatprep.subr.mxu0 0.0
  %69 = vmatpush1.xpose.msra.mxu0 %v9
  %70 = vmatprep.subr.mxu0 0.0
  %71 = vmatpush1.xpose.msra.mxu0 %v8
  %72 = vmatprep.subr.mxu0 0.0
  %73 = vmatpush2.xpose.msra.mxu0 0.0
  %74 = vmatprep.subr.mxu0 0.0
  %75 = vmatpush2.xpose.msra.mxu0 0.0
  %76 = vmatprep.subr.mxu0 0.0
  %77 = vmatpush2.xpose.msra.mxu0 0.0
  %78 = vmatprep.subr.mxu0 0.0
  %79 = vmatpush2.xpose.msra.mxu0 0.0
  %80 = vmatprep.subr.mxu0 0.0
  %81 = vmatpush2.xpose.msra.mxu0 0.0
  %82 = vmatprep.subr.mxu0 0.0
  %83 = vmatpush2.xpose.msra.mxu0 0.0
  %84 = vmatprep.subr.mxu0 0.0
  %85 = vmatpush2.xpose.msra.mxu0 0.0
  %86 = vmatprep.subr.mxu0 0.0
  %87 = vmatpush2.xpose.msra.mxu0 0.0
  %88 = vmatprep.subr.mxu0 0.0
  %89 = vmatpush2.xpose.msra.mxu0 0.0
  %90 = vmatprep.subr.mxu0 0.0
  %91 = vmatpush2.xpose.msra.mxu0 0.0
  %92 = vmatprep.subr.mxu0 0.0
  %93 = vmatpush2.xpose.msra.mxu0 0.0
  %94 = vmatprep.subr.mxu0 0.0
  %95 = vmatpush2.xpose.msra.mxu0 0.0
  %96 = vmatprep.subr.mxu0 0.0
  %97 = vmatpush2.xpose.msra.mxu0 0.0
  %98 = vmatprep.subr.mxu0 0.0
  %99 = vmatpush2.xpose.msra.mxu0 0.0
  %100 = vmatprep.subr.mxu0 0.0
  %101 = vmatpush2.xpose.msra.mxu0 0.0
  %102 = vmatprep.subr.mxu0 0.0
  %103 = vmatpush2.xpose.msra.mxu0 0.0
  %104 = vmatprep.mubr.f32.mxu0 0.0
  %105 = vmatmul.mubr.f32.gmra.mxu0 %v8
  %v106 = vpop.f32.mrf.mxu0
  %v107 = vadd.f32 0.0, %v106
  %v108 = vpop.f32.mrf.mxu0
  %109 = vmatprep.mubr.f32.mxu0 0.0
  %110 = vmatmul.mubr.f32.gmra.mxu0 %v9
  %v111 = vpop.f32.mrf.mxu0
  %v112 = vadd.f32 0.0, %v111
  %v113 = vpop.f32.mrf.mxu0
  %114 = vmatprep.mubr.f32.mxu0 0.0
  %115 = vmatmul.mubr.f32.gmra.mxu0 %v10
  %v116 = vpop.f32.mrf.mxu0
  %v117 = vadd.f32 0.0, %v116
  %v118 = vpop.f32.mrf.mxu0
  %119 = vmatprep.mubr.f32.mxu0 0.0
  %120 = vmatmul.mubr.f32.gmra.mxu0 %v11
  %v121 = vpop.f32.mrf.mxu0
  %v122 = vadd.f32 0.0, %v121
  %v123 = vpop.f32.mrf.mxu0
  %124 = vdwg.mxu0
  %125 = vmatprep.subr.mxu0 0.0
  %126 = vmatpush1.xpose.msra.mxu0 0.0
  %127 = vmatprep.subr.mxu0 0.0
  %128 = vmatpush1.xpose.msra.mxu0 0.0
  %129 = vmatprep.subr.mxu0 0.0
  %130 = vmatpush1.xpose.msra.mxu0 0.0
  %131 = vmatprep.subr.mxu0 0.0
  %132 = vmatpush1.xpose.msra.mxu0 0.0
  %133 = vmatprep.subr.mxu0 0.0
  %134 = vmatpush1.xpose.msra.mxu0 0.0
  %135 = vmatprep.subr.mxu0 0.0
  %136 = vmatpush1.xpose.msra.mxu0 0.0
  %137 = vmatprep.subr.mxu0 0.0
  %138 = vmatpush1.xpose.msra.mxu0 0.0
  %139 = vmatprep.subr.mxu0 0.0
  %140 = vmatpush1.xpose.msra.mxu0 0.0
  %141 = vmatprep.subr.mxu0 0.0
  %142 = vmatpush1.xpose.msra.mxu0 0.0
  %143 = vmatprep.subr.mxu0 0.0
  %144 = vmatpush1.xpose.msra.mxu0 0.0
  %145 = vmatprep.subr.mxu0 0.0
  %146 = vmatpush1.xpose.msra.mxu0 0.0
  %147 = vmatprep.subr.mxu0 0.0
  %148 = vmatpush1.xpose.msra.mxu0 0.0
  %149 = vmatprep.subr.mxu0 0.0
  %150 = vmatpush1.xpose.msra.mxu0 %v15
  %151 = vmatprep.subr.mxu0 0.0
  %152 = vmatpush1.xpose.msra.mxu0 %v14
  %153 = vmatprep.subr.mxu0 0.0
  %154 = vmatpush1.xpose.msra.mxu0 %v13
  %155 = vmatprep.subr.mxu0 0.0
  %156 = vmatpush1.xpose.msra.mxu0 %v12
  %157 = vmatprep.subr.mxu0 0.0
  %158 = vmatpush2.xpose.msra.mxu0 0.0
  %159 = vmatprep.subr.mxu0 0.0
  %160 = vmatpush2.xpose.msra.mxu0 0.0
  %161 = vmatprep.subr.mxu0 0.0
  %162 = vmatpush2.xpose.msra.mxu0 0.0
  %163 = vmatprep.subr.mxu0 0.0
  %164 = vmatpush2.xpose.msra.mxu0 0.0
  %165 = vmatprep.subr.mxu0 0.0
  %166 = vmatpush2.xpose.msra.mxu0 0.0
  %167 = vmatprep.subr.mxu0 0.0
  %168 = vmatpush2.xpose.msra.mxu0 0.0
  %169 = vmatprep.subr.mxu0 0.0
  %170 = vmatpush2.xpose.msra.mxu0 0.0
  %171 = vmatprep.subr.mxu0 0.0
  %172 = vmatpush2.xpose.msra.mxu0 0.0
  %173 = vmatprep.subr.mxu0 0.0
  %174 = vmatpush2.xpose.msra.mxu0 0.0
  %175 = vmatprep.subr.mxu0 0.0
  %176 = vmatpush2.xpose.msra.mxu0 0.0
  %177 = vmatprep.subr.mxu0 0.0
  %178 = vmatpush2.xpose.msra.mxu0 0.0
  %179 = vmatprep.subr.mxu0 0.0
  %180 = vmatpush2.xpose.msra.mxu0 0.0
  %181 = vmatprep.subr.mxu0 0.0
  %182 = vmatpush2.xpose.msra.mxu0 0.0
  %183 = vmatprep.subr.mxu0 0.0
  %184 = vmatpush2.xpose.msra.mxu0 0.0
  %185 = vmatprep.subr.mxu0 0.0
  %186 = vmatpush2.xpose.msra.mxu0 0.0
  %187 = vmatprep.subr.mxu0 0.0
  %188 = vmatpush2.xpose.msra.mxu0 0.0
  %189 = vmatprep.mubr.f32.mxu0 0.0
  %190 = vmatmul.mubr.f32.gmra.mxu0 %v12
  %v191 = vpop.f32.mrf.mxu0
  %v192 = vadd.f32 0.0, %v191
  %v193 = vpop.f32.mrf.mxu0
  %194 = vmatprep.mubr.f32.mxu0 0.0
  %195 = vmatmul.mubr.f32.gmra.mxu0 %v13
  %v196 = vpop.f32.mrf.mxu0
  %v197 = vadd.f32 0.0, %v196
  %v198 = vpop.f32.mrf.mxu0
  %199 = vmatprep.mubr.f32.mxu0 0.0
  %200 = vmatmul.mubr.f32.gmra.mxu0 %v14
  %v201 = vpop.f32.mrf.mxu0
  %v202 = vadd.f32 0.0, %v201
  %v203 = vpop.f32.mrf.mxu0
  %204 = vmatprep.mubr.f32.mxu0 0.0
  %205 = vmatmul.mubr.f32.gmra.mxu0 %v15
  %v206 = vpop.f32.mrf.mxu0
  %v207 = vadd.f32 0.0, %v206
  %v208 = vpop.f32.mrf.mxu0
  %209 = vdwg.mxu0
  %210 = vmatprep.subr.mxu0 0.0
  %211 = vmatpush1.xpose.msra.mxu0 0.0
  %212 = vmatprep.subr.mxu0 0.0
  %213 = vmatpush1.xpose.msra.mxu0 0.0
  %214 = vmatprep.subr.mxu0 0.0
  %215 = vmatpush1.xpose.msra.mxu0 0.0
  %216 = vmatprep.subr.mxu0 0.0
  %217 = vmatpush1.xpose.msra.mxu0 0.0
  %218 = vmatprep.subr.mxu0 0.0
  %219 = vmatpush1.xpose.msra.mxu0 0.0
  %220 = vmatprep.subr.mxu0 0.0
  %221 = vmatpush1.xpose.msra.mxu0 0.0
  %222 = vmatprep.subr.mxu0 0.0
  %223 = vmatpush1.xpose.msra.mxu0 0.0
  %224 = vmatprep.subr.mxu0 0.0
  %225 = vmatpush1.xpose.msra.mxu0 0.0
  %226 = vmatprep.subr.mxu0 0.0
  %227 = vmatpush1.xpose.msra.mxu0 0.0
  %228 = vmatprep.subr.mxu0 0.0
  %229 = vmatpush1.xpose.msra.mxu0 0.0
  %230 = vmatprep.subr.mxu0 0.0
  %231 = vmatpush1.xpose.msra.mxu0 0.0
  %232 = vmatprep.subr.mxu0 0.0
  %233 = vmatpush1.xpose.msra.mxu0 0.0
  %234 = vmatprep.subr.mxu0 0.0
  %235 = vmatpush1.xpose.msra.mxu0 %v19
  %236 = vmatprep.subr.mxu0 0.0
  %237 = vmatpush1.xpose.msra.mxu0 %v18
  %238 = vmatprep.subr.mxu0 0.0
  %239 = vmatpush1.xpose.msra.mxu0 %v17
  %240 = vmatprep.subr.mxu0 0.0
  %241 = vmatpush1.xpose.msra.mxu0 %v16
  %242 = vmatprep.subr.mxu0 0.0
  %243 = vmatpush2.xpose.msra.mxu0 0.0
  %244 = vmatprep.subr.mxu0 0.0
  %245 = vmatpush2.xpose.msra.mxu0 0.0
  %246 = vmatprep.subr.mxu0 0.0
  %247 = vmatpush2.xpose.msra.mxu0 0.0
  %248 = vmatprep.subr.mxu0 0.0
  %249 = vmatpush2.xpose.msra.mxu0 0.0
  %250 = vmatprep.subr.mxu0 0.0
  %251 = vmatpush2.xpose.msra.mxu0 0.0
  %252 = vmatprep.subr.mxu0 0.0
  %253 = vmatpush2.xpose.msra.mxu0 0.0
  %254 = vmatprep.subr.mxu0 0.0
  %255 = vmatpush2.xpose.msra.mxu0 0.0
  %256 = vmatprep.subr.mxu0 0.0
  %257 = vmatpush2.xpose.msra.mxu0 0.0
  %258 = vmatprep.subr.mxu0 0.0
  %259 = vmatpush2.xpose.msra.mxu0 0.0
  %260 = vmatprep.subr.mxu0 0.0
  %261 = vmatpush2.xpose.msra.mxu0 0.0
  %262 = vmatprep.subr.mxu0 0.0
  %263 = vmatpush2.xpose.msra.mxu0 0.0
  %264 = vmatprep.subr.mxu0 0.0
  %265 = vmatpush2.xpose.msra.mxu0 0.0
  %266 = vmatprep.subr.mxu0 0.0
  %267 = vmatpush2.xpose.msra.mxu0 0.0
  %268 = vmatprep.subr.mxu0 0.0
  %269 = vmatpush2.xpose.msra.mxu0 0.0
  %270 = vmatprep.subr.mxu0 0.0
  %271 = vmatpush2.xpose.msra.mxu0 0.0
  %272 = vmatprep.subr.mxu0 0.0
  %273 = vmatpush2.xpose.msra.mxu0 0.0
  %274 = vmatprep.mubr.f32.mxu0 0.0
  %275 = vmatmul.mubr.f32.gmra.mxu0 %v16
  %v276 = vpop.f32.mrf.mxu0
  %v277 = vadd.f32 0.0, %v276
  %v278 = vpop.f32.mrf.mxu0
  %279 = vmatprep.mubr.f32.mxu0 0.0
  %280 = vmatmul.mubr.f32.gmra.mxu0 %v17
  %v281 = vpop.f32.mrf.mxu0
  %v282 = vadd.f32 0.0, %v281
  %v283 = vpop.f32.mrf.mxu0
  %284 = vmatprep.mubr.f32.mxu0 0.0
  %285 = vmatmul.mubr.f32.gmra.mxu0 %v18
  %v286 = vpop.f32.mrf.mxu0
  %v287 = vadd.f32 0.0, %v286
  %v288 = vpop.f32.mrf.mxu0
  %289 = vmatprep.mubr.f32.mxu0 0.0
  %290 = vmatmul.mubr.f32.gmra.mxu0 %v19
  %v291 = vpop.f32.mrf.mxu0
  %v292 = vadd.f32 0.0, %v291
  %v293 = vpop.f32.mrf.mxu0
  %294 = vdwg.mxu0
  %295 = vmatprep.subr.mxu0 0.0
  %296 = vmatpush1.xpose.msra.mxu0 0.0
  %297 = vmatprep.subr.mxu0 0.0
  %298 = vmatpush1.xpose.msra.mxu0 0.0
  %299 = vmatprep.subr.mxu0 0.0
  %300 = vmatpush1.xpose.msra.mxu0 0.0
  %301 = vmatprep.subr.mxu0 0.0
  %302 = vmatpush1.xpose.msra.mxu0 0.0
  %303 = vmatprep.subr.mxu0 0.0
  %304 = vmatpush1.xpose.msra.mxu0 0.0
  %305 = vmatprep.subr.mxu0 0.0
  %306 = vmatpush1.xpose.msra.mxu0 0.0
  %307 = vmatprep.subr.mxu0 0.0
  %308 = vmatpush1.xpose.msra.mxu0 0.0
  %309 = vmatprep.subr.mxu0 0.0
  %310 = vmatpush1.xpose.msra.mxu0 0.0
  %311 = vmatprep.subr.mxu0 0.0
  %312 = vmatpush1.xpose.msra.mxu0 0.0
  %313 = vmatprep.subr.mxu0 0.0
  %314 = vmatpush1.xpose.msra.mxu0 0.0
  %315 = vmatprep.subr.mxu0 0.0
  %316 = vmatpush1.xpose.msra.mxu0 0.0
  %317 = vmatprep.subr.mxu0 0.0
  %318 = vmatpush1.xpose.msra.mxu0 0.0
  %319 = vmatprep.subr.mxu0 0.0
  %320 = vmatpush1.xpose.msra.mxu0 %v23
  %321 = vmatprep.subr.mxu0 0.0
  %322 = vmatpush1.xpose.msra.mxu0 %v22
  %323 = vmatprep.subr.mxu0 0.0
  %324 = vmatpush1.xpose.msra.mxu0 %v21
  %325 = vmatprep.subr.mxu0 0.0
  %326 = vmatpush1.xpose.msra.mxu0 %v20
  %327 = vmatprep.subr.mxu0 0.0
  %328 = vmatpush2.xpose.msra.mxu0 0.0
  %329 = vmatprep.subr.mxu0 0.0
  %330 = vmatpush2.xpose.msra.mxu0 0.0
  %331 = vmatprep.subr.mxu0 0.0
  %332 = vmatpush2.xpose.msra.mxu0 0.0
  %333 = vmatprep.subr.mxu0 0.0
  %334 = vmatpush2.xpose.msra.mxu0 0.0
  %335 = vmatprep.subr.mxu0 0.0
  %336 = vmatpush2.xpose.msra.mxu0 0.0
  %337 = vmatprep.subr.mxu0 0.0
  %338 = vmatpush2.xpose.msra.mxu0 0.0
  %339 = vmatprep.subr.mxu0 0.0
  %340 = vmatpush2.xpose.msra.mxu0 0.0
  %341 = vmatprep.subr.mxu0 0.0
  %342 = vmatpush2.xpose.msra.mxu0 0.0
  %343 = vmatprep.subr.mxu0 0.0
  %344 = vmatpush2.xpose.msra.mxu0 0.0
  %345 = vmatprep.subr.mxu0 0.0
  %346 = vmatpush2.xpose.msra.mxu0 0.0
  %347 = vmatprep.subr.mxu0 0.0
  %348 = vmatpush2.xpose.msra.mxu0 0.0
  %349 = vmatprep.subr.mxu0 0.0
  %350 = vmatpush2.xpose.msra.mxu0 0.0
  %351 = vmatprep.subr.mxu0 0.0
  %352 = vmatpush2.xpose.msra.mxu0 0.0
  %353 = vmatprep.subr.mxu0 0.0
  %354 = vmatpush2.xpose.msra.mxu0 0.0
  %355 = vmatprep.subr.mxu0 0.0
  %356 = vmatpush2.xpose.msra.mxu0 0.0
  %357 = vmatprep.subr.mxu0 0.0
  %358 = vmatpush2.xpose.msra.mxu0 0.0
  %359 = vmatprep.mubr.f32.mxu0 0.0
  %360 = vmatmul.mubr.f32.gmra.mxu0 %v20
  %v361 = vpop.f32.mrf.mxu0
  %v362 = vadd.f32 0.0, %v361
  %v363 = vpop.f32.mrf.mxu0
  %364 = vmatprep.mubr.f32.mxu0 0.0
  %365 = vmatmul.mubr.f32.gmra.mxu0 %v21
  %v366 = vpop.f32.mrf.mxu0
  %v367 = vadd.f32 0.0, %v366
  %v368 = vpop.f32.mrf.mxu0
  %369 = vmatprep.mubr.f32.mxu0 0.0
  %370 = vmatmul.mubr.f32.gmra.mxu0 %v22
  %v371 = vpop.f32.mrf.mxu0
  %v372 = vadd.f32 0.0, %v371
  %v373 = vpop.f32.mrf.mxu0
  %374 = vmatprep.mubr.f32.mxu0 0.0
  %375 = vmatmul.mubr.f32.gmra.mxu0 %v23
  %v376 = vpop.f32.mrf.mxu0
  %v377 = vadd.f32 0.0, %v376
  %v378 = vpop.f32.mrf.mxu0
  %379 = vdwg.mxu0
  %380 = vmatprep.subr.mxu0 0.0
  %381 = vmatpush1.xpose.msra.mxu0 0.0
  %382 = vmatprep.subr.mxu0 0.0
  %383 = vmatpush1.xpose.msra.mxu0 0.0
  %384 = vmatprep.subr.mxu0 0.0
  %385 = vmatpush1.xpose.msra.mxu0 0.0
  %386 = vmatprep.subr.mxu0 0.0
  %387 = vmatpush1.xpose.msra.mxu0 0.0
  %388 = vmatprep.subr.mxu0 0.0
  %389 = vmatpush1.xpose.msra.mxu0 0.0
  %390 = vmatprep.subr.mxu0 0.0
  %391 = vmatpush1.xpose.msra.mxu0 0.0
  %392 = vmatprep.subr.mxu0 0.0
  %393 = vmatpush1.xpose.msra.mxu0 0.0
  %394 = vmatprep.subr.mxu0 0.0
  %395 = vmatpush1.xpose.msra.mxu0 0.0
  %396 = vmatprep.subr.mxu0 0.0
  %397 = vmatpush1.xpose.msra.mxu0 0.0
  %398 = vmatprep.subr.mxu0 0.0
  %399 = vmatpush1.xpose.msra.mxu0 0.0
  %400 = vmatprep.subr.mxu0 0.0
  %401 = vmatpush1.xpose.msra.mxu0 0.0
  %402 = vmatprep.subr.mxu0 0.0
  %403 = vmatpush1.xpose.msra.mxu0 0.0
  %404 = vmatprep.subr.mxu0 0.0
  %405 = vmatpush1.xpose.msra.mxu0 %v27
  %406 = vmatprep.subr.mxu0 0.0
  %407 = vmatpush1.xpose.msra.mxu0 %v26
  %408 = vmatprep.subr.mxu0 0.0
  %409 = vmatpush1.xpose.msra.mxu0 %v25
  %410 = vmatprep.subr.mxu0 0.0
  %411 = vmatpush1.xpose.msra.mxu0 %v24
  %412 = vmatprep.subr.mxu0 0.0
  %413 = vmatpush2.xpose.msra.mxu0 0.0
  %414 = vmatprep.subr.mxu0 0.0
  %415 = vmatpush2.xpose.msra.mxu0 0.0
  %416 = vmatprep.subr.mxu0 0.0
  %417 = vmatpush2.xpose.msra.mxu0 0.0
  %418 = vmatprep.subr.mxu0 0.0
  %419 = vmatpush2.xpose.msra.mxu0 0.0
  %420 = vmatprep.subr.mxu0 0.0
  %421 = vmatpush2.xpose.msra.mxu0 0.0
  %422 = vmatprep.subr.mxu0 0.0
  %423 = vmatpush2.xpose.msra.mxu0 0.0
  %424 = vmatprep.subr.mxu0 0.0
  %425 = vmatpush2.xpose.msra.mxu0 0.0
  %426 = vmatprep.subr.mxu0 0.0
  %427 = vmatpush2.xpose.msra.mxu0 0.0
  %428 = vmatprep.subr.mxu0 0.0
  %429 = vmatpush2.xpose.msra.mxu0 0.0
  %430 = vmatprep.subr.mxu0 0.0
  %431 = vmatpush2.xpose.msra.mxu0 0.0
  %432 = vmatprep.subr.mxu0 0.0
  %433 = vmatpush2.xpose.msra.mxu0 0.0
  %434 = vmatprep.subr.mxu0 0.0
  %435 = vmatpush2.xpose.msra.mxu0 0.0
  %436 = vmatprep.subr.mxu0 0.0
  %437 = vmatpush2.xpose.msra.mxu0 0.0
  %438 = vmatprep.subr.mxu0 0.0
  %439 = vmatpush2.xpose.msra.mxu0 0.0
  %440 = vmatprep.subr.mxu0 0.0
  %441 = vmatpush2.xpose.msra.mxu0 0.0
  %442 = vmatprep.subr.mxu0 0.0
  %443 = vmatpush2.xpose.msra.mxu0 0.0
  %444 = vmatprep.mubr.f32.mxu0 0.0
  %445 = vmatmul.mubr.f32.gmra.mxu0 %v24
  %v446 = vpop.f32.mrf.mxu0
  %v447 = vadd.f32 0.0, %v446
  %v448 = vpop.f32.mrf.mxu0
  %449 = vmatprep.mubr.f32.mxu0 0.0
  %450 = vmatmul.mubr.f32.gmra.mxu0 %v25
  %v451 = vpop.f32.mrf.mxu0
  %v452 = vadd.f32 0.0, %v451
  %v453 = vpop.f32.mrf.mxu0
  %454 = vmatprep.mubr.f32.mxu0 0.0
  %455 = vmatmul.mubr.f32.gmra.mxu0 %v26
  %v456 = vpop.f32.mrf.mxu0
  %v457 = vadd.f32 0.0, %v456
  %v458 = vpop.f32.mrf.mxu0
  %459 = vmatprep.mubr.f32.mxu0 0.0
  %460 = vmatmul.mubr.f32.gmra.mxu0 %v27
  %v461 = vpop.f32.mrf.mxu0
  %v462 = vadd.f32 0.0, %v461
  %v463 = vpop.f32.mrf.mxu0
  %464 = vdwg.mxu0
  %465 = vmatprep.subr.mxu0 0.0
  %466 = vmatpush1.xpose.msra.mxu0 0.0
  %467 = vmatprep.subr.mxu0 0.0
  %468 = vmatpush1.xpose.msra.mxu0 0.0
  %469 = vmatprep.subr.mxu0 0.0
  %470 = vmatpush1.xpose.msra.mxu0 0.0
  %471 = vmatprep.subr.mxu0 0.0
  %472 = vmatpush1.xpose.msra.mxu0 0.0
  %473 = vmatprep.subr.mxu0 0.0
  %474 = vmatpush1.xpose.msra.mxu0 0.0
  %475 = vmatprep.subr.mxu0 0.0
  %476 = vmatpush1.xpose.msra.mxu0 0.0
  %477 = vmatprep.subr.mxu0 0.0
  %478 = vmatpush1.xpose.msra.mxu0 0.0
  %479 = vmatprep.subr.mxu0 0.0
  %480 = vmatpush1.xpose.msra.mxu0 0.0
  %481 = vmatprep.subr.mxu0 0.0
  %482 = vmatpush1.xpose.msra.mxu0 0.0
  %483 = vmatprep.subr.mxu0 0.0
  %484 = vmatpush1.xpose.msra.mxu0 0.0
  %485 = vmatprep.subr.mxu0 0.0
  %486 = vmatpush1.xpose.msra.mxu0 0.0
  %487 = vmatprep.subr.mxu0 0.0
  %488 = vmatpush1.xpose.msra.mxu0 0.0
  %489 = vmatprep.subr.mxu0 0.0
  %490 = vmatpush1.xpose.msra.mxu0 %v31
  %491 = vmatprep.subr.mxu0 0.0
  %492 = vmatpush1.xpose.msra.mxu0 %v30
  %493 = vmatprep.subr.mxu0 0.0
  %494 = vmatpush1.xpose.msra.mxu0 %v29
  %495 = vmatprep.subr.mxu0 0.0
  %496 = vmatpush1.xpose.msra.mxu0 %v28
  %497 = vmatprep.subr.mxu0 0.0
  %498 = vmatpush2.xpose.msra.mxu0 0.0
  %499 = vmatprep.subr.mxu0 0.0
  %500 = vmatpush2.xpose.msra.mxu0 0.0
  %501 = vmatprep.subr.mxu0 0.0
  %502 = vmatpush2.xpose.msra.mxu0 0.0
  %503 = vmatprep.subr.mxu0 0.0
  %504 = vmatpush2.xpose.msra.mxu0 0.0
  %505 = vmatprep.subr.mxu0 0.0
  %506 = vmatpush2.xpose.msra.mxu0 0.0
  %507 = vmatprep.subr.mxu0 0.0
  %508 = vmatpush2.xpose.msra.mxu0 0.0
  %509 = vmatprep.subr.mxu0 0.0
  %510 = vmatpush2.xpose.msra.mxu0 0.0
  %511 = vmatprep.subr.mxu0 0.0
  %512 = vmatpush2.xpose.msra.mxu0 0.0
  %513 = vmatprep.subr.mxu0 0.0
  %514 = vmatpush2.xpose.msra.mxu0 0.0
  %515 = vmatprep.subr.mxu0 0.0
  %516 = vmatpush2.xpose.msra.mxu0 0.0
  %517 = vmatprep.subr.mxu0 0.0
  %518 = vmatpush2.xpose.msra.mxu0 0.0
  %519 = vmatprep.subr.mxu0 0.0
  %520 = vmatpush2.xpose.msra.mxu0 0.0
  %521 = vmatprep.subr.mxu0 0.0
  %522 = vmatpush2.xpose.msra.mxu0 0.0
  %523 = vmatprep.subr.mxu0 0.0
  %524 = vmatpush2.xpose.msra.mxu0 0.0
  %525 = vmatprep.subr.mxu0 0.0
  %526 = vmatpush2.xpose.msra.mxu0 0.0
  %527 = vmatprep.subr.mxu0 0.0
  %528 = vmatpush2.xpose.msra.mxu0 0.0
  %529 = vmatprep.mubr.f32.mxu0 0.0
  %530 = vmatmul.mubr.f32.gmra.mxu0 %v28
  %v531 = vpop.f32.mrf.mxu0
  %v532 = vadd.f32 0.0, %v531
  %v533 = vpop.f32.mrf.mxu0
  %534 = vmatprep.mubr.f32.mxu0 0.0
  %535 = vmatmul.mubr.f32.gmra.mxu0 %v29
  %v536 = vpop.f32.mrf.mxu0
  %v537 = vadd.f32 0.0, %v536
  %v538 = vpop.f32.mrf.mxu0
  %539 = vmatprep.mubr.f32.mxu0 0.0
  %540 = vmatmul.mubr.f32.gmra.mxu0 %v30
  %v541 = vpop.f32.mrf.mxu0
  %v542 = vadd.f32 0.0, %v541
  %v543 = vpop.f32.mrf.mxu0
  %544 = vmatprep.mubr.f32.mxu0 0.0
  %545 = vmatmul.mubr.f32.gmra.mxu0 %v31
  %v546 = vpop.f32.mrf.mxu0
  %v547 = vadd.f32 0.0, %v546
  %v548 = vpop.f32.mrf.mxu0
  %549 = vdwg.mxu0
  %550 = vmatprep.subr.mxu0 0.0
  %551 = vmatpush1.xpose.msra.mxu0 0.0
  %552 = vmatprep.subr.mxu0 0.0
  %553 = vmatpush1.xpose.msra.mxu0 0.0
  %554 = vmatprep.subr.mxu0 0.0
  %555 = vmatpush1.xpose.msra.mxu0 0.0
  %556 = vmatprep.subr.mxu0 0.0
  %557 = vmatpush1.xpose.msra.mxu0 0.0
  %558 = vmatprep.subr.mxu0 0.0
  %559 = vmatpush1.xpose.msra.mxu0 0.0
  %560 = vmatprep.subr.mxu0 0.0
  %561 = vmatpush1.xpose.msra.mxu0 0.0
  %562 = vmatprep.subr.mxu0 0.0
  %563 = vmatpush1.xpose.msra.mxu0 0.0
  %564 = vmatprep.subr.mxu0 0.0
  %565 = vmatpush1.xpose.msra.mxu0 0.0
  %566 = vmatprep.subr.mxu0 0.0
  %567 = vmatpush1.xpose.msra.mxu0 0.0
  %568 = vmatprep.subr.mxu0 0.0
  %569 = vmatpush1.xpose.msra.mxu0 0.0
  %570 = vmatprep.subr.mxu0 0.0
  %571 = vmatpush1.xpose.msra.mxu0 0.0
  %572 = vmatprep.subr.mxu0 0.0
  %573 = vmatpush1.xpose.msra.mxu0 0.0
  %574 = vmatprep.subr.mxu0 0.0
  %575 = vmatpush1.xpose.msra.mxu0 %v35
  %576 = vmatprep.subr.mxu0 0.0
  %577 = vmatpush1.xpose.msra.mxu0 %v34
  %578 = vmatprep.subr.mxu0 0.0
  %579 = vmatpush1.xpose.msra.mxu0 %v33
  %580 = vmatprep.subr.mxu0 0.0
  %581 = vmatpush1.xpose.msra.mxu0 %v32
  %582 = vmatprep.subr.mxu0 0.0
  %583 = vmatpush2.xpose.msra.mxu0 0.0
  %584 = vmatprep.subr.mxu0 0.0
  %585 = vmatpush2.xpose.msra.mxu0 0.0
  %586 = vmatprep.subr.mxu0 0.0
  %587 = vmatpush2.xpose.msra.mxu0 0.0
  %588 = vmatprep.subr.mxu0 0.0
  %589 = vmatpush2.xpose.msra.mxu0 0.0
  %590 = vmatprep.subr.mxu0 0.0
  %591 = vmatpush2.xpose.msra.mxu0 0.0
  %592 = vmatprep.subr.mxu0 0.0
  %593 = vmatpush2.xpose.msra.mxu0 0.0
  %594 = vmatprep.subr.mxu0 0.0
  %595 = vmatpush2.xpose.msra.mxu0 0.0
  %596 = vmatprep.subr.mxu0 0.0
  %597 = vmatpush2.xpose.msra.mxu0 0.0
  %598 = vmatprep.subr.mxu0 0.0
  %599 = vmatpush2.xpose.msra.mxu0 0.0
  %600 = vmatprep.subr.mxu0 0.0
  %601 = vmatpush2.xpose.msra.mxu0 0.0
  %602 = vmatprep.subr.mxu0 0.0
  %603 = vmatpush2.xpose.msra.mxu0 0.0
  %604 = vmatprep.subr.mxu0 0.0
  %605 = vmatpush2.xpose.msra.mxu0 0.0
  %606 = vmatprep.subr.mxu0 0.0
  %607 = vmatpush2.xpose.msra.mxu0 0.0
  %608 = vmatprep.subr.mxu0 0.0
  %609 = vmatpush2.xpose.msra.mxu0 0.0
  %610 = vmatprep.subr.mxu0 0.0
  %611 = vmatpush2.xpose.msra.mxu0 0.0
  %612 = vmatprep.subr.mxu0 0.0
  %613 = vmatpush2.xpose.msra.mxu0 0.0
  %614 = vmatprep.mubr.f32.mxu0 0.0
  %615 = vmatmul.mubr.f32.gmra.mxu0 %v32
  %v616 = vpop.f32.mrf.mxu0
  %v617 = vadd.f32 0.0, %v616
  %v618 = vpop.f32.mrf.mxu0
  %619 = vmatprep.mubr.f32.mxu0 0.0
  %620 = vmatmul.mubr.f32.gmra.mxu0 %v33
  %v621 = vpop.f32.mrf.mxu0
  %v622 = vadd.f32 0.0, %v621
  %v623 = vpop.f32.mrf.mxu0
  %624 = vmatprep.mubr.f32.mxu0 0.0
  %625 = vmatmul.mubr.f32.gmra.mxu0 %v34
  %v626 = vpop.f32.mrf.mxu0
  %v627 = vadd.f32 0.0, %v626
  %v628 = vpop.f32.mrf.mxu0
  %629 = vmatprep.mubr.f32.mxu0 0.0
  %630 = vmatmul.mubr.f32.gmra.mxu0 %v35
  %v631 = vpop.f32.mrf.mxu0
  %v632 = vadd.f32 0.0, %v631
  %v633 = vpop.f32.mrf.mxu0
  %634 = vdwg.mxu0
  %635 = vmatprep.subr.mxu0 0.0
  %636 = vmatpush1.xpose.msra.mxu0 0.0
  %637 = vmatprep.subr.mxu0 0.0
  %638 = vmatpush1.xpose.msra.mxu0 0.0
  %639 = vmatprep.subr.mxu0 0.0
  %640 = vmatpush1.xpose.msra.mxu0 0.0
  %641 = vmatprep.subr.mxu0 0.0
  %642 = vmatpush1.xpose.msra.mxu0 0.0
  %643 = vmatprep.subr.mxu0 0.0
  %644 = vmatpush1.xpose.msra.mxu0 0.0
  %645 = vmatprep.subr.mxu0 0.0
  %646 = vmatpush1.xpose.msra.mxu0 0.0
  %647 = vmatprep.subr.mxu0 0.0
  %648 = vmatpush1.xpose.msra.mxu0 0.0
  %649 = vmatprep.subr.mxu0 0.0
  %650 = vmatpush1.xpose.msra.mxu0 0.0
  %651 = vmatprep.subr.mxu0 0.0
  %652 = vmatpush1.xpose.msra.mxu0 0.0
  %653 = vmatprep.subr.mxu0 0.0
  %654 = vmatpush1.xpose.msra.mxu0 0.0
  %655 = vmatprep.subr.mxu0 0.0
  %656 = vmatpush1.xpose.msra.mxu0 0.0
  %657 = vmatprep.subr.mxu0 0.0
  %658 = vmatpush1.xpose.msra.mxu0 0.0
  %659 = vmatprep.subr.mxu0 0.0
  %660 = vmatpush1.xpose.msra.mxu0 %v39
  %661 = vmatprep.subr.mxu0 0.0
  %662 = vmatpush1.xpose.msra.mxu0 %v38
  %663 = vmatprep.subr.mxu0 0.0
  %664 = vmatpush1.xpose.msra.mxu0 %v37
  %665 = vmatprep.subr.mxu0 0.0
  %666 = vmatpush1.xpose.msra.mxu0 %v36
  %667 = vmatprep.subr.mxu0 0.0
  %668 = vmatpush2.xpose.msra.mxu0 0.0
  %669 = vmatprep.subr.mxu0 0.0
  %670 = vmatpush2.xpose.msra.mxu0 0.0
  %671 = vmatprep.subr.mxu0 0.0
  %672 = vmatpush2.xpose.msra.mxu0 0.0
  %673 = vmatprep.subr.mxu0 0.0
  %674 = vmatpush2.xpose.msra.mxu0 0.0
  %675 = vmatprep.subr.mxu0 0.0
  %676 = vmatpush2.xpose.msra.mxu0 0.0
  %677 = vmatprep.subr.mxu0 0.0
  %678 = vmatpush2.xpose.msra.mxu0 0.0
  %679 = vmatprep.subr.mxu0 0.0
  %680 = vmatpush2.xpose.msra.mxu0 0.0
  %681 = vmatprep.subr.mxu0 0.0
  %682 = vmatpush2.xpose.msra.mxu0 0.0
  %683 = vmatprep.subr.mxu0 0.0
  %684 = vmatpush2.xpose.msra.mxu0 0.0
  %685 = vmatprep.subr.mxu0 0.0
  %686 = vmatpush2.xpose.msra.mxu0 0.0
  %687 = vmatprep.subr.mxu0 0.0
  %688 = vmatpush2.xpose.msra.mxu0 0.0
  %689 = vmatprep.subr.mxu0 0.0
  %690 = vmatpush2.xpose.msra.mxu0 0.0
  %691 = vmatprep.subr.mxu0 0.0
  %692 = vmatpush2.xpose.msra.mxu0 0.0
  %693 = vmatprep.subr.mxu0 0.0
  %694 = vmatpush2.xpose.msra.mxu0 0.0
  %695 = vmatprep.subr.mxu0 0.0
  %696 = vmatpush2.xpose.msra.mxu0 0.0
  %697 = vmatprep.subr.mxu0 0.0
  %698 = vmatpush2.xpose.msra.mxu0 0.0
  %699 = vmatprep.mubr.f32.mxu0 0.0
  %700 = vmatmul.mubr.f32.gmra.mxu0 %v36
  %v701 = vpop.f32.mrf.mxu0
  %v702 = vadd.f32 0.0, %v701
  %v703 = vpop.f32.mrf.mxu0
  %704 = vmatprep.mubr.f32.mxu0 0.0
  %705 = vmatmul.mubr.f32.gmra.mxu0 %v37
  %v706 = vpop.f32.mrf.mxu0
  %v707 = vadd.f32 0.0, %v706
  %v708 = vpop.f32.mrf.mxu0
  %709 = vmatprep.mubr.f32.mxu0 0.0
  %710 = vmatmul.mubr.f32.gmra.mxu0 %v38
  %v711 = vpop.f32.mrf.mxu0
  %v712 = vadd.f32 0.0, %v711
  %v713 = vpop.f32.mrf.mxu0
  %714 = vmatprep.mubr.f32.mxu0 0.0
  %715 = vmatmul.mubr.f32.gmra.mxu0 %v39
  %v716 = vpop.f32.mrf.mxu0
  %v717 = vadd.f32 0.0, %v716
  %v718 = vpop.f32.mrf.mxu0
  %719 = vdwg.mxu0
  %vm720 = vcmask 228352
  %721 = vst.msk [vmem:[%s1] sm:$0xff] %vm720, %v107
  %722 = vst.msk [vmem:[%s1 + $0x8] sm:$0xff] %vm720, %v112
  %723 = vst.msk [vmem:[%s1 + $0x10] sm:$0xff] %vm720, %v117
  %vm724 = vcmask 224256
  %725 = vst.msk [vmem:[%s1 + $0x18] sm:$0xf] %vm724, %v122
  %726 = vst.msk [vmem:[%s1 + $0x20] sm:$0xff] %vm720, %v192
  %727 = vst.msk [vmem:[%s1 + $0x28] sm:$0xff] %vm720, %v197
  %728 = vst.msk [vmem:[%s1 + $0x30] sm:$0xff] %vm720, %v202
  %729 = vst.msk [vmem:[%s1 + $0x38] sm:$0xf] %vm724, %v207
  %730 = vst.msk [vmem:[%s1 + $0x40] sm:$0xff] %vm720, %v277
  %731 = vst.msk [vmem:[%s1 + $0x48] sm:$0xff] %vm720, %v282
  %732 = vst.msk [vmem:[%s1 + $0x50] sm:$0xff] %vm720, %v287
  %733 = vst.msk [vmem:[%s1 + $0x58] sm:$0xf] %vm724, %v292
  %734 = vst.msk [vmem:[%s1 + $0x60] sm:$0xff] %vm720, %v362
  %735 = vst.msk [vmem:[%s1 + $0x68] sm:$0xff] %vm720, %v367
  %736 = vst.msk [vmem:[%s1 + $0x70] sm:$0xff] %vm720, %v372
  %737 = vst.msk [vmem:[%s1 + $0x78] sm:$0xf] %vm724, %v377
  %738 = vst.msk [vmem:[%s1 + $0x80] sm:$0xff] %vm720, %v447
  %739 = vst.msk [vmem:[%s1 + $0x88] sm:$0xff] %vm720, %v452
  %740 = vst.msk [vmem:[%s1 + $0x90] sm:$0xff] %vm720, %v457
  %741 = vst.msk [vmem:[%s1 + $0x98] sm:$0xf] %vm724, %v462
  %742 = vst.msk [vmem:[%s1 + $0xa0] sm:$0xff] %vm720, %v532
  %743 = vst.msk [vmem:[%s1 + $0xa8] sm:$0xff] %vm720, %v537
  %744 = vst.msk [vmem:[%s1 + $0xb0] sm:$0xff] %vm720, %v542
  %745 = vst.msk [vmem:[%s1 + $0xb8] sm:$0xf] %vm724, %v547
  %746 = vst.msk [vmem:[%s1 + $0xc0] sm:$0xff] %vm720, %v617
  %747 = vst.msk [vmem:[%s1 + $0xc8] sm:$0xff] %vm720, %v622
  %748 = vst.msk [vmem:[%s1 + $0xd0] sm:$0xff] %vm720, %v627
  %749 = vst.msk [vmem:[%s1 + $0xd8] sm:$0xf] %vm724, %v632
  %750 = vst.msk [vmem:[%s1 + $0xe0] sm:$0xff] %vm720, %v702
  %751 = vst.msk [vmem:[%s1 + $0xe8] sm:$0xff] %vm720, %v707
  %752 = vst.msk [vmem:[%s1 + $0xf0] sm:$0xff] %vm720, %v712
  %753 = vst.msk [vmem:[%s1 + $0xf8] sm:$0xf] %vm724, %v717
  // Predicated region
  $region6: #{elm_ae_forward.4} parent=0 // pred_check
    _
  $region7: #{elm_ae_forward.4} parent=0 // pred_check_branch
    %755 = sbr.rel (0) target = $region9
  $region8: #{elm_ae_forward.4} parent=0 // pred_region
    _
  $region9: #{elm_ae_forward.4} parent=0 // pred_fallthru
    _
  // Predicated region
  $region10: #{elm_ae_forward.4} parent=0 // pred_check
    _
  $region11: #{elm_ae_forward.4} parent=0 // pred_check_branch
    %757 = sbr.rel (0) target = $region13
  $region12: #{elm_ae_forward.4} parent=0 // pred_region
    _
  $region13: #{elm_ae_forward.4} parent=0 // pred_fallthru
    _

// kernel: custom-call.4
$region0: #{custom-call.4}
  %s0 = inlined_call_operand.vmem [shape: f32[8,28,28], index: 0, kind: input, shape index: {}]
  %s1 = inlined_call_operand.vmem [shape: f32[8,28,28], index: 1, kind: output, shape index: {}]
  $region1: #{custom-call.4} parent=0
    #allocation0 [shape = 'u8[32768]{0}', space=vmem, size = 0x8000, scoped, tag = 'operand span for operand 0']
    #allocation1 [shape = 'u8[32768]{0}', space=vmem, size = 0x8000, scoped, tag = 'operand span for operand 1']
    loop: start=0, step=1, limit=10
    $region2: #{custom-call.4} parent=1 // loop_pre_header
      _
    $region3: #{custom-call.4} parent=1 // loop_header
      %s3 = sphi 0, %s7
      %p4 = scmp.ge.s32.totalorder %s3, 10
      %s10 = sphi 0, %s29
      %s11 = sphi 0, %s25
      %s12 = sphi 0, %s21
      %s13 = sphi 0, %s10
      %s14 = sphi 0, %s11
      %s15 = sphi 0, %s12
      %s16 = sphi 0, %s13
      %s17 = sphi 0, %s14
      %s18 = sphi 0, %s15
    $region4: #{custom-call.4} parent=1 // loop_header_branch
      %6 = sbr.rel (%p4) target = $region8
    $region5: #{custom-call.4} parent=1 // loop_body
      %s8 = ssub.s32 %s3, 1
      %s9 = ssub.s32 %s3, 2
      %s19 = sadd.s32 1, %s12
      %p20 = scmp.ge.s32.totalorder %s19, 1
      %s21 = scalar_select %p20, 0, %s19
      %s22 = sadd.s32 1, %s11
      %s23 = scalar_select %p20, %s22, %s11
      %p24 = scmp.ge.s32.totalorder %s23, 1
      %s25 = scalar_select %p24, 0, %s23
      %s26 = sadd.s32 1, %s10
      %s27 = scalar_select %p24, %s26, %s10
      %p28 = scmp.ge.s32.totalorder %s27, 8
      %s29 = scalar_select %p28, 0, %s27
      %p30 = scmp.le.s32.totalorder 1, %s3
      %p31 = scmp.lt.s32.totalorder %s3, 9
      %p32 = pnand %p30, %p31
      %p33 = pneg %p32
      // Predicated region
      $region9: #{custom-call.4} parent=5 // pred_check
        _
      $region10: #{custom-call.4} parent=5 // pred_check_branch
        %35 = sbr.rel (%p32) target = $region12
      $region11: #{custom-call.4} parent=5 // pred_region
        %s36 = ssub.s32 %s3, 1
      $region12: #{custom-call.4} parent=5 // pred_fallthru
        _
      %p37 = scmp.lt.s32.totalorder %s3, 8
      // Predicated region
      $region13: #{custom-call.4} parent=5 // pred_check
        %p38 = pneg %p37
      $region14: #{custom-call.4} parent=5 // pred_check_branch
        %40 = sbr.rel (%p38) target = $region16
      $region15: #{custom-call.4} parent=5 // pred_region
        %s41 = sand.u32 %s3, 1
        %s42 = sand.u32 %s3, 1
        %s43 = smul.addr %s42, 32
        %s44 = scalar_lea.vmem [#allocation0], %s43
        %s45 = sadd.s32 %s12, %s11
        %s46 = smul.addr %s10, 4
        %s47 = sadd.s32 %s45, %s46
        %s48 = smul.addr %s47, 8
        %s49 = scalar_lea.vmem %s0, %s48
        // Predicated region
        $region17: #{custom-call.4} parent=15 // pred_check
          _
        $region18: #{custom-call.4} parent=15 // pred_check_branch
          %51 = sbr.rel (0) target = $region20
        $region19: #{custom-call.4} parent=15 // pred_region
          // Predicated region
          $region21: #{custom-call.4} parent=19 // pred_check
            _
          $region22: #{custom-call.4} parent=19 // pred_check_branch
            %53 = sbr.rel (0) target = $region24
          $region23: #{custom-call.4} parent=19 // pred_region
            // Predicated region
            $region36: #{custom-call.4} parent=23 // pred_check
              _
            $region37: #{custom-call.4} parent=23 // pred_check_branch
              %75 = sbr.rel (0) target = $region39
            $region38: #{custom-call.4} parent=23 // pred_region
              loop: start=0, step=1, limit=1
              $region40: #{custom-call.4} parent=38 // loop_pre_header
                _
              $region41: #{custom-call.4} parent=38 // loop_header
                %s77 = sphi 0, %s81
                %p78 = scmp.ge.s32.totalorder %s77, 1
                %s82 = sphi %s49, %s49
                %s83 = sphi %s44, %s44
              $region42: #{custom-call.4} parent=38 // loop_header_branch
                %80 = sbr.rel (%p78) target = $region46
              $region43: #{custom-call.4} parent=38 // loop_body
                %v84 = vld [vmem:[%s82] sm:$0xff]
                %85 = vst [vmem:[%s83] sm:$0xff] %v84
                %v86 = vld [vmem:[%s82 + $0x8] sm:$0xff]
                %87 = vst [vmem:[%s83 + $0x8] sm:$0xff] %v86
                %v88 = vld [vmem:[%s82 + $0x10] sm:$0xff]
                %89 = vst [vmem:[%s83 + $0x10] sm:$0xff] %v88
                %v90 = vld [vmem:[%s82 + $0x18] sm:$0xff]
                %91 = vst [vmem:[%s83 + $0x18] sm:$0xff] %v90
              $region44: #{custom-call.4} parent=38 // loop_footer
                %s81 = sadd.s32 1, %s77
              $region45: #{custom-call.4} parent=38 // loop_footer_branch
                %76 = sbr.rel target = $region41
              $region46: #{custom-call.4} parent=38 // loop_exit
                _
            $region39: #{custom-call.4} parent=23 // pred_fallthru
              _
            // Predicated region
            $region47: #{custom-call.4} parent=23 // pred_check
              _
            $region48: #{custom-call.4} parent=23 // pred_check_branch
              %93 = sbr.rel target = $region50
            $region49: #{custom-call.4} parent=23 // pred_region
              _
            $region50: #{custom-call.4} parent=23 // pred_fallthru
              _
          $region24: #{custom-call.4} parent=19 // pred_fallthru
            _
          // Predicated region
          $region25: #{custom-call.4} parent=19 // pred_check
            _
          $region26: #{custom-call.4} parent=19 // pred_check_branch
            %55 = sbr.rel target = $region28
          $region27: #{custom-call.4} parent=19 // pred_region
            %s57 = ssub.s32 256, 1
            loop: start=0, step=1, limit=1
            $region29: #{custom-call.4} parent=27 // loop_pre_header
              _
            $region30: #{custom-call.4} parent=27 // loop_header
              %s59 = sphi 0, %s63
              %p60 = scmp.ge.s32.totalorder %s59, 1
              %s64 = sphi %s49, %s49
              %s65 = sphi %s44, %s44
            $region31: #{custom-call.4} parent=27 // loop_header_branch
              %62 = sbr.rel (%p60) target = $region35
            $region32: #{custom-call.4} parent=27 // loop_body
              %v66 = vld [vmem:[%s64] sm:%s57]
              %67 = vst [vmem:[%s65] sm:%s57] %v66
              %v68 = vld [vmem:[%s64 + $0x8] sm:%s57]
              %69 = vst [vmem:[%s65 + $0x8] sm:%s57] %v68
              %v70 = vld [vmem:[%s64 + $0x10] sm:%s57]
              %71 = vst [vmem:[%s65 + $0x10] sm:%s57] %v70
              %v72 = vld [vmem:[%s64 + $0x18] sm:%s57]
              %73 = vst [vmem:[%s65 + $0x18] sm:%s57] %v72
            $region33: #{custom-call.4} parent=27 // loop_footer
              %s63 = sadd.s32 1, %s59
            $region34: #{custom-call.4} parent=27 // loop_footer_branch
              %58 = sbr.rel target = $region30
            $region35: #{custom-call.4} parent=27 // loop_exit
              _
          $region28: #{custom-call.4} parent=19 // pred_fallthru
            _
        $region20: #{custom-call.4} parent=15 // pred_fallthru
          _
        %94 = vnop
      $region16: #{custom-call.4} parent=5 // pred_fallthru
        _
      %p95 = scmp.le.s32.totalorder 1, %s3
      %p96 = scmp.lt.s32.totalorder %s3, 9
      %p97 = pnand %p95, %p96
      %p98 = pneg %p97
      // Predicated region
      $region51: #{custom-call.4} parent=5 // pred_check
        _
      $region52: #{custom-call.4} parent=5 // pred_check_branch
        %100 = sbr.rel (%p97) target = $region54
      $region53: #{custom-call.4} parent=5 // pred_region
        %s101 = ssub.s32 %s3, 1
        %s102 = sand.u32 %s8, 1
        %s103 = sand.u32 %s8, 1
        %s104 = smul.addr %s103, 32
        %s105 = scalar_lea.vmem [#allocation0], %s104
        %s106 = sand.u32 %s8, 1
        %s107 = sand.u32 %s8, 1
        %s108 = smul.addr %s107, 32
        %s109 = scalar_lea.vmem [#allocation0], %s108
        %s110 = sand.u32 %s8, 1
        %s111 = sand.u32 %s8, 1
        %s112 = smul.addr %s111, 32
        %s113 = scalar_lea.vmem [#allocation1], %s112
        %114 = vst [vmem:[%s113] sm:$0xff] 0.0
        %s115 = scalar_lea.vmem %s113, 8 [#allocation1]
        %116 = vst [vmem:[%s115] sm:$0xff] 0.0
        %s117 = scalar_lea.vmem %s113, 16 [#allocation1]
        %118 = vst [vmem:[%s117] sm:$0xff] 0.0
        %s119 = scalar_lea.vmem %s113, 24 [#allocation1]
        %120 = vst [vmem:[%s119] sm:$0xff] 0.0
        %vm121 = vcmask 7168
        %v122 = vld [vmem:[%s113] ss:$0 sm:$0xff]
        %v123 = vld [vmem:[%s105] ss:$0 sm:$0xff]
        %v124 = vmul.f32 %v122, %v122
        %125 = vadd.xlane.f32.xlu0 %v124
        %v126 = vpop.xlane.xlu0 %125
        %v127 = vsub.f32 %v123, %v126
        %v128 = vrsqrt.pop %v127
        %v129 = vld [vmem:[%s105] sm:$0xff]
        %v130 = vld [vmem:[%s113] sm:$0xff]
        %v131 = vmul.f32 %v130, %v122
        %132 = vadd.xlane.f32.xlu0 %v131
        %v133 = vpop.xlane.xlu0 %132
        %v134 = vsub.f32 %v129, %v133
        %v135 = vmul.f32 %v134, %v128
        %v136 = vsel %vm121, %v135, 0.0
        %v137 = vadd.f32 %v130, %v136
        %138 = vst [vmem:[%s113] sm:$0xff] %v137
        %s139 = scalar_lea.vmem %s105, 8 [#allocation0]
        %v140 = vld [vmem:[%s139] sm:$0xff]
        %s141 = scalar_lea.vmem %s113, 8 [#allocation1]
        %v142 = vld [vmem:[%s141] sm:$0xff]
        %v143 = vmul.f32 %v142, %v122
        %144 = vadd.xlane.f32.xlu0 %v143
        %v145 = vpop.xlane.xlu0 %144
        %v146 = vsub.f32 %v140, %v145
        %v147 = vmul.f32 %v146, %v128
        %v148 = vsel %vm121, %v147, 0.0
        %v149 = vadd.f32 %v142, %v148
        %s150 = scalar_lea.vmem %s113, 8 [#allocation1]
        %151 = vst [vmem:[%s150] sm:$0xff] %v149
        %s152 = scalar_lea.vmem %s105, 16 [#allocation0]
        %v153 = vld [vmem:[%s152] sm:$0xff]
        %s154 = scalar_lea.vmem %s113, 16 [#allocation1]
        %v155 = vld [vmem:[%s154] sm:$0xff]
        %v156 = vmul.f32 %v155, %v122
        %157 = vadd.xlane.f32.xlu0 %v156
        %v158 = vpop.xlane.xlu0 %157
        %v159 = vsub.f32 %v153, %v158
        %v160 = vmul.f32 %v159, %v128
        %v161 = vsel %vm121, %v160, 0.0
        %v162 = vadd.f32 %v155, %v161
        %s163 = scalar_lea.vmem %s113, 16 [#allocation1]
        %164 = vst [vmem:[%s163] sm:$0xff] %v162
        %s165 = scalar_lea.vmem %s105, 24 [#allocation0]
        %v166 = vld [vmem:[%s165] sm:$0xff]
        %s167 = scalar_lea.vmem %s113, 24 [#allocation1]
        %v168 = vld [vmem:[%s167] sm:$0xff]
        %v169 = vmul.f32 %v168, %v122
        %170 = vadd.xlane.f32.xlu0 %v169
        %v171 = vpop.xlane.xlu0 %170
        %v172 = vsub.f32 %v166, %v171
        %v173 = vmul.f32 %v172, %v128
        %v174 = vsel %vm121, %v173, 0.0
        %v175 = vadd.f32 %v168, %v174
        %s176 = scalar_lea.vmem %s113, 24 [#allocation1]
        %177 = vst [vmem:[%s176] sm:$0xff] %v175
        %vm178 = vcmask 15368
        %s179 = scalar_lea.vmem %s113, 1 [#allocation1]
        %v180 = vld [vmem:[%s179] ss:$0 sm:$0xff]
        %s181 = scalar_lea.vmem %s105, 1 [#allocation0]
        %v182 = vld [vmem:[%s181] ss:$0 sm:$0xff]
        %v183 = vmul.f32 %v180, %v180
        %184 = vadd.xlane.f32.xlu0 %v183
        %v185 = vpop.xlane.xlu0 %184
        %v186 = vsub.f32 %v182, %v185
        %v187 = vrsqrt.pop %v186
        %v188 = vld [vmem:[%s105] sm:$0xff]
        %v189 = vld [vmem:[%s113] sm:$0xff]
        %v190 = vmul.f32 %v189, %v180
        %191 = vadd.xlane.f32.xlu0 %v190
        %v192 = vpop.xlane.xlu0 %191
        %v193 = vsub.f32 %v188, %v192
        %v194 = vmul.f32 %v193, %v187
        %vm195 = vcmask 1047553
        %vm196 = vmand %vm178, %vm195
        %v197 = vsel %vm196, %v194, 0.0
        %v198 = vadd.f32 %v189, %v197
        %199 = vst [vmem:[%s113] sm:$0xff] %v198
        %s200 = scalar_lea.vmem %s105, 8 [#allocation0]
        %v201 = vld [vmem:[%s200] sm:$0xff]
        %s202 = scalar_lea.vmem %s113, 8 [#allocation1]
        %v203 = vld [vmem:[%s202] sm:$0xff]
        %v204 = vmul.f32 %v203, %v180
        %205 = vadd.xlane.f32.xlu0 %v204
        %v206 = vpop.xlane.xlu0 %205
        %v207 = vsub.f32 %v201, %v206
        %v208 = vmul.f32 %v207, %v187
        %v209 = vsel %vm178, %v208, 0.0
        %v210 = vadd.f32 %v203, %v209
        %s211 = scalar_lea.vmem %s113, 8 [#allocation1]
        %212 = vst [vmem:[%s211] sm:$0xff] %v210
        %s213 = scalar_lea.vmem %s105, 16 [#allocation0]
        %v214 = vld [vmem:[%s213] sm:$0xff]
        %s215 = scalar_lea.vmem %s113, 16 [#allocation1]
        %v216 = vld [vmem:[%s215] sm:$0xff]
        %v217 = vmul.f32 %v216, %v180
        %218 = vadd.xlane.f32.xlu0 %v217
        %v219 = vpop.xlane.xlu0 %218
        %v220 = vsub.f32 %v214, %v219
        %v221 = vmul.f32 %v220, %v187
        %v222 = vsel %vm178, %v221, 0.0
        %v223 = vadd.f32 %v216, %v222
        %s224 = scalar_lea.vmem %s113, 16 [#allocation1]
        %225 = vst [vmem:[%s224] sm:$0xff] %v223
        %s226 = scalar_lea.vmem %s105, 24 [#allocation0]
        %v227 = vld [vmem:[%s226] sm:$0xff]
        %s228 = scalar_lea.vmem %s113, 24 [#allocation1]
        %v229 = vld [vmem:[%s228] sm:$0xff]
        %v230 = vmul.f32 %v229, %v180
        %231 = vadd.xlane.f32.xlu0 %v230
        %v232 = vpop.xlane.xlu0 %231
        %v233 = vsub.f32 %v227, %v232
        %v234 = vmul.f32 %v233, %v187
        %v235 = vsel %vm178, %v234, 0.0
        %v236 = vadd.f32 %v229, %v235
        %s237 = scalar_lea.vmem %s113, 24 [#allocation1]
        %238 = vst [vmem:[%s237] sm:$0xff] %v236
        %vm239 = vcmask 23568
        %s240 = scalar_lea.vmem %s113, 2 [#allocation1]
        %v241 = vld [vmem:[%s240] ss:$0 sm:$0xff]
        %s242 = scalar_lea.vmem %s105, 2 [#allocation0]
        %v243 = vld [vmem:[%s242] ss:$0 sm:$0xff]
        %v244 = vmul.f32 %v241, %v241
        %245 = vadd.xlane.f32.xlu0 %v244
        %v246 = vpop.xlane.xlu0 %245
        %v247 = vsub.f32 %v243, %v246
        %v248 = vrsqrt.pop %v247
        %v249 = vld [vmem:[%s105] sm:$0xff]
        %v250 = vld [vmem:[%s113] sm:$0xff]
        %v251 = vmul.f32 %v250, %v241
        %252 = vadd.xlane.f32.xlu0 %v251
        %v253 = vpop.xlane.xlu0 %252
        %v254 = vsub.f32 %v249, %v253
        %v255 = vmul.f32 %v254, %v248
        %vm256 = vcmask 1047554
        %vm257 = vmand %vm239, %vm256
        %v258 = vsel %vm257, %v255, 0.0
        %v259 = vadd.f32 %v250, %v258
        %260 = vst [vmem:[%s113] sm:$0xff] %v259
        %s261 = scalar_lea.vmem %s105, 8 [#allocation0]
        %v262 = vld [vmem:[%s261] sm:$0xff]
        %s263 = scalar_lea.vmem %s113, 8 [#allocation1]
        %v264 = vld [vmem:[%s263] sm:$0xff]
        %v265 = vmul.f32 %v264, %v241
        %266 = vadd.xlane.f32.xlu0 %v265
        %v267 = vpop.xlane.xlu0 %266
        %v268 = vsub.f32 %v262, %v267
        %v269 = vmul.f32 %v268, %v248
        %v270 = vsel %vm239, %v269, 0.0
        %v271 = vadd.f32 %v264, %v270
        %s272 = scalar_lea.vmem %s113, 8 [#allocation1]
        %273 = vst [vmem:[%s272] sm:$0xff] %v271
        %s274 = scalar_lea.vmem %s105, 16 [#allocation0]
        %v275 = vld [vmem:[%s274] sm:$0xff]
        %s276 = scalar_lea.vmem %s113, 16 [#allocation1]
        %v277 = vld [vmem:[%s276] sm:$0xff]
        %v278 = vmul.f32 %v277, %v241
        %279 = vadd.xlane.f32.xlu0 %v278
        %v280 = vpop.xlane.xlu0 %279
        %v281 = vsub.f32 %v275, %v280
        %v282 = vmul.f32 %v281, %v248
        %v283 = vsel %vm239, %v282, 0.0
        %v284 = vadd.f32 %v277, %v283
        %s285 = scalar_lea.vmem %s113, 16 [#allocation1]
        %286 = vst [vmem:[%s285] sm:$0xff] %v284
        %s287 = scalar_lea.vmem %s105, 24 [#allocation0]
        %v288 = vld [vmem:[%s287] sm:$0xff]
        %s289 = scalar_lea.vmem %s113, 24 [#allocation1]
        %v290 = vld [vmem:[%s289] sm:$0xff]
        %v291 = vmul.f32 %v290, %v241
        %292 = vadd.xlane.f32.xlu0 %v291
        %v293 = vpop.xlane.xlu0 %292
        %v294 = vsub.f32 %v288, %v293
        %v295 = vmul.f32 %v294, %v248
        %v296 = vsel %vm239, %v295, 0.0
        %v297 = vadd.f32 %v290, %v296
        %s298 = scalar_lea.vmem %s113, 24 [#allocation1]
        %299 = vst [vmem:[%s298] sm:$0xff] %v297
        %vm300 = vcmask 31768
        %s301 = scalar_lea.vmem %s113, 3 [#allocation1]
        %v302 = vld [vmem:[%s301] ss:$0 sm:$0xff]
        %s303 = scalar_lea.vmem %s105, 3 [#allocation0]
        %v304 = vld [vmem:[%s303] ss:$0 sm:$0xff]
        %v305 = vmul.f32 %v302, %v302
        %306 = vadd.xlane.f32.xlu0 %v305
        %v307 = vpop.xlane.xlu0 %306
        %v308 = vsub.f32 %v304, %v307
        %v309 = vrsqrt.pop %v308
        %v310 = vld [vmem:[%s105] sm:$0xff]
        %v311 = vld [vmem:[%s113] sm:$0xff]
        %v312 = vmul.f32 %v311, %v302
        %313 = vadd.xlane.f32.xlu0 %v312
        %v314 = vpop.xlane.xlu0 %313
        %v315 = vsub.f32 %v310, %v314
        %v316 = vmul.f32 %v315, %v309
        %vm317 = vcmask 1047555
        %vm318 = vmand %vm300, %vm317
        %v319 = vsel %vm318, %v316, 0.0
        %v320 = vadd.f32 %v311, %v319
        %321 = vst [vmem:[%s113] sm:$0xff] %v320
        %s322 = scalar_lea.vmem %s105, 8 [#allocation0]
        %v323 = vld [vmem:[%s322] sm:$0xff]
        %s324 = scalar_lea.vmem %s113, 8 [#allocation1]
        %v325 = vld [vmem:[%s324] sm:$0xff]
        %v326 = vmul.f32 %v325, %v302
        %327 = vadd.xlane.f32.xlu0 %v326
        %v328 = vpop.xlane.xlu0 %327
        %v329 = vsub.f32 %v323, %v328
        %v330 = vmul.f32 %v329, %v309
        %v331 = vsel %vm300, %v330, 0.0
        %v332 = vadd.f32 %v325, %v331
        %s333 = scalar_lea.vmem %s113, 8 [#allocation1]
        %334 = vst [vmem:[%s333] sm:$0xff] %v332
        %s335 = scalar_lea.vmem %s105, 16 [#allocation0]
        %v336 = vld [vmem:[%s335] sm:$0xff]
        %s337 = scalar_lea.vmem %s113, 16 [#allocation1]
        %v338 = vld [vmem:[%s337] sm:$0xff]
        %v339 = vmul.f32 %v338, %v302
        %340 = vadd.xlane.f32.xlu0 %v339
        %v341 = vpop.xlane.xlu0 %340
        %v342 = vsub.f32 %v336, %v341
        %v343 = vmul.f32 %v342, %v309
        %v344 = vsel %vm300, %v343, 0.0
        %v345 = vadd.f32 %v338, %v344
        %s346 = scalar_lea.vmem %s113, 16 [#allocation1]
        %347 = vst [vmem:[%s346] sm:$0xff] %v345
        %s348 = scalar_lea.vmem %s105, 24 [#allocation0]
        %v349 = vld [vmem:[%s348] sm:$0xff]
        %s350 = scalar_lea.vmem %s113, 24 [#allocation1]
        %v351 = vld [vmem:[%s350] sm:$0xff]
        %v352 = vmul.f32 %v351, %v302
        %353 = vadd.xlane.f32.xlu0 %v352
        %v354 = vpop.xlane.xlu0 %353
        %v355 = vsub.f32 %v349, %v354
        %v356 = vmul.f32 %v355, %v309
        %v357 = vsel %vm300, %v356, 0.0
        %v358 = vadd.f32 %v351, %v357
        %s359 = scalar_lea.vmem %s113, 24 [#allocation1]
        %360 = vst [vmem:[%s359] sm:$0xff] %v358
        %vm361 = vcmask 39968
        %s362 = scalar_lea.vmem %s113, 4 [#allocation1]
        %v363 = vld [vmem:[%s362] ss:$0 sm:$0xff]
        %s364 = scalar_lea.vmem %s105, 4 [#allocation0]
        %v365 = vld [vmem:[%s364] ss:$0 sm:$0xff]
        %v366 = vmul.f32 %v363, %v363
        %367 = vadd.xlane.f32.xlu0 %v366
        %v368 = vpop.xlane.xlu0 %367
        %v369 = vsub.f32 %v365, %v368
        %v370 = vrsqrt.pop %v369
        %v371 = vld [vmem:[%s105] sm:$0xff]
        %v372 = vld [vmem:[%s113] sm:$0xff]
        %v373 = vmul.f32 %v372, %v363
        %374 = vadd.xlane.f32.xlu0 %v373
        %v375 = vpop.xlane.xlu0 %374
        %v376 = vsub.f32 %v371, %v375
        %v377 = vmul.f32 %v376, %v370
        %vm378 = vcmask 1047556
        %vm379 = vmand %vm361, %vm378
        %v380 = vsel %vm379, %v377, 0.0
        %v381 = vadd.f32 %v372, %v380
        %382 = vst [vmem:[%s113] sm:$0xff] %v381
        %s383 = scalar_lea.vmem %s105, 8 [#allocation0]
        %v384 = vld [vmem:[%s383] sm:$0xff]
        %s385 = scalar_lea.vmem %s113, 8 [#allocation1]
        %v386 = vld [vmem:[%s385] sm:$0xff]
        %v387 = vmul.f32 %v386, %v363
        %388 = vadd.xlane.f32.xlu0 %v387
        %v389 = vpop.xlane.xlu0 %388
        %v390 = vsub.f32 %v384, %v389
        %v391 = vmul.f32 %v390, %v370
        %v392 = vsel %vm361, %v391, 0.0
        %v393 = vadd.f32 %v386, %v392
        %s394 = scalar_lea.vmem %s113, 8 [#allocation1]
        %395 = vst [vmem:[%s394] sm:$0xff] %v393
        %s396 = scalar_lea.vmem %s105, 16 [#allocation0]
        %v397 = vld [vmem:[%s396] sm:$0xff]
        %s398 = scalar_lea.vmem %s113, 16 [#allocation1]
        %v399 = vld [vmem:[%s398] sm:$0xff]
        %v400 = vmul.f32 %v399, %v363
        %401 = vadd.xlane.f32.xlu0 %v400
        %v402 = vpop.xlane.xlu0 %401
        %v403 = vsub.f32 %v397, %v402
        %v404 = vmul.f32 %v403, %v370
        %v405 = vsel %vm361, %v404, 0.0
        %v406 = vadd.f32 %v399, %v405
        %s407 = scalar_lea.vmem %s113, 16 [#allocation1]
        %408 = vst [vmem:[%s407] sm:$0xff] %v406
        %s409 = scalar_lea.vmem %s105, 24 [#allocation0]
        %v410 = vld [vmem:[%s409] sm:$0xff]
        %s411 = scalar_lea.vmem %s113, 24 [#allocation1]
        %v412 = vld [vmem:[%s411] sm:$0xff]
        %v413 = vmul.f32 %v412, %v363
        %414 = vadd.xlane.f32.xlu0 %v413
        %v415 = vpop.xlane.xlu0 %414
        %v416 = vsub.f32 %v410, %v415
        %v417 = vmul.f32 %v416, %v370
        %v418 = vsel %vm361, %v417, 0.0
        %v419 = vadd.f32 %v412, %v418
        %s420 = scalar_lea.vmem %s113, 24 [#allocation1]
        %421 = vst [vmem:[%s420] sm:$0xff] %v419
        %vm422 = vcmask 48168
        %s423 = scalar_lea.vmem %s113, 5 [#allocation1]
        %v424 = vld [vmem:[%s423] ss:$0 sm:$0xff]
        %s425 = scalar_lea.vmem %s105, 5 [#allocation0]
        %v426 = vld [vmem:[%s425] ss:$0 sm:$0xff]
        %v427 = vmul.f32 %v424, %v424
        %428 = vadd.xlane.f32.xlu0 %v427
        %v429 = vpop.xlane.xlu0 %428
        %v430 = vsub.f32 %v426, %v429
        %v431 = vrsqrt.pop %v430
        %v432 = vld [vmem:[%s105] sm:$0xff]
        %v433 = vld [vmem:[%s113] sm:$0xff]
        %v434 = vmul.f32 %v433, %v424
        %435 = vadd.xlane.f32.xlu0 %v434
        %v436 = vpop.xlane.xlu0 %435
        %v437 = vsub.f32 %v432, %v436
        %v438 = vmul.f32 %v437, %v431
        %vm439 = vcmask 1047557
        %vm440 = vmand %vm422, %vm439
        %v441 = vsel %vm440, %v438, 0.0
        %v442 = vadd.f32 %v433, %v441
        %443 = vst [vmem:[%s113] sm:$0xff] %v442
        %s444 = scalar_lea.vmem %s105, 8 [#allocation0]
        %v445 = vld [vmem:[%s444] sm:$0xff]
        %s446 = scalar_lea.vmem %s113, 8 [#allocation1]
        %v447 = vld [vmem:[%s446] sm:$0xff]
        %v448 = vmul.f32 %v447, %v424
        %449 = vadd.xlane.f32.xlu0 %v448
        %v450 = vpop.xlane.xlu0 %449
        %v451 = vsub.f32 %v445, %v450
        %v452 = vmul.f32 %v451, %v431
        %v453 = vsel %vm422, %v452, 0.0
        %v454 = vadd.f32 %v447, %v453
        %s455 = scalar_lea.vmem %s113, 8 [#allocation1]
        %456 = vst [vmem:[%s455] sm:$0xff] %v454
        %s457 = scalar_lea.vmem %s105, 16 [#allocation0]
        %v458 = vld [vmem:[%s457] sm:$0xff]
        %s459 = scalar_lea.vmem %s113, 16 [#allocation1]
        %v460 = vld [vmem:[%s459] sm:$0xff]
        %v461 = vmul.f32 %v460, %v424
        %462 = vadd.xlane.f32.xlu0 %v461
        %v463 = vpop.xlane.xlu0 %462
        %v464 = vsub.f32 %v458, %v463
        %v465 = vmul.f32 %v464, %v431
        %v466 = vsel %vm422, %v465, 0.0
        %v467 = vadd.f32 %v460, %v466
        %s468 = scalar_lea.vmem %s113, 16 [#allocation1]
        %469 = vst [vmem:[%s468] sm:$0xff] %v467
        %s470 = scalar_lea.vmem %s105, 24 [#allocation0]
        %v471 = vld [vmem:[%s470] sm:$0xff]
        %s472 = scalar_lea.vmem %s113, 24 [#allocation1]
        %v473 = vld [vmem:[%s472] sm:$0xff]
        %v474 = vmul.f32 %v473, %v424
        %475 = vadd.xlane.f32.xlu0 %v474
        %v476 = vpop.xlane.xlu0 %475
        %v477 = vsub.f32 %v471, %v476
        %v478 = vmul.f32 %v477, %v431
        %v479 = vsel %vm422, %v478, 0.0
        %v480 = vadd.f32 %v473, %v479
        %s481 = scalar_lea.vmem %s113, 24 [#allocation1]
        %482 = vst [vmem:[%s481] sm:$0xff] %v480
        %vm483 = vcmask 56368
        %s484 = scalar_lea.vmem %s113, 6 [#allocation1]
        %v485 = vld [vmem:[%s484] ss:$0 sm:$0xff]
        %s486 = scalar_lea.vmem %s105, 6 [#allocation0]
        %v487 = vld [vmem:[%s486] ss:$0 sm:$0xff]
        %v488 = vmul.f32 %v485, %v485
        %489 = vadd.xlane.f32.xlu0 %v488
        %v490 = vpop.xlane.xlu0 %489
        %v491 = vsub.f32 %v487, %v490
        %v492 = vrsqrt.pop %v491
        %v493 = vld [vmem:[%s105] sm:$0xff]
        %v494 = vld [vmem:[%s113] sm:$0xff]
        %v495 = vmul.f32 %v494, %v485
        %496 = vadd.xlane.f32.xlu0 %v495
        %v497 = vpop.xlane.xlu0 %496
        %v498 = vsub.f32 %v493, %v497
        %v499 = vmul.f32 %v498, %v492
        %vm500 = vcmask 1047558
        %vm501 = vmand %vm483, %vm500
        %v502 = vsel %vm501, %v499, 0.0
        %v503 = vadd.f32 %v494, %v502
        %504 = vst [vmem:[%s113] sm:$0xff] %v503
        %s505 = scalar_lea.vmem %s105, 8 [#allocation0]
        %v506 = vld [vmem:[%s505] sm:$0xff]
        %s507 = scalar_lea.vmem %s113, 8 [#allocation1]
        %v508 = vld [vmem:[%s507] sm:$0xff]
        %v509 = vmul.f32 %v508, %v485
        %510 = vadd.xlane.f32.xlu0 %v509
        %v511 = vpop.xlane.xlu0 %510
        %v512 = vsub.f32 %v506, %v511
        %v513 = vmul.f32 %v512, %v492
        %v514 = vsel %vm483, %v513, 0.0
        %v515 = vadd.f32 %v508, %v514
        %s516 = scalar_lea.vmem %s113, 8 [#allocation1]
        %517 = vst [vmem:[%s516] sm:$0xff] %v515
        %s518 = scalar_lea.vmem %s105, 16 [#allocation0]
        %v519 = vld [vmem:[%s518] sm:$0xff]
        %s520 = scalar_lea.vmem %s113, 16 [#allocation1]
        %v521 = vld [vmem:[%s520] sm:$0xff]
        %v522 = vmul.f32 %v521, %v485
        %523 = vadd.xlane.f32.xlu0 %v522
        %v524 = vpop.xlane.xlu0 %523
        %v525 = vsub.f32 %v519, %v524
        %v526 = vmul.f32 %v525, %v492
        %v527 = vsel %vm483, %v526, 0.0
        %v528 = vadd.f32 %v521, %v527
        %s529 = scalar_lea.vmem %s113, 16 [#allocation1]
        %530 = vst [vmem:[%s529] sm:$0xff] %v528
        %s531 = scalar_lea.vmem %s105, 24 [#allocation0]
        %v532 = vld [vmem:[%s531] sm:$0xff]
        %s533 = scalar_lea.vmem %s113, 24 [#allocation1]
        %v534 = vld [vmem:[%s533] sm:$0xff]
        %v535 = vmul.f32 %v534, %v485
        %536 = vadd.xlane.f32.xlu0 %v535
        %v537 = vpop.xlane.xlu0 %536
        %v538 = vsub.f32 %v532, %v537
        %v539 = vmul.f32 %v538, %v492
        %v540 = vsel %vm483, %v539, 0.0
        %v541 = vadd.f32 %v534, %v540
        %s542 = scalar_lea.vmem %s113, 24 [#allocation1]
        %543 = vst [vmem:[%s542] sm:$0xff] %v541
        %vm544 = vcmask 64568
        %s545 = scalar_lea.vmem %s113, 7 [#allocation1]
        %v546 = vld [vmem:[%s545] ss:$0 sm:$0xff]
        %s547 = scalar_lea.vmem %s105, 7 [#allocation0]
        %v548 = vld [vmem:[%s547] ss:$0 sm:$0xff]
        %v549 = vmul.f32 %v546, %v546
        %550 = vadd.xlane.f32.xlu0 %v549
        %v551 = vpop.xlane.xlu0 %550
        %v552 = vsub.f32 %v548, %v551
        %v553 = vrsqrt.pop %v552
        %v554 = vld [vmem:[%s105] sm:$0xff]
        %v555 = vld [vmem:[%s113] sm:$0xff]
        %v556 = vmul.f32 %v555, %v546
        %557 = vadd.xlane.f32.xlu0 %v556
        %v558 = vpop.xlane.xlu0 %557
        %v559 = vsub.f32 %v554, %v558
        %v560 = vmul.f32 %v559, %v553
        %vm561 = vcmask 1047559
        %vm562 = vmand %vm544, %vm561
        %v563 = vsel %vm562, %v560, 0.0
        %v564 = vadd.f32 %v555, %v563
        %565 = vst [vmem:[%s113] sm:$0xff] %v564
        %s566 = scalar_lea.vmem %s105, 8 [#allocation0]
        %v567 = vld [vmem:[%s566] sm:$0xff]
        %s568 = scalar_lea.vmem %s113, 8 [#allocation1]
        %v569 = vld [vmem:[%s568] sm:$0xff]
        %v570 = vmul.f32 %v569, %v546
        %571 = vadd.xlane.f32.xlu0 %v570
        %v572 = vpop.xlane.xlu0 %571
        %v573 = vsub.f32 %v567, %v572
        %v574 = vmul.f32 %v573, %v553
        %v575 = vsel %vm544, %v574, 0.0
        %v576 = vadd.f32 %v569, %v575
        %s577 = scalar_lea.vmem %s113, 8 [#allocation1]
        %578 = vst [vmem:[%s577] sm:$0xff] %v576
        %s579 = scalar_lea.vmem %s105, 16 [#allocation0]
        %v580 = vld [vmem:[%s579] sm:$0xff]
        %s581 = scalar_lea.vmem %s113, 16 [#allocation1]
        %v582 = vld [vmem:[%s581] sm:$0xff]
        %v583 = vmul.f32 %v582, %v546
        %584 = vadd.xlane.f32.xlu0 %v583
        %v585 = vpop.xlane.xlu0 %584
        %v586 = vsub.f32 %v580, %v585
        %v587 = vmul.f32 %v586, %v553
        %v588 = vsel %vm544, %v587, 0.0
        %v589 = vadd.f32 %v582, %v588
        %s590 = scalar_lea.vmem %s113, 16 [#allocation1]
        %591 = vst [vmem:[%s590] sm:$0xff] %v589
        %s592 = scalar_lea.vmem %s105, 24 [#allocation0]
        %v593 = vld [vmem:[%s592] sm:$0xff]
        %s594 = scalar_lea.vmem %s113, 24 [#allocation1]
        %v595 = vld [vmem:[%s594] sm:$0xff]
        %v596 = vmul.f32 %v595, %v546
        %597 = vadd.xlane.f32.xlu0 %v596
        %v598 = vpop.xlane.xlu0 %597
        %v599 = vsub.f32 %v593, %v598
        %v600 = vmul.f32 %v599, %v553
        %v601 = vsel %vm544, %v600, 0.0
        %v602 = vadd.f32 %v595, %v601
        %s603 = scalar_lea.vmem %s113, 24 [#allocation1]
        %604 = vst [vmem:[%s603] sm:$0xff] %v602
        %vm605 = vcmask 72768
        %s606 = scalar_lea.vmem %s113, 8 [#allocation1]
        %v607 = vld [vmem:[%s606] ss:$0 sm:$0xff]
        %s608 = scalar_lea.vmem %s105, 8 [#allocation0]
        %v609 = vld [vmem:[%s608] ss:$0 sm:$0xff]
        %v610 = vmul.f32 %v607, %v607
        %611 = vadd.xlane.f32.xlu0 %v610
        %v612 = vpop.xlane.xlu0 %611
        %v613 = vsub.f32 %v609, %v612
        %v614 = vrsqrt.pop %v613
        %s615 = scalar_lea.vmem %s105, 8 [#allocation0]
        %v616 = vld [vmem:[%s615] sm:$0xff]
        %s617 = scalar_lea.vmem %s113, 8 [#allocation1]
        %v618 = vld [vmem:[%s617] sm:$0xff]
        %v619 = vmul.f32 %v618, %v607
        %620 = vadd.xlane.f32.xlu0 %v619
        %v621 = vpop.xlane.xlu0 %620
        %v622 = vsub.f32 %v616, %v621
        %v623 = vmul.f32 %v622, %v614
        %v624 = vsel %vm605, %v623, 0.0
        %v625 = vadd.f32 %v618, %v624
        %s626 = scalar_lea.vmem %s113, 8 [#allocation1]
        %627 = vst [vmem:[%s626] sm:$0xff] %v625
        %s628 = scalar_lea.vmem %s105, 16 [#allocation0]
        %v629 = vld [vmem:[%s628] sm:$0xff]
        %s630 = scalar_lea.vmem %s113, 16 [#allocation1]
        %v631 = vld [vmem:[%s630] sm:$0xff]
        %v632 = vmul.f32 %v631, %v607
        %633 = vadd.xlane.f32.xlu0 %v632
        %v634 = vpop.xlane.xlu0 %633
        %v635 = vsub.f32 %v629, %v634
        %v636 = vmul.f32 %v635, %v614
        %v637 = vsel %vm605, %v636, 0.0
        %v638 = vadd.f32 %v631, %v637
        %s639 = scalar_lea.vmem %s113, 16 [#allocation1]
        %640 = vst [vmem:[%s639] sm:$0xff] %v638
        %s641 = scalar_lea.vmem %s105, 24 [#allocation0]
        %v642 = vld [vmem:[%s641] sm:$0xff]
        %s643 = scalar_lea.vmem %s113, 24 [#allocation1]
        %v644 = vld [vmem:[%s643] sm:$0xff]
        %v645 = vmul.f32 %v644, %v607
        %646 = vadd.xlane.f32.xlu0 %v645
        %v647 = vpop.xlane.xlu0 %646
        %v648 = vsub.f32 %v642, %v647
        %v649 = vmul.f32 %v648, %v614
        %v650 = vsel %vm605, %v649, 0.0
        %v651 = vadd.f32 %v644, %v650
        %s652 = scalar_lea.vmem %s113, 24 [#allocation1]
        %653 = vst [vmem:[%s652] sm:$0xff] %v651
        %vm654 = vcmask 80968
        %s655 = scalar_lea.vmem %s113, 9 [#allocation1]
        %v656 = vld [vmem:[%s655] ss:$0 sm:$0xff]
        %s657 = scalar_lea.vmem %s105, 9 [#allocation0]
        %v658 = vld [vmem:[%s657] ss:$0 sm:$0xff]
        %v659 = vmul.f32 %v656, %v656
        %660 = vadd.xlane.f32.xlu0 %v659
        %v661 = vpop.xlane.xlu0 %660
        %v662 = vsub.f32 %v658, %v661
        %v663 = vrsqrt.pop %v662
        %s664 = scalar_lea.vmem %s105, 8 [#allocation0]
        %v665 = vld [vmem:[%s664] sm:$0xff]
        %s666 = scalar_lea.vmem %s113, 8 [#allocation1]
        %v667 = vld [vmem:[%s666] sm:$0xff]
        %v668 = vmul.f32 %v667, %v656
        %669 = vadd.xlane.f32.xlu0 %v668
        %v670 = vpop.xlane.xlu0 %669
        %v671 = vsub.f32 %v665, %v670
        %v672 = vmul.f32 %v671, %v663
        %vm673 = vcmask 1047553
        %vm674 = vmand %vm654, %vm673
        %v675 = vsel %vm674, %v672, 0.0
        %v676 = vadd.f32 %v667, %v675
        %s677 = scalar_lea.vmem %s113, 8 [#allocation1]
        %678 = vst [vmem:[%s677] sm:$0xff] %v676
        %s679 = scalar_lea.vmem %s105, 16 [#allocation0]
        %v680 = vld [vmem:[%s679] sm:$0xff]
        %s681 = scalar_lea.vmem %s113, 16 [#allocation1]
        %v682 = vld [vmem:[%s681] sm:$0xff]
        %v683 = vmul.f32 %v682, %v656
        %684 = vadd.xlane.f32.xlu0 %v683
        %v685 = vpop.xlane.xlu0 %684
        %v686 = vsub.f32 %v680, %v685
        %v687 = vmul.f32 %v686, %v663
        %v688 = vsel %vm654, %v687, 0.0
        %v689 = vadd.f32 %v682, %v688
        %s690 = scalar_lea.vmem %s113, 16 [#allocation1]
        %691 = vst [vmem:[%s690] sm:$0xff] %v689
        %s692 = scalar_lea.vmem %s105, 24 [#allocation0]
        %v693 = vld [vmem:[%s692] sm:$0xff]
        %s694 = scalar_lea.vmem %s113, 24 [#allocation1]
        %v695 = vld [vmem:[%s694] sm:$0xff]
        %v696 = vmul.f32 %v695, %v656
        %697 = vadd.xlane.f32.xlu0 %v696
        %v698 = vpop.xlane.xlu0 %697
        %v699 = vsub.f32 %v693, %v698
        %v700 = vmul.f32 %v699, %v663
        %v701 = vsel %vm654, %v700, 0.0
        %v702 = vadd.f32 %v695, %v701
        %s703 = scalar_lea.vmem %s113, 24 [#allocation1]
        %704 = vst [vmem:[%s703] sm:$0xff] %v702
        %vm705 = vcmask 89168
        %s706 = scalar_lea.vmem %s113, 10 [#allocation1]
        %v707 = vld [vmem:[%s706] ss:$0 sm:$0xff]
        %s708 = scalar_lea.vmem %s105, 10 [#allocation0]
        %v709 = vld [vmem:[%s708] ss:$0 sm:$0xff]
        %v710 = vmul.f32 %v707, %v707
        %711 = vadd.xlane.f32.xlu0 %v710
        %v712 = vpop.xlane.xlu0 %711
        %v713 = vsub.f32 %v709, %v712
        %v714 = vrsqrt.pop %v713
        %s715 = scalar_lea.vmem %s105, 8 [#allocation0]
        %v716 = vld [vmem:[%s715] sm:$0xff]
        %s717 = scalar_lea.vmem %s113, 8 [#allocation1]
        %v718 = vld [vmem:[%s717] sm:$0xff]
        %v719 = vmul.f32 %v718, %v707
        %720 = vadd.xlane.f32.xlu0 %v719
        %v721 = vpop.xlane.xlu0 %720
        %v722 = vsub.f32 %v716, %v721
        %v723 = vmul.f32 %v722, %v714
        %vm724 = vcmask 1047554
        %vm725 = vmand %vm705, %vm724
        %v726 = vsel %vm725, %v723, 0.0
        %v727 = vadd.f32 %v718, %v726
        %s728 = scalar_lea.vmem %s113, 8 [#allocation1]
        %729 = vst [vmem:[%s728] sm:$0xff] %v727
        %s730 = scalar_lea.vmem %s105, 16 [#allocation0]
        %v731 = vld [vmem:[%s730] sm:$0xff]
        %s732 = scalar_lea.vmem %s113, 16 [#allocation1]
        %v733 = vld [vmem:[%s732] sm:$0xff]
        %v734 = vmul.f32 %v733, %v707
        %735 = vadd.xlane.f32.xlu0 %v734
        %v736 = vpop.xlane.xlu0 %735
        %v737 = vsub.f32 %v731, %v736
        %v738 = vmul.f32 %v737, %v714
        %v739 = vsel %vm705, %v738, 0.0
        %v740 = vadd.f32 %v733, %v739
        %s741 = scalar_lea.vmem %s113, 16 [#allocation1]
        %742 = vst [vmem:[%s741] sm:$0xff] %v740
        %s743 = scalar_lea.vmem %s105, 24 [#allocation0]
        %v744 = vld [vmem:[%s743] sm:$0xff]
        %s745 = scalar_lea.vmem %s113, 24 [#allocation1]
        %v746 = vld [vmem:[%s745] sm:$0xff]
        %v747 = vmul.f32 %v746, %v707
        %748 = vadd.xlane.f32.xlu0 %v747
        %v749 = vpop.xlane.xlu0 %748
        %v750 = vsub.f32 %v744, %v749
        %v751 = vmul.f32 %v750, %v714
        %v752 = vsel %vm705, %v751, 0.0
        %v753 = vadd.f32 %v746, %v752
        %s754 = scalar_lea.vmem %s113, 24 [#allocation1]
        %755 = vst [vmem:[%s754] sm:$0xff] %v753
        %vm756 = vcmask 97368
        %s757 = scalar_lea.vmem %s113, 11 [#allocation1]
        %v758 = vld [vmem:[%s757] ss:$0 sm:$0xff]
        %s759 = scalar_lea.vmem %s105, 11 [#allocation0]
        %v760 = vld [vmem:[%s759] ss:$0 sm:$0xff]
        %v761 = vmul.f32 %v758, %v758
        %762 = vadd.xlane.f32.xlu0 %v761
        %v763 = vpop.xlane.xlu0 %762
        %v764 = vsub.f32 %v760, %v763
        %v765 = vrsqrt.pop %v764
        %s766 = scalar_lea.vmem %s105, 8 [#allocation0]
        %v767 = vld [vmem:[%s766] sm:$0xff]
        %s768 = scalar_lea.vmem %s113, 8 [#allocation1]
        %v769 = vld [vmem:[%s768] sm:$0xff]
        %v770 = vmul.f32 %v769, %v758
        %771 = vadd.xlane.f32.xlu0 %v770
        %v772 = vpop.xlane.xlu0 %771
        %v773 = vsub.f32 %v767, %v772
        %v774 = vmul.f32 %v773, %v765
        %vm775 = vcmask 1047555
        %vm776 = vmand %vm756, %vm775
        %v777 = vsel %vm776, %v774, 0.0
        %v778 = vadd.f32 %v769, %v777
        %s779 = scalar_lea.vmem %s113, 8 [#allocation1]
        %780 = vst [vmem:[%s779] sm:$0xff] %v778
        %s781 = scalar_lea.vmem %s105, 16 [#allocation0]
        %v782 = vld [vmem:[%s781] sm:$0xff]
        %s783 = scalar_lea.vmem %s113, 16 [#allocation1]
        %v784 = vld [vmem:[%s783] sm:$0xff]
        %v785 = vmul.f32 %v784, %v758
        %786 = vadd.xlane.f32.xlu0 %v785
        %v787 = vpop.xlane.xlu0 %786
        %v788 = vsub.f32 %v782, %v787
        %v789 = vmul.f32 %v788, %v765
        %v790 = vsel %vm756, %v789, 0.0
        %v791 = vadd.f32 %v784, %v790
        %s792 = scalar_lea.vmem %s113, 16 [#allocation1]
        %793 = vst [vmem:[%s792] sm:$0xff] %v791
        %s794 = scalar_lea.vmem %s105, 24 [#allocation0]
        %v795 = vld [vmem:[%s794] sm:$0xff]
        %s796 = scalar_lea.vmem %s113, 24 [#allocation1]
        %v797 = vld [vmem:[%s796] sm:$0xff]
        %v798 = vmul.f32 %v797, %v758
        %799 = vadd.xlane.f32.xlu0 %v798
        %v800 = vpop.xlane.xlu0 %799
        %v801 = vsub.f32 %v795, %v800
        %v802 = vmul.f32 %v801, %v765
        %v803 = vsel %vm756, %v802, 0.0
        %v804 = vadd.f32 %v797, %v803
        %s805 = scalar_lea.vmem %s113, 24 [#allocation1]
        %806 = vst [vmem:[%s805] sm:$0xff] %v804
        %vm807 = vcmask 105568
        %s808 = scalar_lea.vmem %s113, 12 [#allocation1]
        %v809 = vld [vmem:[%s808] ss:$0 sm:$0xff]
        %s810 = scalar_lea.vmem %s105, 12 [#allocation0]
        %v811 = vld [vmem:[%s810] ss:$0 sm:$0xff]
        %v812 = vmul.f32 %v809, %v809
        %813 = vadd.xlane.f32.xlu0 %v812
        %v814 = vpop.xlane.xlu0 %813
        %v815 = vsub.f32 %v811, %v814
        %v816 = vrsqrt.pop %v815
        %s817 = scalar_lea.vmem %s105, 8 [#allocation0]
        %v818 = vld [vmem:[%s817] sm:$0xff]
        %s819 = scalar_lea.vmem %s113, 8 [#allocation1]
        %v820 = vld [vmem:[%s819] sm:$0xff]
        %v821 = vmul.f32 %v820, %v809
        %822 = vadd.xlane.f32.xlu0 %v821
        %v823 = vpop.xlane.xlu0 %822
        %v824 = vsub.f32 %v818, %v823
        %v825 = vmul.f32 %v824, %v816
        %vm826 = vcmask 1047556
        %vm827 = vmand %vm807, %vm826
        %v828 = vsel %vm827, %v825, 0.0
        %v829 = vadd.f32 %v820, %v828
        %s830 = scalar_lea.vmem %s113, 8 [#allocation1]
        %831 = vst [vmem:[%s830] sm:$0xff] %v829
        %s832 = scalar_lea.vmem %s105, 16 [#allocation0]
        %v833 = vld [vmem:[%s832] sm:$0xff]
        %s834 = scalar_lea.vmem %s113, 16 [#allocation1]
        %v835 = vld [vmem:[%s834] sm:$0xff]
        %v836 = vmul.f32 %v835, %v809
        %837 = vadd.xlane.f32.xlu0 %v836
        %v838 = vpop.xlane.xlu0 %837
        %v839 = vsub.f32 %v833, %v838
        %v840 = vmul.f32 %v839, %v816
        %v841 = vsel %vm807, %v840, 0.0
        %v842 = vadd.f32 %v835, %v841
        %s843 = scalar_lea.vmem %s113, 16 [#allocation1]
        %844 = vst [vmem:[%s843] sm:$0xff] %v842
        %s845 = scalar_lea.vmem %s105, 24 [#allocation0]
        %v846 = vld [vmem:[%s845] sm:$0xff]
        %s847 = scalar_lea.vmem %s113, 24 [#allocation1]
        %v848 = vld [vmem:[%s847] sm:$0xff]
        %v849 = vmul.f32 %v848, %v809
        %850 = vadd.xlane.f32.xlu0 %v849
        %v851 = vpop.xlane.xlu0 %850
        %v852 = vsub.f32 %v846, %v851
        %v853 = vmul.f32 %v852, %v816
        %v854 = vsel %vm807, %v853, 0.0
        %v855 = vadd.f32 %v848, %v854
        %s856 = scalar_lea.vmem %s113, 24 [#allocation1]
        %857 = vst [vmem:[%s856] sm:$0xff] %v855
        %vm858 = vcmask 113768
        %s859 = scalar_lea.vmem %s113, 13 [#allocation1]
        %v860 = vld [vmem:[%s859] ss:$0 sm:$0xff]
        %s861 = scalar_lea.vmem %s105, 13 [#allocation0]
        %v862 = vld [vmem:[%s861] ss:$0 sm:$0xff]
        %v863 = vmul.f32 %v860, %v860
        %864 = vadd.xlane.f32.xlu0 %v863
        %v865 = vpop.xlane.xlu0 %864
        %v866 = vsub.f32 %v862, %v865
        %v867 = vrsqrt.pop %v866
        %s868 = scalar_lea.vmem %s105, 8 [#allocation0]
        %v869 = vld [vmem:[%s868] sm:$0xff]
        %s870 = scalar_lea.vmem %s113, 8 [#allocation1]
        %v871 = vld [vmem:[%s870] sm:$0xff]
        %v872 = vmul.f32 %v871, %v860
        %873 = vadd.xlane.f32.xlu0 %v872
        %v874 = vpop.xlane.xlu0 %873
        %v875 = vsub.f32 %v869, %v874
        %v876 = vmul.f32 %v875, %v867
        %vm877 = vcmask 1047557
        %vm878 = vmand %vm858, %vm877
        %v879 = vsel %vm878, %v876, 0.0
        %v880 = vadd.f32 %v871, %v879
        %s881 = scalar_lea.vmem %s113, 8 [#allocation1]
        %882 = vst [vmem:[%s881] sm:$0xff] %v880
        %s883 = scalar_lea.vmem %s105, 16 [#allocation0]
        %v884 = vld [vmem:[%s883] sm:$0xff]
        %s885 = scalar_lea.vmem %s113, 16 [#allocation1]
        %v886 = vld [vmem:[%s885] sm:$0xff]
        %v887 = vmul.f32 %v886, %v860
        %888 = vadd.xlane.f32.xlu0 %v887
        %v889 = vpop.xlane.xlu0 %888
        %v890 = vsub.f32 %v884, %v889
        %v891 = vmul.f32 %v890, %v867
        %v892 = vsel %vm858, %v891, 0.0
        %v893 = vadd.f32 %v886, %v892
        %s894 = scalar_lea.vmem %s113, 16 [#allocation1]
        %895 = vst [vmem:[%s894] sm:$0xff] %v893
        %s896 = scalar_lea.vmem %s105, 24 [#allocation0]
        %v897 = vld [vmem:[%s896] sm:$0xff]
        %s898 = scalar_lea.vmem %s113, 24 [#allocation1]
        %v899 = vld [vmem:[%s898] sm:$0xff]
        %v900 = vmul.f32 %v899, %v860
        %901 = vadd.xlane.f32.xlu0 %v900
        %v902 = vpop.xlane.xlu0 %901
        %v903 = vsub.f32 %v897, %v902
        %v904 = vmul.f32 %v903, %v867
        %v905 = vsel %vm858, %v904, 0.0
        %v906 = vadd.f32 %v899, %v905
        %s907 = scalar_lea.vmem %s113, 24 [#allocation1]
        %908 = vst [vmem:[%s907] sm:$0xff] %v906
        %vm909 = vcmask 121968
        %s910 = scalar_lea.vmem %s113, 14 [#allocation1]
        %v911 = vld [vmem:[%s910] ss:$0 sm:$0xff]
        %s912 = scalar_lea.vmem %s105, 14 [#allocation0]
        %v913 = vld [vmem:[%s912] ss:$0 sm:$0xff]
        %v914 = vmul.f32 %v911, %v911
        %915 = vadd.xlane.f32.xlu0 %v914
        %v916 = vpop.xlane.xlu0 %915
        %v917 = vsub.f32 %v913, %v916
        %v918 = vrsqrt.pop %v917
        %s919 = scalar_lea.vmem %s105, 8 [#allocation0]
        %v920 = vld [vmem:[%s919] sm:$0xff]
        %s921 = scalar_lea.vmem %s113, 8 [#allocation1]
        %v922 = vld [vmem:[%s921] sm:$0xff]
        %v923 = vmul.f32 %v922, %v911
        %924 = vadd.xlane.f32.xlu0 %v923
        %v925 = vpop.xlane.xlu0 %924
        %v926 = vsub.f32 %v920, %v925
        %v927 = vmul.f32 %v926, %v918
        %vm928 = vcmask 1047558
        %vm929 = vmand %vm909, %vm928
        %v930 = vsel %vm929, %v927, 0.0
        %v931 = vadd.f32 %v922, %v930
        %s932 = scalar_lea.vmem %s113, 8 [#allocation1]
        %933 = vst [vmem:[%s932] sm:$0xff] %v931
        %s934 = scalar_lea.vmem %s105, 16 [#allocation0]
        %v935 = vld [vmem:[%s934] sm:$0xff]
        %s936 = scalar_lea.vmem %s113, 16 [#allocation1]
        %v937 = vld [vmem:[%s936] sm:$0xff]
        %v938 = vmul.f32 %v937, %v911
        %939 = vadd.xlane.f32.xlu0 %v938
        %v940 = vpop.xlane.xlu0 %939
        %v941 = vsub.f32 %v935, %v940
        %v942 = vmul.f32 %v941, %v918
        %v943 = vsel %vm909, %v942, 0.0
        %v944 = vadd.f32 %v937, %v943
        %s945 = scalar_lea.vmem %s113, 16 [#allocation1]
        %946 = vst [vmem:[%s945] sm:$0xff] %v944
        %s947 = scalar_lea.vmem %s105, 24 [#allocation0]
        %v948 = vld [vmem:[%s947] sm:$0xff]
        %s949 = scalar_lea.vmem %s113, 24 [#allocation1]
        %v950 = vld [vmem:[%s949] sm:$0xff]
        %v951 = vmul.f32 %v950, %v911
        %952 = vadd.xlane.f32.xlu0 %v951
        %v953 = vpop.xlane.xlu0 %952
        %v954 = vsub.f32 %v948, %v953
        %v955 = vmul.f32 %v954, %v918
        %v956 = vsel %vm909, %v955, 0.0
        %v957 = vadd.f32 %v950, %v956
        %s958 = scalar_lea.vmem %s113, 24 [#allocation1]
        %959 = vst [vmem:[%s958] sm:$0xff] %v957
        %vm960 = vcmask 130168
        %s961 = scalar_lea.vmem %s113, 15 [#allocation1]
        %v962 = vld [vmem:[%s961] ss:$0 sm:$0xff]
        %s963 = scalar_lea.vmem %s105, 15 [#allocation0]
        %v964 = vld [vmem:[%s963] ss:$0 sm:$0xff]
        %v965 = vmul.f32 %v962, %v962
        %966 = vadd.xlane.f32.xlu0 %v965
        %v967 = vpop.xlane.xlu0 %966
        %v968 = vsub.f32 %v964, %v967
        %v969 = vrsqrt.pop %v968
        %s970 = scalar_lea.vmem %s105, 8 [#allocation0]
        %v971 = vld [vmem:[%s970] sm:$0xff]
        %s972 = scalar_lea.vmem %s113, 8 [#allocation1]
        %v973 = vld [vmem:[%s972] sm:$0xff]
        %v974 = vmul.f32 %v973, %v962
        %975 = vadd.xlane.f32.xlu0 %v974
        %v976 = vpop.xlane.xlu0 %975
        %v977 = vsub.f32 %v971, %v976
        %v978 = vmul.f32 %v977, %v969
        %vm979 = vcmask 1047559
        %vm980 = vmand %vm960, %vm979
        %v981 = vsel %vm980, %v978, 0.0
        %v982 = vadd.f32 %v973, %v981
        %s983 = scalar_lea.vmem %s113, 8 [#allocation1]
        %984 = vst [vmem:[%s983] sm:$0xff] %v982
        %s985 = scalar_lea.vmem %s105, 16 [#allocation0]
        %v986 = vld [vmem:[%s985] sm:$0xff]
        %s987 = scalar_lea.vmem %s113, 16 [#allocation1]
        %v988 = vld [vmem:[%s987] sm:$0xff]
        %v989 = vmul.f32 %v988, %v962
        %990 = vadd.xlane.f32.xlu0 %v989
        %v991 = vpop.xlane.xlu0 %990
        %v992 = vsub.f32 %v986, %v991
        %v993 = vmul.f32 %v992, %v969
        %v994 = vsel %vm960, %v993, 0.0
        %v995 = vadd.f32 %v988, %v994
        %s996 = scalar_lea.vmem %s113, 16 [#allocation1]
        %997 = vst [vmem:[%s996] sm:$0xff] %v995
        %s998 = scalar_lea.vmem %s105, 24 [#allocation0]
        %v999 = vld [vmem:[%s998] sm:$0xff]
        %s1000 = scalar_lea.vmem %s113, 24 [#allocation1]
        %v1001 = vld [vmem:[%s1000] sm:$0xff]
        %v1002 = vmul.f32 %v1001, %v962
        %1003 = vadd.xlane.f32.xlu0 %v1002
        %v1004 = vpop.xlane.xlu0 %1003
        %v1005 = vsub.f32 %v999, %v1004
        %v1006 = vmul.f32 %v1005, %v969
        %v1007 = vsel %vm960, %v1006, 0.0
        %v1008 = vadd.f32 %v1001, %v1007
        %s1009 = scalar_lea.vmem %s113, 24 [#allocation1]
        %1010 = vst [vmem:[%s1009] sm:$0xff] %v1008
        %vm1011 = vcmask 138368
        %s1012 = scalar_lea.vmem %s113, 16 [#allocation1]
        %v1013 = vld [vmem:[%s1012] ss:$0 sm:$0xff]
        %s1014 = scalar_lea.vmem %s105, 16 [#allocation0]
        %v1015 = vld [vmem:[%s1014] ss:$0 sm:$0xff]
        %v1016 = vmul.f32 %v1013, %v1013
        %1017 = vadd.xlane.f32.xlu0 %v1016
        %v1018 = vpop.xlane.xlu0 %1017
        %v1019 = vsub.f32 %v1015, %v1018
        %v1020 = vrsqrt.pop %v1019
        %s1021 = scalar_lea.vmem %s105, 16 [#allocation0]
        %v1022 = vld [vmem:[%s1021] sm:$0xff]
        %s1023 = scalar_lea.vmem %s113, 16 [#allocation1]
        %v1024 = vld [vmem:[%s1023] sm:$0xff]
        %v1025 = vmul.f32 %v1024, %v1013
        %1026 = vadd.xlane.f32.xlu0 %v1025
        %v1027 = vpop.xlane.xlu0 %1026
        %v1028 = vsub.f32 %v1022, %v1027
        %v1029 = vmul.f32 %v1028, %v1020
        %v1030 = vsel %vm1011, %v1029, 0.0
        %v1031 = vadd.f32 %v1024, %v1030
        %s1032 = scalar_lea.vmem %s113, 16 [#allocation1]
        %1033 = vst [vmem:[%s1032] sm:$0xff] %v1031
        %s1034 = scalar_lea.vmem %s105, 24 [#allocation0]
        %v1035 = vld [vmem:[%s1034] sm:$0xff]
        %s1036 = scalar_lea.vmem %s113, 24 [#allocation1]
        %v1037 = vld [vmem:[%s1036] sm:$0xff]
        %v1038 = vmul.f32 %v1037, %v1013
        %1039 = vadd.xlane.f32.xlu0 %v1038
        %v1040 = vpop.xlane.xlu0 %1039
        %v1041 = vsub.f32 %v1035, %v1040
        %v1042 = vmul.f32 %v1041, %v1020
        %v1043 = vsel %vm1011, %v1042, 0.0
        %v1044 = vadd.f32 %v1037, %v1043
        %s1045 = scalar_lea.vmem %s113, 24 [#allocation1]
        %1046 = vst [vmem:[%s1045] sm:$0xff] %v1044
        %vm1047 = vcmask 146568
        %s1048 = scalar_lea.vmem %s113, 17 [#allocation1]
        %v1049 = vld [vmem:[%s1048] ss:$0 sm:$0xff]
        %s1050 = scalar_lea.vmem %s105, 17 [#allocation0]
        %v1051 = vld [vmem:[%s1050] ss:$0 sm:$0xff]
        %v1052 = vmul.f32 %v1049, %v1049
        %1053 = vadd.xlane.f32.xlu0 %v1052
        %v1054 = vpop.xlane.xlu0 %1053
        %v1055 = vsub.f32 %v1051, %v1054
        %v1056 = vrsqrt.pop %v1055
        %s1057 = scalar_lea.vmem %s105, 16 [#allocation0]
        %v1058 = vld [vmem:[%s1057] sm:$0xff]
        %s1059 = scalar_lea.vmem %s113, 16 [#allocation1]
        %v1060 = vld [vmem:[%s1059] sm:$0xff]
        %v1061 = vmul.f32 %v1060, %v1049
        %1062 = vadd.xlane.f32.xlu0 %v1061
        %v1063 = vpop.xlane.xlu0 %1062
        %v1064 = vsub.f32 %v1058, %v1063
        %v1065 = vmul.f32 %v1064, %v1056
        %vm1066 = vcmask 1047553
        %vm1067 = vmand %vm1047, %vm1066
        %v1068 = vsel %vm1067, %v1065, 0.0
        %v1069 = vadd.f32 %v1060, %v1068
        %s1070 = scalar_lea.vmem %s113, 16 [#allocation1]
        %1071 = vst [vmem:[%s1070] sm:$0xff] %v1069
        %s1072 = scalar_lea.vmem %s105, 24 [#allocation0]
        %v1073 = vld [vmem:[%s1072] sm:$0xff]
        %s1074 = scalar_lea.vmem %s113, 24 [#allocation1]
        %v1075 = vld [vmem:[%s1074] sm:$0xff]
        %v1076 = vmul.f32 %v1075, %v1049
        %1077 = vadd.xlane.f32.xlu0 %v1076
        %v1078 = vpop.xlane.xlu0 %1077
        %v1079 = vsub.f32 %v1073, %v1078
        %v1080 = vmul.f32 %v1079, %v1056
        %v1081 = vsel %vm1047, %v1080, 0.0
        %v1082 = vadd.f32 %v1075, %v1081
        %s1083 = scalar_lea.vmem %s113, 24 [#allocation1]
        %1084 = vst [vmem:[%s1083] sm:$0xff] %v1082
        %vm1085 = vcmask 154768
        %s1086 = scalar_lea.vmem %s113, 18 [#allocation1]
        %v1087 = vld [vmem:[%s1086] ss:$0 sm:$0xff]
        %s1088 = scalar_lea.vmem %s105, 18 [#allocation0]
        %v1089 = vld [vmem:[%s1088] ss:$0 sm:$0xff]
        %v1090 = vmul.f32 %v1087, %v1087
        %1091 = vadd.xlane.f32.xlu0 %v1090
        %v1092 = vpop.xlane.xlu0 %1091
        %v1093 = vsub.f32 %v1089, %v1092
        %v1094 = vrsqrt.pop %v1093
        %s1095 = scalar_lea.vmem %s105, 16 [#allocation0]
        %v1096 = vld [vmem:[%s1095] sm:$0xff]
        %s1097 = scalar_lea.vmem %s113, 16 [#allocation1]
        %v1098 = vld [vmem:[%s1097] sm:$0xff]
        %v1099 = vmul.f32 %v1098, %v1087
        %1100 = vadd.xlane.f32.xlu0 %v1099
        %v1101 = vpop.xlane.xlu0 %1100
        %v1102 = vsub.f32 %v1096, %v1101
        %v1103 = vmul.f32 %v1102, %v1094
        %vm1104 = vcmask 1047554
        %vm1105 = vmand %vm1085, %vm1104
        %v1106 = vsel %vm1105, %v1103, 0.0
        %v1107 = vadd.f32 %v1098, %v1106
        %s1108 = scalar_lea.vmem %s113, 16 [#allocation1]
        %1109 = vst [vmem:[%s1108] sm:$0xff] %v1107
        %s1110 = scalar_lea.vmem %s105, 24 [#allocation0]
        %v1111 = vld [vmem:[%s1110] sm:$0xff]
        %s1112 = scalar_lea.vmem %s113, 24 [#allocation1]
        %v1113 = vld [vmem:[%s1112] sm:$0xff]
        %v1114 = vmul.f32 %v1113, %v1087
        %1115 = vadd.xlane.f32.xlu0 %v1114
        %v1116 = vpop.xlane.xlu0 %1115
        %v1117 = vsub.f32 %v1111, %v1116
        %v1118 = vmul.f32 %v1117, %v1094
        %v1119 = vsel %vm1085, %v1118, 0.0
        %v1120 = vadd.f32 %v1113, %v1119
        %s1121 = scalar_lea.vmem %s113, 24 [#allocation1]
        %1122 = vst [vmem:[%s1121] sm:$0xff] %v1120
        %vm1123 = vcmask 162968
        %s1124 = scalar_lea.vmem %s113, 19 [#allocation1]
        %v1125 = vld [vmem:[%s1124] ss:$0 sm:$0xff]
        %s1126 = scalar_lea.vmem %s105, 19 [#allocation0]
        %v1127 = vld [vmem:[%s1126] ss:$0 sm:$0xff]
        %v1128 = vmul.f32 %v1125, %v1125
        %1129 = vadd.xlane.f32.xlu0 %v1128
        %v1130 = vpop.xlane.xlu0 %1129
        %v1131 = vsub.f32 %v1127, %v1130
        %v1132 = vrsqrt.pop %v1131
        %s1133 = scalar_lea.vmem %s105, 16 [#allocation0]
        %v1134 = vld [vmem:[%s1133] sm:$0xff]
        %s1135 = scalar_lea.vmem %s113, 16 [#allocation1]
        %v1136 = vld [vmem:[%s1135] sm:$0xff]
        %v1137 = vmul.f32 %v1136, %v1125
        %1138 = vadd.xlane.f32.xlu0 %v1137
        %v1139 = vpop.xlane.xlu0 %1138
        %v1140 = vsub.f32 %v1134, %v1139
        %v1141 = vmul.f32 %v1140, %v1132
        %vm1142 = vcmask 1047555
        %vm1143 = vmand %vm1123, %vm1142
        %v1144 = vsel %vm1143, %v1141, 0.0
        %v1145 = vadd.f32 %v1136, %v1144
        %s1146 = scalar_lea.vmem %s113, 16 [#allocation1]
        %1147 = vst [vmem:[%s1146] sm:$0xff] %v1145
        %s1148 = scalar_lea.vmem %s105, 24 [#allocation0]
        %v1149 = vld [vmem:[%s1148] sm:$0xff]
        %s1150 = scalar_lea.vmem %s113, 24 [#allocation1]
        %v1151 = vld [vmem:[%s1150] sm:$0xff]
        %v1152 = vmul.f32 %v1151, %v1125
        %1153 = vadd.xlane.f32.xlu0 %v1152
        %v1154 = vpop.xlane.xlu0 %1153
        %v1155 = vsub.f32 %v1149, %v1154
        %v1156 = vmul.f32 %v1155, %v1132
        %v1157 = vsel %vm1123, %v1156, 0.0
        %v1158 = vadd.f32 %v1151, %v1157
        %s1159 = scalar_lea.vmem %s113, 24 [#allocation1]
        %1160 = vst [vmem:[%s1159] sm:$0xff] %v1158
        %vm1161 = vcmask 171168
        %s1162 = scalar_lea.vmem %s113, 20 [#allocation1]
        %v1163 = vld [vmem:[%s1162] ss:$0 sm:$0xff]
        %s1164 = scalar_lea.vmem %s105, 20 [#allocation0]
        %v1165 = vld [vmem:[%s1164] ss:$0 sm:$0xff]
        %v1166 = vmul.f32 %v1163, %v1163
        %1167 = vadd.xlane.f32.xlu0 %v1166
        %v1168 = vpop.xlane.xlu0 %1167
        %v1169 = vsub.f32 %v1165, %v1168
        %v1170 = vrsqrt.pop %v1169
        %s1171 = scalar_lea.vmem %s105, 16 [#allocation0]
        %v1172 = vld [vmem:[%s1171] sm:$0xff]
        %s1173 = scalar_lea.vmem %s113, 16 [#allocation1]
        %v1174 = vld [vmem:[%s1173] sm:$0xff]
        %v1175 = vmul.f32 %v1174, %v1163
        %1176 = vadd.xlane.f32.xlu0 %v1175
        %v1177 = vpop.xlane.xlu0 %1176
        %v1178 = vsub.f32 %v1172, %v1177
        %v1179 = vmul.f32 %v1178, %v1170
        %vm1180 = vcmask 1047556
        %vm1181 = vmand %vm1161, %vm1180
        %v1182 = vsel %vm1181, %v1179, 0.0
        %v1183 = vadd.f32 %v1174, %v1182
        %s1184 = scalar_lea.vmem %s113, 16 [#allocation1]
        %1185 = vst [vmem:[%s1184] sm:$0xff] %v1183
        %s1186 = scalar_lea.vmem %s105, 24 [#allocation0]
        %v1187 = vld [vmem:[%s1186] sm:$0xff]
        %s1188 = scalar_lea.vmem %s113, 24 [#allocation1]
        %v1189 = vld [vmem:[%s1188] sm:$0xff]
        %v1190 = vmul.f32 %v1189, %v1163
        %1191 = vadd.xlane.f32.xlu0 %v1190
        %v1192 = vpop.xlane.xlu0 %1191
        %v1193 = vsub.f32 %v1187, %v1192
        %v1194 = vmul.f32 %v1193, %v1170
        %v1195 = vsel %vm1161, %v1194, 0.0
        %v1196 = vadd.f32 %v1189, %v1195
        %s1197 = scalar_lea.vmem %s113, 24 [#allocation1]
        %1198 = vst [vmem:[%s1197] sm:$0xff] %v1196
        %vm1199 = vcmask 179368
        %s1200 = scalar_lea.vmem %s113, 21 [#allocation1]
        %v1201 = vld [vmem:[%s1200] ss:$0 sm:$0xff]
        %s1202 = scalar_lea.vmem %s105, 21 [#allocation0]
        %v1203 = vld [vmem:[%s1202] ss:$0 sm:$0xff]
        %v1204 = vmul.f32 %v1201, %v1201
        %1205 = vadd.xlane.f32.xlu0 %v1204
        %v1206 = vpop.xlane.xlu0 %1205
        %v1207 = vsub.f32 %v1203, %v1206
        %v1208 = vrsqrt.pop %v1207
        %s1209 = scalar_lea.vmem %s105, 16 [#allocation0]
        %v1210 = vld [vmem:[%s1209] sm:$0xff]
        %s1211 = scalar_lea.vmem %s113, 16 [#allocation1]
        %v1212 = vld [vmem:[%s1211] sm:$0xff]
        %v1213 = vmul.f32 %v1212, %v1201
        %1214 = vadd.xlane.f32.xlu0 %v1213
        %v1215 = vpop.xlane.xlu0 %1214
        %v1216 = vsub.f32 %v1210, %v1215
        %v1217 = vmul.f32 %v1216, %v1208
        %vm1218 = vcmask 1047557
        %vm1219 = vmand %vm1199, %vm1218
        %v1220 = vsel %vm1219, %v1217, 0.0
        %v1221 = vadd.f32 %v1212, %v1220
        %s1222 = scalar_lea.vmem %s113, 16 [#allocation1]
        %1223 = vst [vmem:[%s1222] sm:$0xff] %v1221
        %s1224 = scalar_lea.vmem %s105, 24 [#allocation0]
        %v1225 = vld [vmem:[%s1224] sm:$0xff]
        %s1226 = scalar_lea.vmem %s113, 24 [#allocation1]
        %v1227 = vld [vmem:[%s1226] sm:$0xff]
        %v1228 = vmul.f32 %v1227, %v1201
        %1229 = vadd.xlane.f32.xlu0 %v1228
        %v1230 = vpop.xlane.xlu0 %1229
        %v1231 = vsub.f32 %v1225, %v1230
        %v1232 = vmul.f32 %v1231, %v1208
        %v1233 = vsel %vm1199, %v1232, 0.0
        %v1234 = vadd.f32 %v1227, %v1233
        %s1235 = scalar_lea.vmem %s113, 24 [#allocation1]
        %1236 = vst [vmem:[%s1235] sm:$0xff] %v1234
        %vm1237 = vcmask 187568
        %s1238 = scalar_lea.vmem %s113, 22 [#allocation1]
        %v1239 = vld [vmem:[%s1238] ss:$0 sm:$0xff]
        %s1240 = scalar_lea.vmem %s105, 22 [#allocation0]
        %v1241 = vld [vmem:[%s1240] ss:$0 sm:$0xff]
        %v1242 = vmul.f32 %v1239, %v1239
        %1243 = vadd.xlane.f32.xlu0 %v1242
        %v1244 = vpop.xlane.xlu0 %1243
        %v1245 = vsub.f32 %v1241, %v1244
        %v1246 = vrsqrt.pop %v1245
        %s1247 = scalar_lea.vmem %s105, 16 [#allocation0]
        %v1248 = vld [vmem:[%s1247] sm:$0xff]
        %s1249 = scalar_lea.vmem %s113, 16 [#allocation1]
        %v1250 = vld [vmem:[%s1249] sm:$0xff]
        %v1251 = vmul.f32 %v1250, %v1239
        %1252 = vadd.xlane.f32.xlu0 %v1251
        %v1253 = vpop.xlane.xlu0 %1252
        %v1254 = vsub.f32 %v1248, %v1253
        %v1255 = vmul.f32 %v1254, %v1246
        %vm1256 = vcmask 1047558
        %vm1257 = vmand %vm1237, %vm1256
        %v1258 = vsel %vm1257, %v1255, 0.0
        %v1259 = vadd.f32 %v1250, %v1258
        %s1260 = scalar_lea.vmem %s113, 16 [#allocation1]
        %1261 = vst [vmem:[%s1260] sm:$0xff] %v1259
        %s1262 = scalar_lea.vmem %s105, 24 [#allocation0]
        %v1263 = vld [vmem:[%s1262] sm:$0xff]
        %s1264 = scalar_lea.vmem %s113, 24 [#allocation1]
        %v1265 = vld [vmem:[%s1264] sm:$0xff]
        %v1266 = vmul.f32 %v1265, %v1239
        %1267 = vadd.xlane.f32.xlu0 %v1266
        %v1268 = vpop.xlane.xlu0 %1267
        %v1269 = vsub.f32 %v1263, %v1268
        %v1270 = vmul.f32 %v1269, %v1246
        %v1271 = vsel %vm1237, %v1270, 0.0
        %v1272 = vadd.f32 %v1265, %v1271
        %s1273 = scalar_lea.vmem %s113, 24 [#allocation1]
        %1274 = vst [vmem:[%s1273] sm:$0xff] %v1272
        %vm1275 = vcmask 195768
        %s1276 = scalar_lea.vmem %s113, 23 [#allocation1]
        %v1277 = vld [vmem:[%s1276] ss:$0 sm:$0xff]
        %s1278 = scalar_lea.vmem %s105, 23 [#allocation0]
        %v1279 = vld [vmem:[%s1278] ss:$0 sm:$0xff]
        %v1280 = vmul.f32 %v1277, %v1277
        %1281 = vadd.xlane.f32.xlu0 %v1280
        %v1282 = vpop.xlane.xlu0 %1281
        %v1283 = vsub.f32 %v1279, %v1282
        %v1284 = vrsqrt.pop %v1283
        %s1285 = scalar_lea.vmem %s105, 16 [#allocation0]
        %v1286 = vld [vmem:[%s1285] sm:$0xff]
        %s1287 = scalar_lea.vmem %s113, 16 [#allocation1]
        %v1288 = vld [vmem:[%s1287] sm:$0xff]
        %v1289 = vmul.f32 %v1288, %v1277
        %1290 = vadd.xlane.f32.xlu0 %v1289
        %v1291 = vpop.xlane.xlu0 %1290
        %v1292 = vsub.f32 %v1286, %v1291
        %v1293 = vmul.f32 %v1292, %v1284
        %vm1294 = vcmask 1047559
        %vm1295 = vmand %vm1275, %vm1294
        %v1296 = vsel %vm1295, %v1293, 0.0
        %v1297 = vadd.f32 %v1288, %v1296
        %s1298 = scalar_lea.vmem %s113, 16 [#allocation1]
        %1299 = vst [vmem:[%s1298] sm:$0xff] %v1297
        %s1300 = scalar_lea.vmem %s105, 24 [#allocation0]
        %v1301 = vld [vmem:[%s1300] sm:$0xff]
        %s1302 = scalar_lea.vmem %s113, 24 [#allocation1]
        %v1303 = vld [vmem:[%s1302] sm:$0xff]
        %v1304 = vmul.f32 %v1303, %v1277
        %1305 = vadd.xlane.f32.xlu0 %v1304
        %v1306 = vpop.xlane.xlu0 %1305
        %v1307 = vsub.f32 %v1301, %v1306
        %v1308 = vmul.f32 %v1307, %v1284
        %v1309 = vsel %vm1275, %v1308, 0.0
        %v1310 = vadd.f32 %v1303, %v1309
        %s1311 = scalar_lea.vmem %s113, 24 [#allocation1]
        %1312 = vst [vmem:[%s1311] sm:$0xff] %v1310
        %vm1313 = vcmask 203968
        %s1314 = scalar_lea.vmem %s113, 24 [#allocation1]
        %v1315 = vld [vmem:[%s1314] ss:$0 sm:$0xff]
        %s1316 = scalar_lea.vmem %s105, 24 [#allocation0]
        %v1317 = vld [vmem:[%s1316] ss:$0 sm:$0xff]
        %v1318 = vmul.f32 %v1315, %v1315
        %1319 = vadd.xlane.f32.xlu0 %v1318
        %v1320 = vpop.xlane.xlu0 %1319
        %v1321 = vsub.f32 %v1317, %v1320
        %v1322 = vrsqrt.pop %v1321
        %s1323 = scalar_lea.vmem %s105, 24 [#allocation0]
        %v1324 = vld [vmem:[%s1323] sm:$0xff]
        %s1325 = scalar_lea.vmem %s113, 24 [#allocation1]
        %v1326 = vld [vmem:[%s1325] sm:$0xff]
        %v1327 = vmul.f32 %v1326, %v1315
        %1328 = vadd.xlane.f32.xlu0 %v1327
        %v1329 = vpop.xlane.xlu0 %1328
        %v1330 = vsub.f32 %v1324, %v1329
        %v1331 = vmul.f32 %v1330, %v1322
        %v1332 = vsel %vm1313, %v1331, 0.0
        %v1333 = vadd.f32 %v1326, %v1332
        %s1334 = scalar_lea.vmem %s113, 24 [#allocation1]
        %1335 = vst [vmem:[%s1334] sm:$0xff] %v1333
        %vm1336 = vcmask 212168
        %s1337 = scalar_lea.vmem %s113, 25 [#allocation1]
        %v1338 = vld [vmem:[%s1337] ss:$0 sm:$0xff]
        %s1339 = scalar_lea.vmem %s105, 25 [#allocation0]
        %v1340 = vld [vmem:[%s1339] ss:$0 sm:$0xff]
        %v1341 = vmul.f32 %v1338, %v1338
        %1342 = vadd.xlane.f32.xlu0 %v1341
        %v1343 = vpop.xlane.xlu0 %1342
        %v1344 = vsub.f32 %v1340, %v1343
        %v1345 = vrsqrt.pop %v1344
        %s1346 = scalar_lea.vmem %s105, 24 [#allocation0]
        %v1347 = vld [vmem:[%s1346] sm:$0xff]
        %s1348 = scalar_lea.vmem %s113, 24 [#allocation1]
        %v1349 = vld [vmem:[%s1348] sm:$0xff]
        %v1350 = vmul.f32 %v1349, %v1338
        %1351 = vadd.xlane.f32.xlu0 %v1350
        %v1352 = vpop.xlane.xlu0 %1351
        %v1353 = vsub.f32 %v1347, %v1352
        %v1354 = vmul.f32 %v1353, %v1345
        %vm1355 = vcmask 1047553
        %vm1356 = vmand %vm1336, %vm1355
        %v1357 = vsel %vm1356, %v1354, 0.0
        %v1358 = vadd.f32 %v1349, %v1357
        %s1359 = scalar_lea.vmem %s113, 24 [#allocation1]
        %1360 = vst [vmem:[%s1359] sm:$0xff] %v1358
        %vm1361 = vcmask 220368
        %s1362 = scalar_lea.vmem %s113, 26 [#allocation1]
        %v1363 = vld [vmem:[%s1362] ss:$0 sm:$0xff]
        %s1364 = scalar_lea.vmem %s105, 26 [#allocation0]
        %v1365 = vld [vmem:[%s1364] ss:$0 sm:$0xff]
        %v1366 = vmul.f32 %v1363, %v1363
        %1367 = vadd.xlane.f32.xlu0 %v1366
        %v1368 = vpop.xlane.xlu0 %1367
        %v1369 = vsub.f32 %v1365, %v1368
        %v1370 = vrsqrt.pop %v1369
        %s1371 = scalar_lea.vmem %s105, 24 [#allocation0]
        %v1372 = vld [vmem:[%s1371] sm:$0xff]
        %s1373 = scalar_lea.vmem %s113, 24 [#allocation1]
        %v1374 = vld [vmem:[%s1373] sm:$0xff]
        %v1375 = vmul.f32 %v1374, %v1363
        %1376 = vadd.xlane.f32.xlu0 %v1375
        %v1377 = vpop.xlane.xlu0 %1376
        %v1378 = vsub.f32 %v1372, %v1377
        %v1379 = vmul.f32 %v1378, %v1370
        %vm1380 = vcmask 1047554
        %vm1381 = vmand %vm1361, %vm1380
        %v1382 = vsel %vm1381, %v1379, 0.0
        %v1383 = vadd.f32 %v1374, %v1382
        %s1384 = scalar_lea.vmem %s113, 24 [#allocation1]
        %1385 = vst [vmem:[%s1384] sm:$0xff] %v1383
        %vm1386 = vcmask 228568
        %s1387 = scalar_lea.vmem %s113, 27 [#allocation1]
        %v1388 = vld [vmem:[%s1387] ss:$0 sm:$0xff]
        %s1389 = scalar_lea.vmem %s105, 27 [#allocation0]
        %v1390 = vld [vmem:[%s1389] ss:$0 sm:$0xff]
        %v1391 = vmul.f32 %v1388, %v1388
        %1392 = vadd.xlane.f32.xlu0 %v1391
        %v1393 = vpop.xlane.xlu0 %1392
        %v1394 = vsub.f32 %v1390, %v1393
        %v1395 = vrsqrt.pop %v1394
        %s1396 = scalar_lea.vmem %s105, 24 [#allocation0]
        %v1397 = vld [vmem:[%s1396] sm:$0xff]
        %s1398 = scalar_lea.vmem %s113, 24 [#allocation1]
        %v1399 = vld [vmem:[%s1398] sm:$0xff]
        %v1400 = vmul.f32 %v1399, %v1388
        %1401 = vadd.xlane.f32.xlu0 %v1400
        %v1402 = vpop.xlane.xlu0 %1401
        %v1403 = vsub.f32 %v1397, %v1402
        %v1404 = vmul.f32 %v1403, %v1395
        %vm1405 = vcmask 1047555
        %vm1406 = vmand %vm1386, %vm1405
        %v1407 = vsel %vm1406, %v1404, 0.0
        %v1408 = vadd.f32 %v1399, %v1407
        %s1409 = scalar_lea.vmem %s113, 24 [#allocation1]
        %1410 = vst [vmem:[%s1409] sm:$0xff] %v1408
        %s1411 = sand.u32 %s8, 1
        %s1412 = sand.u32 %s8, 1
        %s1413 = smul.addr %s1412, 32
        %s1414 = scalar_lea.vmem [#allocation1], %s1413
        %s1415 = sadd.s32 %s15, %s14
        %s1416 = smul.addr %s13, 4
        %s1417 = sadd.s32 %s1415, %s1416
        %s1418 = smul.addr %s1417, 8
        %s1419 = scalar_lea.vmem %s1, %s1418
        // Predicated region
        $region55: #{custom-call.4} parent=53 // pred_check
          _
        $region56: #{custom-call.4} parent=53 // pred_check_branch
          %1421 = sbr.rel (0) target = $region58
        $region57: #{custom-call.4} parent=53 // pred_region
          // Predicated region
          $region59: #{custom-call.4} parent=57 // pred_check
            _
          $region60: #{custom-call.4} parent=57 // pred_check_branch
            %1423 = sbr.rel (0) target = $region62
          $region61: #{custom-call.4} parent=57 // pred_region
            // Predicated region
            $region74: #{custom-call.4} parent=61 // pred_check
              _
            $region75: #{custom-call.4} parent=61 // pred_check_branch
              %1445 = sbr.rel (0) target = $region77
            $region76: #{custom-call.4} parent=61 // pred_region
              loop: start=0, step=1, limit=1
              $region78: #{custom-call.4} parent=76 // loop_pre_header
                _
              $region79: #{custom-call.4} parent=76 // loop_header
                %s1447 = sphi 0, %s1451
                %p1448 = scmp.ge.s32.totalorder %s1447, 1
                %s1452 = sphi %s1414, %s1414
                %s1453 = sphi %s1419, %s1419
              $region80: #{custom-call.4} parent=76 // loop_header_branch
                %1450 = sbr.rel (%p1448) target = $region84
              $region81: #{custom-call.4} parent=76 // loop_body
                %v1454 = vld [vmem:[%s1452] sm:$0xff]
                %1455 = vst [vmem:[%s1453] sm:$0xff] %v1454
                %v1456 = vld [vmem:[%s1452 + $0x8] sm:$0xff]
                %1457 = vst [vmem:[%s1453 + $0x8] sm:$0xff] %v1456
                %v1458 = vld [vmem:[%s1452 + $0x10] sm:$0xff]
                %1459 = vst [vmem:[%s1453 + $0x10] sm:$0xff] %v1458
                %v1460 = vld [vmem:[%s1452 + $0x18] sm:$0xff]
                %1461 = vst [vmem:[%s1453 + $0x18] sm:$0xff] %v1460
              $region82: #{custom-call.4} parent=76 // loop_footer
                %s1451 = sadd.s32 1, %s1447
              $region83: #{custom-call.4} parent=76 // loop_footer_branch
                %1446 = sbr.rel target = $region79
              $region84: #{custom-call.4} parent=76 // loop_exit
                _
            $region77: #{custom-call.4} parent=61 // pred_fallthru
              _
            // Predicated region
            $region85: #{custom-call.4} parent=61 // pred_check
              _
            $region86: #{custom-call.4} parent=61 // pred_check_branch
              %1463 = sbr.rel target = $region88
            $region87: #{custom-call.4} parent=61 // pred_region
              _
            $region88: #{custom-call.4} parent=61 // pred_fallthru
              _
          $region62: #{custom-call.4} parent=57 // pred_fallthru
            _
          // Predicated region
          $region63: #{custom-call.4} parent=57 // pred_check
            _
          $region64: #{custom-call.4} parent=57 // pred_check_branch
            %1425 = sbr.rel target = $region66
          $region65: #{custom-call.4} parent=57 // pred_region
            %s1427 = ssub.s32 256, 1
            loop: start=0, step=1, limit=1
            $region67: #{custom-call.4} parent=65 // loop_pre_header
              _
            $region68: #{custom-call.4} parent=65 // loop_header
              %s1429 = sphi 0, %s1433
              %p1430 = scmp.ge.s32.totalorder %s1429, 1
              %s1434 = sphi %s1414, %s1414
              %s1435 = sphi %s1419, %s1419
            $region69: #{custom-call.4} parent=65 // loop_header_branch
              %1432 = sbr.rel (%p1430) target = $region73
            $region70: #{custom-call.4} parent=65 // loop_body
              %v1436 = vld [vmem:[%s1434] sm:%s1427]
              %1437 = vst [vmem:[%s1435] sm:%s1427] %v1436
              %v1438 = vld [vmem:[%s1434 + $0x8] sm:%s1427]
              %1439 = vst [vmem:[%s1435 + $0x8] sm:%s1427] %v1438
              %v1440 = vld [vmem:[%s1434 + $0x10] sm:%s1427]
              %1441 = vst [vmem:[%s1435 + $0x10] sm:%s1427] %v1440
              %v1442 = vld [vmem:[%s1434 + $0x18] sm:%s1427]
              %1443 = vst [vmem:[%s1435 + $0x18] sm:%s1427] %v1442
            $region71: #{custom-call.4} parent=65 // loop_footer
              %s1433 = sadd.s32 1, %s1429
            $region72: #{custom-call.4} parent=65 // loop_footer_branch
              %1428 = sbr.rel target = $region68
            $region73: #{custom-call.4} parent=65 // loop_exit
              _
          $region66: #{custom-call.4} parent=57 // pred_fallthru
            _
        $region58: #{custom-call.4} parent=53 // pred_fallthru
          _
        %1464 = vnop
      $region54: #{custom-call.4} parent=5 // pred_fallthru
        _
      %p1465 = scmp.le.s32.totalorder 2, %s3
      // Predicated region
      $region89: #{custom-call.4} parent=5 // pred_check
        %p1466 = pneg %p1465
      $region90: #{custom-call.4} parent=5 // pred_check_branch
        %1468 = sbr.rel (%p1466) target = $region92
      $region91: #{custom-call.4} parent=5 // pred_region
        %s1469 = ssub.s32 %s3, 2
        %s1470 = sand.u32 %s9, 1
        %s1471 = sand.u32 %s9, 1
        %s1472 = smul.addr %s1471, 32
        %s1473 = scalar_lea.vmem [#allocation1], %s1472
      $region92: #{custom-call.4} parent=5 // pred_fallthru
        _
    $region6: #{custom-call.4} parent=1 // loop_footer
      %s7 = sadd.s32 1, %s3
    $region7: #{custom-call.4} parent=1 // loop_footer_branch
      %2 = sbr.rel target = $region3
    $region8: #{custom-call.4} parent=1 // loop_exit
      _

// kernel: custom-call.6
$region0: #{custom-call.6}
  %s0 = inlined_call_operand.vmem [shape: f32[8,1,28,28], index: 0, kind: input, shape index: {}]
  %s1 = inlined_call_operand.vmem [shape: f32[8,1,28,28], index: 1, kind: output, shape index: {}]
  $region1: #{custom-call.6} parent=0
    #allocation0 [shape = 'u8[32768]{0}', space=vmem, size = 0x8000, scoped, tag = 'operand span for operand 0']
    #allocation1 [shape = 'u8[32768]{0}', space=vmem, size = 0x8000, scoped, tag = 'operand span for operand 1']
    loop: start=0, step=1, limit=10
    $region2: #{custom-call.6} parent=1 // loop_pre_header
      _
    $region3: #{custom-call.6} parent=1 // loop_header
      %s3 = sphi 0, %s7
      %p4 = scmp.ge.s32.totalorder %s3, 10
      %s10 = sphi 0, %s36
      %s11 = sphi 0, %s32
      %s12 = sphi 0, %s28
      %s13 = sphi 0, %s24
      %s14 = sphi 0, %s10
      %s15 = sphi 0, %s11
      %s16 = sphi 0, %s12
      %s17 = sphi 0, %s13
      %s18 = sphi 0, %s14
      %s19 = sphi 0, %s15
      %s20 = sphi 0, %s16
      %s21 = sphi 0, %s17
    $region4: #{custom-call.6} parent=1 // loop_header_branch
      %6 = sbr.rel (%p4) target = $region8
    $region5: #{custom-call.6} parent=1 // loop_body
      %s8 = ssub.s32 %s3, 1
      %s9 = ssub.s32 %s3, 2
      %s22 = sadd.s32 1, %s13
      %p23 = scmp.ge.s32.totalorder %s22, 1
      %s24 = scalar_select %p23, 0, %s22
      %s25 = sadd.s32 1, %s12
      %s26 = scalar_select %p23, %s25, %s12
      %p27 = scmp.ge.s32.totalorder %s26, 1
      %s28 = scalar_select %p27, 0, %s26
      %s29 = sadd.s32 1, %s11
      %s30 = scalar_select %p27, %s29, %s11
      %p31 = scmp.ge.s32.totalorder %s30, 1
      %s32 = scalar_select %p31, 0, %s30
      %s33 = sadd.s32 1, %s10
      %s34 = scalar_select %p31, %s33, %s10
      %p35 = scmp.ge.s32.totalorder %s34, 8
      %s36 = scalar_select %p35, 0, %s34
      %p37 = scmp.le.s32.totalorder 1, %s3
      %p38 = scmp.lt.s32.totalorder %s3, 9
      %p39 = pnand %p37, %p38
      %p40 = pneg %p39
      // Predicated region
      $region9: #{custom-call.6} parent=5 // pred_check
        _
      $region10: #{custom-call.6} parent=5 // pred_check_branch
        %42 = sbr.rel (%p39) target = $region12
      $region11: #{custom-call.6} parent=5 // pred_region
        %s43 = ssub.s32 %s3, 1
      $region12: #{custom-call.6} parent=5 // pred_fallthru
        _
      %p44 = scmp.lt.s32.totalorder %s3, 8
      // Predicated region
      $region13: #{custom-call.6} parent=5 // pred_check
        %p45 = pneg %p44
      $region14: #{custom-call.6} parent=5 // pred_check_branch
        %47 = sbr.rel (%p45) target = $region16
      $region15: #{custom-call.6} parent=5 // pred_region
        %s48 = sand.u32 %s3, 1
        %s49 = sand.u32 %s3, 1
        %s50 = smul.addr %s49, 32
        %s51 = scalar_lea.vmem [#allocation0], %s50
        %s52 = sadd.s32 %s13, %s12
        %s53 = smul.addr %s11, 4
        %s54 = sadd.s32 %s52, %s53
        %s55 = smul.addr %s10, 4
        %s56 = sadd.s32 %s54, %s55
        %s57 = smul.addr %s56, 8
        %s58 = scalar_lea.vmem %s0, %s57
        // Predicated region
        $region17: #{custom-call.6} parent=15 // pred_check
          _
        $region18: #{custom-call.6} parent=15 // pred_check_branch
          %60 = sbr.rel (0) target = $region20
        $region19: #{custom-call.6} parent=15 // pred_region
          // Predicated region
          $region21: #{custom-call.6} parent=19 // pred_check
            _
          $region22: #{custom-call.6} parent=19 // pred_check_branch
            %62 = sbr.rel (0) target = $region24
          $region23: #{custom-call.6} parent=19 // pred_region
            // Predicated region
            $region36: #{custom-call.6} parent=23 // pred_check
              _
            $region37: #{custom-call.6} parent=23 // pred_check_branch
              %84 = sbr.rel (0) target = $region39
            $region38: #{custom-call.6} parent=23 // pred_region
              loop: start=0, step=1, limit=1
              $region40: #{custom-call.6} parent=38 // loop_pre_header
                _
              $region41: #{custom-call.6} parent=38 // loop_header
                %s86 = sphi 0, %s90
                %p87 = scmp.ge.s32.totalorder %s86, 1
                %s91 = sphi %s58, %s58
                %s92 = sphi %s51, %s51
              $region42: #{custom-call.6} parent=38 // loop_header_branch
                %89 = sbr.rel (%p87) target = $region46
              $region43: #{custom-call.6} parent=38 // loop_body
                %v93 = vld [vmem:[%s91] sm:$0xff]
                %94 = vst [vmem:[%s92] sm:$0xff] %v93
                %v95 = vld [vmem:[%s91 + $0x8] sm:$0xff]
                %96 = vst [vmem:[%s92 + $0x8] sm:$0xff] %v95
                %v97 = vld [vmem:[%s91 + $0x10] sm:$0xff]
                %98 = vst [vmem:[%s92 + $0x10] sm:$0xff] %v97
                %v99 = vld [vmem:[%s91 + $0x18] sm:$0xff]
                %100 = vst [vmem:[%s92 + $0x18] sm:$0xff] %v99
              $region44: #{custom-call.6} parent=38 // loop_footer
                %s90 = sadd.s32 1, %s86
              $region45: #{custom-call.6} parent=38 // loop_footer_branch
                %85 = sbr.rel target = $region41
              $region46: #{custom-call.6} parent=38 // loop_exit
                _
            $region39: #{custom-call.6} parent=23 // pred_fallthru
              _
            // Predicated region
            $region47: #{custom-call.6} parent=23 // pred_check
              _
            $region48: #{custom-call.6} parent=23 // pred_check_branch
              %102 = sbr.rel target = $region50
            $region49: #{custom-call.6} parent=23 // pred_region
              _
            $region50: #{custom-call.6} parent=23 // pred_fallthru
              _
          $region24: #{custom-call.6} parent=19 // pred_fallthru
            _
          // Predicated region
          $region25: #{custom-call.6} parent=19 // pred_check
            _
          $region26: #{custom-call.6} parent=19 // pred_check_branch
            %64 = sbr.rel target = $region28
          $region27: #{custom-call.6} parent=19 // pred_region
            %s66 = ssub.s32 256, 1
            loop: start=0, step=1, limit=1
            $region29: #{custom-call.6} parent=27 // loop_pre_header
              _
            $region30: #{custom-call.6} parent=27 // loop_header
              %s68 = sphi 0, %s72
              %p69 = scmp.ge.s32.totalorder %s68, 1
              %s73 = sphi %s58, %s58
              %s74 = sphi %s51, %s51
            $region31: #{custom-call.6} parent=27 // loop_header_branch
              %71 = sbr.rel (%p69) target = $region35
            $region32: #{custom-call.6} parent=27 // loop_body
              %v75 = vld [vmem:[%s73] sm:%s66]
              %76 = vst [vmem:[%s74] sm:%s66] %v75
              %v77 = vld [vmem:[%s73 + $0x8] sm:%s66]
              %78 = vst [vmem:[%s74 + $0x8] sm:%s66] %v77
              %v79 = vld [vmem:[%s73 + $0x10] sm:%s66]
              %80 = vst [vmem:[%s74 + $0x10] sm:%s66] %v79
              %v81 = vld [vmem:[%s73 + $0x18] sm:%s66]
              %82 = vst [vmem:[%s74 + $0x18] sm:%s66] %v81
            $region33: #{custom-call.6} parent=27 // loop_footer
              %s72 = sadd.s32 1, %s68
            $region34: #{custom-call.6} parent=27 // loop_footer_branch
              %67 = sbr.rel target = $region30
            $region35: #{custom-call.6} parent=27 // loop_exit
              _
          $region28: #{custom-call.6} parent=19 // pred_fallthru
            _
        $region20: #{custom-call.6} parent=15 // pred_fallthru
          _
        %103 = vnop
      $region16: #{custom-call.6} parent=5 // pred_fallthru
        _
      %p104 = scmp.le.s32.totalorder 1, %s3
      %p105 = scmp.lt.s32.totalorder %s3, 9
      %p106 = pnand %p104, %p105
      %p107 = pneg %p106
      // Predicated region
      $region51: #{custom-call.6} parent=5 // pred_check
        _
      $region52: #{custom-call.6} parent=5 // pred_check_branch
        %109 = sbr.rel (%p106) target = $region54
      $region53: #{custom-call.6} parent=5 // pred_region
        #allocation2 [shape = 'f32[28,28]{1,0}', space=vmem, size = 0x4000, scoped, tag = 'rescaled input a']
        %s110 = ssub.s32 %s3, 1
        %s111 = sand.u32 %s8, 1
        %s112 = sand.u32 %s8, 1
        %s113 = smul.addr %s112, 32
        %s114 = scalar_lea.vmem [#allocation0], %s113
        %s115 = sand.u32 %s8, 1
        %s116 = sand.u32 %s8, 1
        %s117 = smul.addr %s116, 32
        %s118 = scalar_lea.vmem [#allocation0], %s117
        %s119 = sand.u32 %s8, 1
        %s120 = sand.u32 %s8, 1
        %s121 = smul.addr %s120, 32
        %s122 = scalar_lea.vmem [#allocation1], %s121
        %v123 = vlaneseq
        %v124 = vand.u32 %v123, 127
        %vm125 = vcmp.lt.s32.totalorder %v124, 28
        %v126 = vlaneseq
        %v127 = vshrl.u32 %v126, 7
        %vm129 = vcmp.eq.s32.totalorder %v127, %v124
        %v130 = vld [vmem:[%s114] sm:$0xff]
        %v131 = vsel %vm129, %v130, 0.0
        %132 = vadd.xlane.f32.xlu0 %v131
        %v133 = vpop.xlane.xlu0 %132
        %vm134 = vcmp.ge.s32.totalorder %v127, %v124
        %vm135 = vmand %vm134, %vm125
        %v136 = vsel %vm135, %v130, 0.0
        %v137 = vrcp.pop %v133
        %v138 = vmul.f32 %v136, %v137
        %139 = vst [vmem:[#allocation2] sm:$0xff] %v138
        %s140 = scalar_lea.vmem %s114, 8 [#allocation0]
        %s141 = scalar_lea.vmem [#allocation2], 8
        %v142 = vlaneseq
        %v143 = vshrl.u32 %v142, 7
        %v144 = vadd.s32 %v143, 8
        %vm145 = vcmp.eq.s32.totalorder %v144, %v124
        %v146 = vld [vmem:[%s140] sm:$0xff]
        %v147 = vsel %vm145, %v146, 0.0
        %148 = vadd.xlane.f32.xlu0 %v147
        %v149 = vpop.xlane.xlu0 %148
        %vm150 = vcmp.ge.s32.totalorder %v144, %v124
        %vm151 = vmand %vm150, %vm125
        %v152 = vsel %vm151, %v146, 0.0
        %v153 = vrcp.pop %v149
        %v154 = vmul.f32 %v152, %v153
        %155 = vst [vmem:[%s141] sm:$0xff] %v154
        %s156 = scalar_lea.vmem %s114, 16 [#allocation0]
        %s157 = scalar_lea.vmem [#allocation2], 16
        %v158 = vlaneseq
        %v159 = vshrl.u32 %v158, 7
        %v160 = vadd.s32 %v159, 16
        %vm161 = vcmp.eq.s32.totalorder %v160, %v124
        %v162 = vld [vmem:[%s156] sm:$0xff]
        %v163 = vsel %vm161, %v162, 0.0
        %164 = vadd.xlane.f32.xlu0 %v163
        %v165 = vpop.xlane.xlu0 %164
        %vm166 = vcmp.ge.s32.totalorder %v160, %v124
        %vm167 = vmand %vm166, %vm125
        %v168 = vsel %vm167, %v162, 0.0
        %v169 = vrcp.pop %v165
        %v170 = vmul.f32 %v168, %v169
        %171 = vst [vmem:[%s157] sm:$0xff] %v170
        %s172 = scalar_lea.vmem %s114, 24 [#allocation0]
        %s173 = scalar_lea.vmem [#allocation2], 24
        %v174 = vlaneseq
        %v175 = vshrl.u32 %v174, 7
        %v176 = vadd.s32 %v175, 24
        %vm177 = vcmp.eq.s32.totalorder %v176, %v124
        %v178 = vld [vmem:[%s172] sm:$0xff]
        %v179 = vsel %vm177, %v178, 0.0
        %180 = vadd.xlane.f32.xlu0 %v179
        %v181 = vpop.xlane.xlu0 %180
        %vm182 = vcmp.ge.s32.totalorder %v176, %v124
        %vm183 = vmand %vm182, %vm125
        %v184 = vsel %vm183, %v178, 0.0
        %v185 = vrcp.pop %v181
        %v186 = vmul.f32 %v184, %v185
        %187 = vst [vmem:[%s173] sm:$0xff] %v186
        %v188 = vlaneseq
        %v189 = vand.u32 %v188, 127
        %v190 = vlaneseq
        %v191 = vshrl.u32 %v190, 7
        %vm193 = vcmp.eq.s32.totalorder %v189, %v191
        %v194 = vlaneseq
        %v195 = vand.u32 %v194, 127
        %vm196 = vcmp.eq.s32.totalorder %v195, 0
        %v197 = vsel %vm196, 1.0, -1.0
        %v198 = vsel %vm193, %v197, 0.0
        %v199 = vlaneseq
        %v200 = vand.u32 %v199, 127
        %v201 = vlaneseq
        %v202 = vshrl.u32 %v201, 7
        %v203 = vadd.s32 %v202, 8
        %vm204 = vcmp.eq.s32.totalorder %v200, %v203
        %v205 = vsel %vm204, -1.0, 0.0
        %v206 = vlaneseq
        %v207 = vand.u32 %v206, 127
        %v208 = vlaneseq
        %v209 = vshrl.u32 %v208, 7
        %v210 = vadd.s32 %v209, 16
        %vm211 = vcmp.eq.s32.totalorder %v207, %v210
        %v212 = vsel %vm211, -1.0, 0.0
        %v213 = vlaneseq
        %v214 = vand.u32 %v213, 127
        %v215 = vlaneseq
        %v216 = vshrl.u32 %v215, 7
        %v217 = vadd.s32 %v216, 24
        %vm218 = vcmp.eq.s32.totalorder %v214, %v217
        %v219 = vsel %vm218, -1.0, 0.0
        %s220 = scalar_lea.vmem [#allocation2], 1
        %v221 = vld [vmem:[%s220] ss:$0 sm:$0xff]
        %v222 = vxor.u32 %v221, 2147483648
        %v223 = vlaneseq
        %v224 = vand.u32 %v223, 127
        %vm225 = vcmp.eq.s32.totalorder %v224, 1
        %v226 = vmul.f32 %v222, %v198
        %227 = vadd.xlane.f32.xlu0 %v226
        %v228 = vpop.xlane.xlu0 %227
        %v229 = vsel %vm225, %v228, %v198
        %s230 = scalar_lea.vmem [#allocation2], 2
        %v231 = vld [vmem:[%s230] ss:$0 sm:$0xff]
        %v232 = vxor.u32 %v231, 2147483648
        %v233 = vlaneseq
        %v234 = vand.u32 %v233, 127
        %vm235 = vcmp.eq.s32.totalorder %v234, 2
        %v236 = vmul.f32 %v232, %v229
        %237 = vadd.xlane.f32.xlu0 %v236
        %v238 = vpop.xlane.xlu0 %237
        %v239 = vsel %vm235, %v238, %v229
        %s240 = scalar_lea.vmem [#allocation2], 3
        %v241 = vld [vmem:[%s240] ss:$0 sm:$0xff]
        %v242 = vxor.u32 %v241, 2147483648
        %v243 = vlaneseq
        %v244 = vand.u32 %v243, 127
        %vm245 = vcmp.eq.s32.totalorder %v244, 3
        %v246 = vmul.f32 %v242, %v239
        %247 = vadd.xlane.f32.xlu0 %v246
        %v248 = vpop.xlane.xlu0 %247
        %v249 = vsel %vm245, %v248, %v239
        %s250 = scalar_lea.vmem [#allocation2], 4
        %v251 = vld [vmem:[%s250] ss:$0 sm:$0xff]
        %v252 = vxor.u32 %v251, 2147483648
        %v253 = vlaneseq
        %v254 = vand.u32 %v253, 127
        %vm255 = vcmp.eq.s32.totalorder %v254, 4
        %v256 = vmul.f32 %v252, %v249
        %257 = vadd.xlane.f32.xlu0 %v256
        %v258 = vpop.xlane.xlu0 %257
        %v259 = vsel %vm255, %v258, %v249
        %s260 = scalar_lea.vmem [#allocation2], 5
        %v261 = vld [vmem:[%s260] ss:$0 sm:$0xff]
        %v262 = vxor.u32 %v261, 2147483648
        %v263 = vlaneseq
        %v264 = vand.u32 %v263, 127
        %vm265 = vcmp.eq.s32.totalorder %v264, 5
        %v266 = vmul.f32 %v262, %v259
        %267 = vadd.xlane.f32.xlu0 %v266
        %v268 = vpop.xlane.xlu0 %267
        %v269 = vsel %vm265, %v268, %v259
        %s270 = scalar_lea.vmem [#allocation2], 6
        %v271 = vld [vmem:[%s270] ss:$0 sm:$0xff]
        %v272 = vxor.u32 %v271, 2147483648
        %v273 = vlaneseq
        %v274 = vand.u32 %v273, 127
        %vm275 = vcmp.eq.s32.totalorder %v274, 6
        %v276 = vmul.f32 %v272, %v269
        %277 = vadd.xlane.f32.xlu0 %v276
        %v278 = vpop.xlane.xlu0 %277
        %v279 = vsel %vm275, %v278, %v269
        %s280 = scalar_lea.vmem [#allocation2], 7
        %v281 = vld [vmem:[%s280] ss:$0 sm:$0xff]
        %v282 = vxor.u32 %v281, 2147483648
        %v283 = vlaneseq
        %v284 = vand.u32 %v283, 127
        %vm285 = vcmp.eq.s32.totalorder %v284, 7
        %v286 = vmul.f32 %v282, %v279
        %287 = vadd.xlane.f32.xlu0 %v286
        %v288 = vpop.xlane.xlu0 %287
        %v289 = vsel %vm285, %v288, %v279
        %s290 = scalar_lea.vmem [#allocation2], 8
        %v291 = vld [vmem:[%s290] ss:$0 sm:$0xff]
        %v292 = vxor.u32 %v291, 2147483648
        %v293 = vlaneseq
        %v294 = vand.u32 %v293, 127
        %vm295 = vcmp.eq.s32.totalorder %v294, 8
        %v296 = vmul.f32 %v292, %v289
        %297 = vadd.xlane.f32.xlu0 %v296
        %v298 = vpop.xlane.xlu0 %297
        %v299 = vsel %vm295, %v298, %v289
        %v300 = vmul.f32 %v292, %v205
        %301 = vadd.xlane.f32.xlu0 %v300
        %v302 = vpop.xlane.xlu0 %301
        %v303 = vsel %vm295, %v302, %v205
        %s304 = scalar_lea.vmem [#allocation2], 9
        %v305 = vld [vmem:[%s304] ss:$0 sm:$0xff]
        %v306 = vxor.u32 %v305, 2147483648
        %v307 = vlaneseq
        %v308 = vand.u32 %v307, 127
        %vm309 = vcmp.eq.s32.totalorder %v308, 9
        %v310 = vmul.f32 %v306, %v299
        %311 = vadd.xlane.f32.xlu0 %v310
        %v312 = vpop.xlane.xlu0 %311
        %v313 = vsel %vm309, %v312, %v299
        %v314 = vmul.f32 %v306, %v303
        %315 = vadd.xlane.f32.xlu0 %v314
        %v316 = vpop.xlane.xlu0 %315
        %v317 = vsel %vm309, %v316, %v303
        %s318 = scalar_lea.vmem [#allocation2], 10
        %v319 = vld [vmem:[%s318] ss:$0 sm:$0xff]
        %v320 = vxor.u32 %v319, 2147483648
        %v321 = vlaneseq
        %v322 = vand.u32 %v321, 127
        %vm323 = vcmp.eq.s32.totalorder %v322, 10
        %v324 = vmul.f32 %v320, %v313
        %325 = vadd.xlane.f32.xlu0 %v324
        %v326 = vpop.xlane.xlu0 %325
        %v327 = vsel %vm323, %v326, %v313
        %v328 = vmul.f32 %v320, %v317
        %329 = vadd.xlane.f32.xlu0 %v328
        %v330 = vpop.xlane.xlu0 %329
        %v331 = vsel %vm323, %v330, %v317
        %s332 = scalar_lea.vmem [#allocation2], 11
        %v333 = vld [vmem:[%s332] ss:$0 sm:$0xff]
        %v334 = vxor.u32 %v333, 2147483648
        %v335 = vlaneseq
        %v336 = vand.u32 %v335, 127
        %vm337 = vcmp.eq.s32.totalorder %v336, 11
        %v338 = vmul.f32 %v334, %v327
        %339 = vadd.xlane.f32.xlu0 %v338
        %v340 = vpop.xlane.xlu0 %339
        %v341 = vsel %vm337, %v340, %v327
        %v342 = vmul.f32 %v334, %v331
        %343 = vadd.xlane.f32.xlu0 %v342
        %v344 = vpop.xlane.xlu0 %343
        %v345 = vsel %vm337, %v344, %v331
        %s346 = scalar_lea.vmem [#allocation2], 12
        %v347 = vld [vmem:[%s346] ss:$0 sm:$0xff]
        %v348 = vxor.u32 %v347, 2147483648
        %v349 = vlaneseq
        %v350 = vand.u32 %v349, 127
        %vm351 = vcmp.eq.s32.totalorder %v350, 12
        %v352 = vmul.f32 %v348, %v341
        %353 = vadd.xlane.f32.xlu0 %v352
        %v354 = vpop.xlane.xlu0 %353
        %v355 = vsel %vm351, %v354, %v341
        %v356 = vmul.f32 %v348, %v345
        %357 = vadd.xlane.f32.xlu0 %v356
        %v358 = vpop.xlane.xlu0 %357
        %v359 = vsel %vm351, %v358, %v345
        %s360 = scalar_lea.vmem [#allocation2], 13
        %v361 = vld [vmem:[%s360] ss:$0 sm:$0xff]
        %v362 = vxor.u32 %v361, 2147483648
        %v363 = vlaneseq
        %v364 = vand.u32 %v363, 127
        %vm365 = vcmp.eq.s32.totalorder %v364, 13
        %v366 = vmul.f32 %v362, %v355
        %367 = vadd.xlane.f32.xlu0 %v366
        %v368 = vpop.xlane.xlu0 %367
        %v369 = vsel %vm365, %v368, %v355
        %v370 = vmul.f32 %v362, %v359
        %371 = vadd.xlane.f32.xlu0 %v370
        %v372 = vpop.xlane.xlu0 %371
        %v373 = vsel %vm365, %v372, %v359
        %s374 = scalar_lea.vmem [#allocation2], 14
        %v375 = vld [vmem:[%s374] ss:$0 sm:$0xff]
        %v376 = vxor.u32 %v375, 2147483648
        %v377 = vlaneseq
        %v378 = vand.u32 %v377, 127
        %vm379 = vcmp.eq.s32.totalorder %v378, 14
        %v380 = vmul.f32 %v376, %v369
        %381 = vadd.xlane.f32.xlu0 %v380
        %v382 = vpop.xlane.xlu0 %381
        %v383 = vsel %vm379, %v382, %v369
        %v384 = vmul.f32 %v376, %v373
        %385 = vadd.xlane.f32.xlu0 %v384
        %v386 = vpop.xlane.xlu0 %385
        %v387 = vsel %vm379, %v386, %v373
        %s388 = scalar_lea.vmem [#allocation2], 15
        %v389 = vld [vmem:[%s388] ss:$0 sm:$0xff]
        %v390 = vxor.u32 %v389, 2147483648
        %v391 = vlaneseq
        %v392 = vand.u32 %v391, 127
        %vm393 = vcmp.eq.s32.totalorder %v392, 15
        %v394 = vmul.f32 %v390, %v383
        %395 = vadd.xlane.f32.xlu0 %v394
        %v396 = vpop.xlane.xlu0 %395
        %v397 = vsel %vm393, %v396, %v383
        %v398 = vmul.f32 %v390, %v387
        %399 = vadd.xlane.f32.xlu0 %v398
        %v400 = vpop.xlane.xlu0 %399
        %v401 = vsel %vm393, %v400, %v387
        %s402 = scalar_lea.vmem [#allocation2], 16
        %v403 = vld [vmem:[%s402] ss:$0 sm:$0xff]
        %v404 = vxor.u32 %v403, 2147483648
        %v405 = vlaneseq
        %v406 = vand.u32 %v405, 127
        %vm407 = vcmp.eq.s32.totalorder %v406, 16
        %v408 = vmul.f32 %v404, %v397
        %409 = vadd.xlane.f32.xlu0 %v408
        %v410 = vpop.xlane.xlu0 %409
        %v411 = vsel %vm407, %v410, %v397
        %v412 = vmul.f32 %v404, %v401
        %413 = vadd.xlane.f32.xlu0 %v412
        %v414 = vpop.xlane.xlu0 %413
        %v415 = vsel %vm407, %v414, %v401
        %v416 = vmul.f32 %v404, %v212
        %417 = vadd.xlane.f32.xlu0 %v416
        %v418 = vpop.xlane.xlu0 %417
        %v419 = vsel %vm407, %v418, %v212
        %s420 = scalar_lea.vmem [#allocation2], 17
        %v421 = vld [vmem:[%s420] ss:$0 sm:$0xff]
        %v422 = vxor.u32 %v421, 2147483648
        %v423 = vlaneseq
        %v424 = vand.u32 %v423, 127
        %vm425 = vcmp.eq.s32.totalorder %v424, 17
        %v426 = vmul.f32 %v422, %v411
        %427 = vadd.xlane.f32.xlu0 %v426
        %v428 = vpop.xlane.xlu0 %427
        %v429 = vsel %vm425, %v428, %v411
        %v430 = vmul.f32 %v422, %v415
        %431 = vadd.xlane.f32.xlu0 %v430
        %v432 = vpop.xlane.xlu0 %431
        %v433 = vsel %vm425, %v432, %v415
        %v434 = vmul.f32 %v422, %v419
        %435 = vadd.xlane.f32.xlu0 %v434
        %v436 = vpop.xlane.xlu0 %435
        %v437 = vsel %vm425, %v436, %v419
        %s438 = scalar_lea.vmem [#allocation2], 18
        %v439 = vld [vmem:[%s438] ss:$0 sm:$0xff]
        %v440 = vxor.u32 %v439, 2147483648
        %v441 = vlaneseq
        %v442 = vand.u32 %v441, 127
        %vm443 = vcmp.eq.s32.totalorder %v442, 18
        %v444 = vmul.f32 %v440, %v429
        %445 = vadd.xlane.f32.xlu0 %v444
        %v446 = vpop.xlane.xlu0 %445
        %v447 = vsel %vm443, %v446, %v429
        %v448 = vmul.f32 %v440, %v433
        %449 = vadd.xlane.f32.xlu0 %v448
        %v450 = vpop.xlane.xlu0 %449
        %v451 = vsel %vm443, %v450, %v433
        %v452 = vmul.f32 %v440, %v437
        %453 = vadd.xlane.f32.xlu0 %v452
        %v454 = vpop.xlane.xlu0 %453
        %v455 = vsel %vm443, %v454, %v437
        %s456 = scalar_lea.vmem [#allocation2], 19
        %v457 = vld [vmem:[%s456] ss:$0 sm:$0xff]
        %v458 = vxor.u32 %v457, 2147483648
        %v459 = vlaneseq
        %v460 = vand.u32 %v459, 127
        %vm461 = vcmp.eq.s32.totalorder %v460, 19
        %v462 = vmul.f32 %v458, %v447
        %463 = vadd.xlane.f32.xlu0 %v462
        %v464 = vpop.xlane.xlu0 %463
        %v465 = vsel %vm461, %v464, %v447
        %v466 = vmul.f32 %v458, %v451
        %467 = vadd.xlane.f32.xlu0 %v466
        %v468 = vpop.xlane.xlu0 %467
        %v469 = vsel %vm461, %v468, %v451
        %v470 = vmul.f32 %v458, %v455
        %471 = vadd.xlane.f32.xlu0 %v470
        %v472 = vpop.xlane.xlu0 %471
        %v473 = vsel %vm461, %v472, %v455
        %s474 = scalar_lea.vmem [#allocation2], 20
        %v475 = vld [vmem:[%s474] ss:$0 sm:$0xff]
        %v476 = vxor.u32 %v475, 2147483648
        %v477 = vlaneseq
        %v478 = vand.u32 %v477, 127
        %vm479 = vcmp.eq.s32.totalorder %v478, 20
        %v480 = vmul.f32 %v476, %v465
        %481 = vadd.xlane.f32.xlu0 %v480
        %v482 = vpop.xlane.xlu0 %481
        %v483 = vsel %vm479, %v482, %v465
        %v484 = vmul.f32 %v476, %v469
        %485 = vadd.xlane.f32.xlu0 %v484
        %v486 = vpop.xlane.xlu0 %485
        %v487 = vsel %vm479, %v486, %v469
        %v488 = vmul.f32 %v476, %v473
        %489 = vadd.xlane.f32.xlu0 %v488
        %v490 = vpop.xlane.xlu0 %489
        %v491 = vsel %vm479, %v490, %v473
        %s492 = scalar_lea.vmem [#allocation2], 21
        %v493 = vld [vmem:[%s492] ss:$0 sm:$0xff]
        %v494 = vxor.u32 %v493, 2147483648
        %v495 = vlaneseq
        %v496 = vand.u32 %v495, 127
        %vm497 = vcmp.eq.s32.totalorder %v496, 21
        %v498 = vmul.f32 %v494, %v483
        %499 = vadd.xlane.f32.xlu0 %v498
        %v500 = vpop.xlane.xlu0 %499
        %v501 = vsel %vm497, %v500, %v483
        %v502 = vmul.f32 %v494, %v487
        %503 = vadd.xlane.f32.xlu0 %v502
        %v504 = vpop.xlane.xlu0 %503
        %v505 = vsel %vm497, %v504, %v487
        %v506 = vmul.f32 %v494, %v491
        %507 = vadd.xlane.f32.xlu0 %v506
        %v508 = vpop.xlane.xlu0 %507
        %v509 = vsel %vm497, %v508, %v491
        %s510 = scalar_lea.vmem [#allocation2], 22
        %v511 = vld [vmem:[%s510] ss:$0 sm:$0xff]
        %v512 = vxor.u32 %v511, 2147483648
        %v513 = vlaneseq
        %v514 = vand.u32 %v513, 127
        %vm515 = vcmp.eq.s32.totalorder %v514, 22
        %v516 = vmul.f32 %v512, %v501
        %517 = vadd.xlane.f32.xlu0 %v516
        %v518 = vpop.xlane.xlu0 %517
        %v519 = vsel %vm515, %v518, %v501
        %v520 = vmul.f32 %v512, %v505
        %521 = vadd.xlane.f32.xlu0 %v520
        %v522 = vpop.xlane.xlu0 %521
        %v523 = vsel %vm515, %v522, %v505
        %v524 = vmul.f32 %v512, %v509
        %525 = vadd.xlane.f32.xlu0 %v524
        %v526 = vpop.xlane.xlu0 %525
        %v527 = vsel %vm515, %v526, %v509
        %s528 = scalar_lea.vmem [#allocation2], 23
        %v529 = vld [vmem:[%s528] ss:$0 sm:$0xff]
        %v530 = vxor.u32 %v529, 2147483648
        %v531 = vlaneseq
        %v532 = vand.u32 %v531, 127
        %vm533 = vcmp.eq.s32.totalorder %v532, 23
        %v534 = vmul.f32 %v530, %v519
        %535 = vadd.xlane.f32.xlu0 %v534
        %v536 = vpop.xlane.xlu0 %535
        %v537 = vsel %vm533, %v536, %v519
        %v538 = vmul.f32 %v530, %v523
        %539 = vadd.xlane.f32.xlu0 %v538
        %v540 = vpop.xlane.xlu0 %539
        %v541 = vsel %vm533, %v540, %v523
        %v542 = vmul.f32 %v530, %v527
        %543 = vadd.xlane.f32.xlu0 %v542
        %v544 = vpop.xlane.xlu0 %543
        %v545 = vsel %vm533, %v544, %v527
        %s546 = scalar_lea.vmem [#allocation2], 24
        %v547 = vld [vmem:[%s546] ss:$0 sm:$0xff]
        %v548 = vxor.u32 %v547, 2147483648
        %v549 = vlaneseq
        %v550 = vand.u32 %v549, 127
        %vm551 = vcmp.eq.s32.totalorder %v550, 24
        %v552 = vmul.f32 %v548, %v537
        %553 = vadd.xlane.f32.xlu0 %v552
        %v554 = vpop.xlane.xlu0 %553
        %v555 = vsel %vm551, %v554, %v537
        %v556 = vmul.f32 %v548, %v541
        %557 = vadd.xlane.f32.xlu0 %v556
        %v558 = vpop.xlane.xlu0 %557
        %v559 = vsel %vm551, %v558, %v541
        %v560 = vmul.f32 %v548, %v545
        %561 = vadd.xlane.f32.xlu0 %v560
        %v562 = vpop.xlane.xlu0 %561
        %v563 = vsel %vm551, %v562, %v545
        %v564 = vmul.f32 %v548, %v219
        %565 = vadd.xlane.f32.xlu0 %v564
        %v566 = vpop.xlane.xlu0 %565
        %v567 = vsel %vm551, %v566, %v219
        %s568 = scalar_lea.vmem [#allocation2], 25
        %v569 = vld [vmem:[%s568] ss:$0 sm:$0xff]
        %v570 = vxor.u32 %v569, 2147483648
        %v571 = vlaneseq
        %v572 = vand.u32 %v571, 127
        %vm573 = vcmp.eq.s32.totalorder %v572, 25
        %v574 = vmul.f32 %v570, %v555
        %575 = vadd.xlane.f32.xlu0 %v574
        %v576 = vpop.xlane.xlu0 %575
        %v577 = vsel %vm573, %v576, %v555
        %v578 = vmul.f32 %v570, %v559
        %579 = vadd.xlane.f32.xlu0 %v578
        %v580 = vpop.xlane.xlu0 %579
        %v581 = vsel %vm573, %v580, %v559
        %v582 = vmul.f32 %v570, %v563
        %583 = vadd.xlane.f32.xlu0 %v582
        %v584 = vpop.xlane.xlu0 %583
        %v585 = vsel %vm573, %v584, %v563
        %v586 = vmul.f32 %v570, %v567
        %587 = vadd.xlane.f32.xlu0 %v586
        %v588 = vpop.xlane.xlu0 %587
        %v589 = vsel %vm573, %v588, %v567
        %s590 = scalar_lea.vmem [#allocation2], 26
        %v591 = vld [vmem:[%s590] ss:$0 sm:$0xff]
        %v592 = vxor.u32 %v591, 2147483648
        %v593 = vlaneseq
        %v594 = vand.u32 %v593, 127
        %vm595 = vcmp.eq.s32.totalorder %v594, 26
        %v596 = vmul.f32 %v592, %v577
        %597 = vadd.xlane.f32.xlu0 %v596
        %v598 = vpop.xlane.xlu0 %597
        %v599 = vsel %vm595, %v598, %v577
        %v600 = vmul.f32 %v592, %v581
        %601 = vadd.xlane.f32.xlu0 %v600
        %v602 = vpop.xlane.xlu0 %601
        %v603 = vsel %vm595, %v602, %v581
        %v604 = vmul.f32 %v592, %v585
        %605 = vadd.xlane.f32.xlu0 %v604
        %v606 = vpop.xlane.xlu0 %605
        %v607 = vsel %vm595, %v606, %v585
        %v608 = vmul.f32 %v592, %v589
        %609 = vadd.xlane.f32.xlu0 %v608
        %v610 = vpop.xlane.xlu0 %609
        %v611 = vsel %vm595, %v610, %v589
        %s612 = scalar_lea.vmem [#allocation2], 27
        %v613 = vld [vmem:[%s612] ss:$0 sm:$0xff]
        %v614 = vxor.u32 %v613, 2147483648
        %v615 = vlaneseq
        %v616 = vand.u32 %v615, 127
        %vm617 = vcmp.eq.s32.totalorder %v616, 27
        %v618 = vmul.f32 %v614, %v599
        %619 = vadd.xlane.f32.xlu0 %v618
        %v620 = vpop.xlane.xlu0 %619
        %v621 = vsel %vm617, %v620, %v599
        %v622 = vmul.f32 %v614, %v603
        %623 = vadd.xlane.f32.xlu0 %v622
        %v624 = vpop.xlane.xlu0 %623
        %v625 = vsel %vm617, %v624, %v603
        %v626 = vmul.f32 %v614, %v607
        %627 = vadd.xlane.f32.xlu0 %v626
        %v628 = vpop.xlane.xlu0 %627
        %v629 = vsel %vm617, %v628, %v607
        %v630 = vmul.f32 %v614, %v611
        %631 = vadd.xlane.f32.xlu0 %v630
        %v632 = vpop.xlane.xlu0 %631
        %v633 = vsel %vm617, %v632, %v611
        %v634 = vrcp.pop %v133
        %v635 = vmul.f32 %v621, %v634
        %vm636 = vweird.f32 %v133
        %v637 = vsel %vm636, %v621, %v635
        %638 = vst [vmem:[%s122] sm:$0xff] %v637
        %v639 = vrcp.pop %v149
        %v640 = vmul.f32 %v625, %v639
        %vm641 = vweird.f32 %v149
        %v642 = vsel %vm641, %v625, %v640
        %s643 = scalar_lea.vmem %s122, 8 [#allocation1]
        %644 = vst [vmem:[%s643] sm:$0xff] %v642
        %v645 = vrcp.pop %v165
        %v646 = vmul.f32 %v629, %v645
        %vm647 = vweird.f32 %v165
        %v648 = vsel %vm647, %v629, %v646
        %s649 = scalar_lea.vmem %s122, 16 [#allocation1]
        %650 = vst [vmem:[%s649] sm:$0xff] %v648
        %v651 = vrcp.pop %v181
        %v652 = vmul.f32 %v633, %v651
        %vm653 = vweird.f32 %v181
        %v654 = vsel %vm653, %v633, %v652
        %s655 = scalar_lea.vmem %s122, 24 [#allocation1]
        %656 = vst [vmem:[%s655] sm:$0xff] %v654
        %s657 = sand.u32 %s8, 1
        %s658 = sand.u32 %s8, 1
        %s659 = smul.addr %s658, 32
        %s660 = scalar_lea.vmem [#allocation1], %s659
        %s661 = sadd.s32 %s17, %s16
        %s662 = smul.addr %s15, 4
        %s663 = sadd.s32 %s661, %s662
        %s664 = smul.addr %s14, 4
        %s665 = sadd.s32 %s663, %s664
        %s666 = smul.addr %s665, 8
        %s667 = scalar_lea.vmem %s1, %s666
        // Predicated region
        $region55: #{custom-call.6} parent=53 // pred_check
          _
        $region56: #{custom-call.6} parent=53 // pred_check_branch
          %669 = sbr.rel (0) target = $region58
        $region57: #{custom-call.6} parent=53 // pred_region
          // Predicated region
          $region59: #{custom-call.6} parent=57 // pred_check
            _
          $region60: #{custom-call.6} parent=57 // pred_check_branch
            %671 = sbr.rel (0) target = $region62
          $region61: #{custom-call.6} parent=57 // pred_region
            // Predicated region
            $region74: #{custom-call.6} parent=61 // pred_check
              _
            $region75: #{custom-call.6} parent=61 // pred_check_branch
              %693 = sbr.rel (0) target = $region77
            $region76: #{custom-call.6} parent=61 // pred_region
              loop: start=0, step=1, limit=1
              $region78: #{custom-call.6} parent=76 // loop_pre_header
                _
              $region79: #{custom-call.6} parent=76 // loop_header
                %s695 = sphi 0, %s699
                %p696 = scmp.ge.s32.totalorder %s695, 1
                %s700 = sphi %s660, %s660
                %s701 = sphi %s667, %s667
              $region80: #{custom-call.6} parent=76 // loop_header_branch
                %698 = sbr.rel (%p696) target = $region84
              $region81: #{custom-call.6} parent=76 // loop_body
                %v702 = vld [vmem:[%s700] sm:$0xff]
                %703 = vst [vmem:[%s701] sm:$0xff] %v702
                %v704 = vld [vmem:[%s700 + $0x8] sm:$0xff]
                %705 = vst [vmem:[%s701 + $0x8] sm:$0xff] %v704
                %v706 = vld [vmem:[%s700 + $0x10] sm:$0xff]
                %707 = vst [vmem:[%s701 + $0x10] sm:$0xff] %v706
                %v708 = vld [vmem:[%s700 + $0x18] sm:$0xff]
                %709 = vst [vmem:[%s701 + $0x18] sm:$0xff] %v708
              $region82: #{custom-call.6} parent=76 // loop_footer
                %s699 = sadd.s32 1, %s695
              $region83: #{custom-call.6} parent=76 // loop_footer_branch
                %694 = sbr.rel target = $region79
              $region84: #{custom-call.6} parent=76 // loop_exit
                _
            $region77: #{custom-call.6} parent=61 // pred_fallthru
              _
            // Predicated region
            $region85: #{custom-call.6} parent=61 // pred_check
              _
            $region86: #{custom-call.6} parent=61 // pred_check_branch
              %711 = sbr.rel target = $region88
            $region87: #{custom-call.6} parent=61 // pred_region
              _
            $region88: #{custom-call.6} parent=61 // pred_fallthru
              _
          $region62: #{custom-call.6} parent=57 // pred_fallthru
            _
          // Predicated region
          $region63: #{custom-call.6} parent=57 // pred_check
            _
          $region64: #{custom-call.6} parent=57 // pred_check_branch
            %673 = sbr.rel target = $region66
          $region65: #{custom-call.6} parent=57 // pred_region
            %s675 = ssub.s32 256, 1
            loop: start=0, step=1, limit=1
            $region67: #{custom-call.6} parent=65 // loop_pre_header
              _
            $region68: #{custom-call.6} parent=65 // loop_header
              %s677 = sphi 0, %s681
              %p678 = scmp.ge.s32.totalorder %s677, 1
              %s682 = sphi %s660, %s660
              %s683 = sphi %s667, %s667
            $region69: #{custom-call.6} parent=65 // loop_header_branch
              %680 = sbr.rel (%p678) target = $region73
            $region70: #{custom-call.6} parent=65 // loop_body
              %v684 = vld [vmem:[%s682] sm:%s675]
              %685 = vst [vmem:[%s683] sm:%s675] %v684
              %v686 = vld [vmem:[%s682 + $0x8] sm:%s675]
              %687 = vst [vmem:[%s683 + $0x8] sm:%s675] %v686
              %v688 = vld [vmem:[%s682 + $0x10] sm:%s675]
              %689 = vst [vmem:[%s683 + $0x10] sm:%s675] %v688
              %v690 = vld [vmem:[%s682 + $0x18] sm:%s675]
              %691 = vst [vmem:[%s683 + $0x18] sm:%s675] %v690
            $region71: #{custom-call.6} parent=65 // loop_footer
              %s681 = sadd.s32 1, %s677
            $region72: #{custom-call.6} parent=65 // loop_footer_branch
              %676 = sbr.rel target = $region68
            $region73: #{custom-call.6} parent=65 // loop_exit
              _
          $region66: #{custom-call.6} parent=57 // pred_fallthru
            _
        $region58: #{custom-call.6} parent=53 // pred_fallthru
          _
        %712 = vnop
      $region54: #{custom-call.6} parent=5 // pred_fallthru
        _
      %p713 = scmp.le.s32.totalorder 2, %s3
      // Predicated region
      $region89: #{custom-call.6} parent=5 // pred_check
        %p714 = pneg %p713
      $region90: #{custom-call.6} parent=5 // pred_check_branch
        %716 = sbr.rel (%p714) target = $region92
      $region91: #{custom-call.6} parent=5 // pred_region
        %s717 = ssub.s32 %s3, 2
        %s718 = sand.u32 %s9, 1
        %s719 = sand.u32 %s9, 1
        %s720 = smul.addr %s719, 32
        %s721 = scalar_lea.vmem [#allocation1], %s720
      $region92: #{custom-call.6} parent=5 // pred_fallthru
        _
    $region6: #{custom-call.6} parent=1 // loop_footer
      %s7 = sadd.s32 1, %s3
    $region7: #{custom-call.6} parent=1 // loop_footer_branch
      %2 = sbr.rel target = $region3
    $region8: #{custom-call.6} parent=1 // loop_exit
      _

// kernel: elm_ae_forward.5
$region0: #{elm_ae_forward.5}
  #allocation0 [shape = 'u32[]', space=smem, size = 0x4, offset = 0x4, fixed_abs, tag = 'smem constant byte address 0x4 - core index']
  #allocation1 [shape = 'u32[144,128]{1,0:T(1,128)}', space=vmem, size = 0x12000, scoped, tag = 'internal scratch']
  %s0 = inlined_call_operand.vmem [shape: f32[8,28,128], index: 0, kind: input, shape index: {}]
  %s1 = inlined_call_operand.vmem [shape: f32[8,28,28], index: 1, kind: input, shape index: {}]
  %s2 = inlined_call_operand.vmem [shape: f32[8,28,128], index: 2, kind: output, shape index: {0}]
  %s3 = inlined_call_operand.vmem [shape: f32[8,28,28], index: 3, kind: output, shape index: {1}]
  %4 = xla_tuple %s2, %s3
  %s5 = sld [smem:[#allocation0]]
  $region26: #{elm_ae_forward.5} parent=0
    _
  %s7 = ssub.s32 1, %s5
  %s8 = scalar_select 0, %s7, %s5
  // Predicated region
  $region2: #{elm_ae_forward.5} parent=0 // pred_check
    _
  $region3: #{elm_ae_forward.5} parent=0 // pred_check_branch
    %10 = sbr.rel (0) target = $region5
  $region4: #{elm_ae_forward.5} parent=0 // pred_region
    _
  $region5: #{elm_ae_forward.5} parent=0 // pred_fallthru
    _
  // Predicated region
  $region6: #{elm_ae_forward.5} parent=0 // pred_check
    _
  $region7: #{elm_ae_forward.5} parent=0 // pred_check_branch
    %12 = sbr.rel (0) target = $region9
  $region8: #{elm_ae_forward.5} parent=0 // pred_region
    _
  $region9: #{elm_ae_forward.5} parent=0 // pred_fallthru
    _
  %v13 = vld [vmem:[%s0] sm:$0xff]
  %v14 = vld [vmem:[%s0 + $0x8] sm:$0xff]
  %v15 = vld [vmem:[%s0 + $0x10] sm:$0xff]
  %v16 = vld [vmem:[%s0 + $0x18] sm:$0xf]
  %v17 = vld [vmem:[%s0 + $0x20] sm:$0xff]
  %v18 = vld [vmem:[%s0 + $0x28] sm:$0xff]
  %v19 = vld [vmem:[%s0 + $0x30] sm:$0xff]
  %v20 = vld [vmem:[%s0 + $0x38] sm:$0xf]
  %v21 = vld [vmem:[%s0 + $0x40] sm:$0xff]
  %v22 = vld [vmem:[%s0 + $0x48] sm:$0xff]
  %v23 = vld [vmem:[%s0 + $0x50] sm:$0xff]
  %v24 = vld [vmem:[%s0 + $0x58] sm:$0xf]
  %v25 = vld [vmem:[%s0 + $0x60] sm:$0xff]
  %v26 = vld [vmem:[%s0 + $0x68] sm:$0xff]
  %v27 = vld [vmem:[%s0 + $0x70] sm:$0xff]
  %v28 = vld [vmem:[%s0 + $0x78] sm:$0xf]
  %v29 = vld [vmem:[%s0 + $0x80] sm:$0xff]
  %v30 = vld [vmem:[%s0 + $0x88] sm:$0xff]
  %v31 = vld [vmem:[%s0 + $0x90] sm:$0xff]
  %v32 = vld [vmem:[%s0 + $0x98] sm:$0xf]
  %v33 = vld [vmem:[%s0 + $0xa0] sm:$0xff]
  %v34 = vld [vmem:[%s0 + $0xa8] sm:$0xff]
  %v35 = vld [vmem:[%s0 + $0xb0] sm:$0xff]
  %v36 = vld [vmem:[%s0 + $0xb8] sm:$0xf]
  %v37 = vld [vmem:[%s0 + $0xc0] sm:$0xff]
  %v38 = vld [vmem:[%s0 + $0xc8] sm:$0xff]
  %v39 = vld [vmem:[%s0 + $0xd0] sm:$0xff]
  %v40 = vld [vmem:[%s0 + $0xd8] sm:$0xf]
  %v41 = vld [vmem:[%s0 + $0xe0] sm:$0xff]
  %v42 = vld [vmem:[%s0 + $0xe8] sm:$0xff]
  %v43 = vld [vmem:[%s0 + $0xf0] sm:$0xff]
  %v44 = vld [vmem:[%s0 + $0xf8] sm:$0xf]
  %v45 = vld [vmem:[%s1] sm:$0xff]
  %v46 = vld [vmem:[%s1 + $0x8] sm:$0xff]
  %v47 = vld [vmem:[%s1 + $0x10] sm:$0xff]
  %v48 = vld [vmem:[%s1 + $0x18] sm:$0xf]
  %v49 = vld [vmem:[%s1 + $0x20] sm:$0xff]
  %v50 = vld [vmem:[%s1 + $0x28] sm:$0xff]
  %v51 = vld [vmem:[%s1 + $0x30] sm:$0xff]
  %v52 = vld [vmem:[%s1 + $0x38] sm:$0xf]
  %v53 = vld [vmem:[%s1 + $0x40] sm:$0xff]
  %v54 = vld [vmem:[%s1 + $0x48] sm:$0xff]
  %v55 = vld [vmem:[%s1 + $0x50] sm:$0xff]
  %v56 = vld [vmem:[%s1 + $0x58] sm:$0xf]
  %v57 = vld [vmem:[%s1 + $0x60] sm:$0xff]
  %v58 = vld [vmem:[%s1 + $0x68] sm:$0xff]
  %v59 = vld [vmem:[%s1 + $0x70] sm:$0xff]
  %v60 = vld [vmem:[%s1 + $0x78] sm:$0xf]
  %v61 = vld [vmem:[%s1 + $0x80] sm:$0xff]
  %v62 = vld [vmem:[%s1 + $0x88] sm:$0xff]
  %v63 = vld [vmem:[%s1 + $0x90] sm:$0xff]
  %v64 = vld [vmem:[%s1 + $0x98] sm:$0xf]
  %v65 = vld [vmem:[%s1 + $0xa0] sm:$0xff]
  %v66 = vld [vmem:[%s1 + $0xa8] sm:$0xff]
  %v67 = vld [vmem:[%s1 + $0xb0] sm:$0xff]
  %v68 = vld [vmem:[%s1 + $0xb8] sm:$0xf]
  %v69 = vld [vmem:[%s1 + $0xc0] sm:$0xff]
  %v70 = vld [vmem:[%s1 + $0xc8] sm:$0xff]
  %v71 = vld [vmem:[%s1 + $0xd0] sm:$0xff]
  %v72 = vld [vmem:[%s1 + $0xd8] sm:$0xf]
  %v73 = vld [vmem:[%s1 + $0xe0] sm:$0xff]
  %v74 = vld [vmem:[%s1 + $0xe8] sm:$0xff]
  %v75 = vld [vmem:[%s1 + $0xf0] sm:$0xff]
  %v76 = vld [vmem:[%s1 + $0xf8] sm:$0xf]
  %vm77 = vcmask 228352
  %v79 = vsel %vm77, %v45, 0
  %v82 = vsel %vm77, %v46, 0
  %v85 = vsel %vm77, %v47, 0
  %v88 = vsel %vm77, %v48, 0
  %vm90 = vcmask 1043456
  %v92 = vsel %vm90, %v16, 0
  %94 = vmatprep.subr.mxu0 0.0
  %95 = vmatpush1.msra.mxu0 0.0
  %96 = vmatprep.subr.mxu0 0.0
  %97 = vmatpush1.msra.mxu0 0.0
  %98 = vmatprep.subr.mxu0 0.0
  %99 = vmatpush1.msra.mxu0 0.0
  %100 = vmatprep.subr.mxu0 0.0
  %101 = vmatpush1.msra.mxu0 0.0
  %102 = vmatprep.subr.mxu0 0.0
  %103 = vmatpush1.msra.mxu0 0.0
  %104 = vmatprep.subr.mxu0 0.0
  %105 = vmatpush1.msra.mxu0 0.0
  %106 = vmatprep.subr.mxu0 0.0
  %107 = vmatpush1.msra.mxu0 0.0
  %108 = vmatprep.subr.mxu0 0.0
  %109 = vmatpush1.msra.mxu0 0.0
  %110 = vmatprep.subr.mxu0 0.0
  %111 = vmatpush1.msra.mxu0 0.0
  %112 = vmatprep.subr.mxu0 0.0
  %113 = vmatpush1.msra.mxu0 0.0
  %114 = vmatprep.subr.mxu0 0.0
  %115 = vmatpush1.msra.mxu0 0.0
  %116 = vmatprep.subr.mxu0 0.0
  %117 = vmatpush1.msra.mxu0 0.0
  %118 = vmatprep.subr.mxu0 0.0
  %119 = vmatpush1.msra.mxu0 %v92
  %120 = vmatprep.subr.mxu0 0.0
  %121 = vmatpush1.msra.mxu0 %v15
  %122 = vmatprep.subr.mxu0 0.0
  %123 = vmatpush1.msra.mxu0 %v14
  %124 = vmatprep.subr.mxu0 0.0
  %125 = vmatpush1.msra.mxu0 %v13
  %126 = vmatprep.subr.mxu0 0.0
  %127 = vmatpush2.msra.mxu0 0.0
  %128 = vmatprep.subr.mxu0 0.0
  %129 = vmatpush2.msra.mxu0 0.0
  %130 = vmatprep.subr.mxu0 0.0
  %131 = vmatpush2.msra.mxu0 0.0
  %132 = vmatprep.subr.mxu0 0.0
  %133 = vmatpush2.msra.mxu0 0.0
  %134 = vmatprep.subr.mxu0 0.0
  %135 = vmatpush2.msra.mxu0 0.0
  %136 = vmatprep.subr.mxu0 0.0
  %137 = vmatpush2.msra.mxu0 0.0
  %138 = vmatprep.subr.mxu0 0.0
  %139 = vmatpush2.msra.mxu0 0.0
  %140 = vmatprep.subr.mxu0 0.0
  %141 = vmatpush2.msra.mxu0 0.0
  %142 = vmatprep.subr.mxu0 0.0
  %143 = vmatpush2.msra.mxu0 0.0
  %144 = vmatprep.subr.mxu0 0.0
  %145 = vmatpush2.msra.mxu0 0.0
  %146 = vmatprep.subr.mxu0 0.0
  %147 = vmatpush2.msra.mxu0 0.0
  %148 = vmatprep.subr.mxu0 0.0
  %149 = vmatpush2.msra.mxu0 0.0
  %150 = vmatprep.subr.mxu0 0.0
  %151 = vmatpush2.msra.mxu0 0.0
  %152 = vmatprep.subr.mxu0 0.0
  %153 = vmatpush2.msra.mxu0 0.0
  %154 = vmatprep.subr.mxu0 0.0
  %155 = vmatpush2.msra.mxu0 0.0
  %156 = vmatprep.subr.mxu0 0.0
  %157 = vmatpush2.msra.mxu0 0.0
  %158 = vmatprep.mubr.f32.mxu0 0.0
  %159 = vmatmul.mubr.f32.gmra.mxu0 %v79
  %v160 = vpop.f32.mrf.mxu0
  %v161 = vadd.f32 0.0, %v160
  %v162 = vpop.f32.mrf.mxu0
  %163 = vmatprep.mubr.f32.mxu0 0.0
  %164 = vmatmul.mubr.f32.gmra.mxu0 %v82
  %v165 = vpop.f32.mrf.mxu0
  %v166 = vadd.f32 0.0, %v165
  %v167 = vpop.f32.mrf.mxu0
  %168 = vmatprep.mubr.f32.mxu0 0.0
  %169 = vmatmul.mubr.f32.gmra.mxu0 %v85
  %v170 = vpop.f32.mrf.mxu0
  %v171 = vadd.f32 0.0, %v170
  %v172 = vpop.f32.mrf.mxu0
  %173 = vmatprep.mubr.f32.mxu0 0.0
  %174 = vmatmul.mubr.f32.gmra.mxu0 %v88
  %v175 = vpop.f32.mrf.mxu0
  %v176 = vadd.f32 0.0, %v175
  %v177 = vpop.f32.mrf.mxu0
  %178 = vdwg.mxu0
  %v180 = vsel %vm77, %v49, 0
  %v183 = vsel %vm77, %v50, 0
  %v186 = vsel %vm77, %v51, 0
  %v189 = vsel %vm77, %v52, 0
  %v192 = vsel %vm90, %v20, 0
  %194 = vmatprep.subr.mxu0 0.0
  %195 = vmatpush1.msra.mxu0 0.0
  %196 = vmatprep.subr.mxu0 0.0
  %197 = vmatpush1.msra.mxu0 0.0
  %198 = vmatprep.subr.mxu0 0.0
  %199 = vmatpush1.msra.mxu0 0.0
  %200 = vmatprep.subr.mxu0 0.0
  %201 = vmatpush1.msra.mxu0 0.0
  %202 = vmatprep.subr.mxu0 0.0
  %203 = vmatpush1.msra.mxu0 0.0
  %204 = vmatprep.subr.mxu0 0.0
  %205 = vmatpush1.msra.mxu0 0.0
  %206 = vmatprep.subr.mxu0 0.0
  %207 = vmatpush1.msra.mxu0 0.0
  %208 = vmatprep.subr.mxu0 0.0
  %209 = vmatpush1.msra.mxu0 0.0
  %210 = vmatprep.subr.mxu0 0.0
  %211 = vmatpush1.msra.mxu0 0.0
  %212 = vmatprep.subr.mxu0 0.0
  %213 = vmatpush1.msra.mxu0 0.0
  %214 = vmatprep.subr.mxu0 0.0
  %215 = vmatpush1.msra.mxu0 0.0
  %216 = vmatprep.subr.mxu0 0.0
  %217 = vmatpush1.msra.mxu0 0.0
  %218 = vmatprep.subr.mxu0 0.0
  %219 = vmatpush1.msra.mxu0 %v192
  %220 = vmatprep.subr.mxu0 0.0
  %221 = vmatpush1.msra.mxu0 %v19
  %222 = vmatprep.subr.mxu0 0.0
  %223 = vmatpush1.msra.mxu0 %v18
  %224 = vmatprep.subr.mxu0 0.0
  %225 = vmatpush1.msra.mxu0 %v17
  %226 = vmatprep.subr.mxu0 0.0
  %227 = vmatpush2.msra.mxu0 0.0
  %228 = vmatprep.subr.mxu0 0.0
  %229 = vmatpush2.msra.mxu0 0.0
  %230 = vmatprep.subr.mxu0 0.0
  %231 = vmatpush2.msra.mxu0 0.0
  %232 = vmatprep.subr.mxu0 0.0
  %233 = vmatpush2.msra.mxu0 0.0
  %234 = vmatprep.subr.mxu0 0.0
  %235 = vmatpush2.msra.mxu0 0.0
  %236 = vmatprep.subr.mxu0 0.0
  %237 = vmatpush2.msra.mxu0 0.0
  %238 = vmatprep.subr.mxu0 0.0
  %239 = vmatpush2.msra.mxu0 0.0
  %240 = vmatprep.subr.mxu0 0.0
  %241 = vmatpush2.msra.mxu0 0.0
  %242 = vmatprep.subr.mxu0 0.0
  %243 = vmatpush2.msra.mxu0 0.0
  %244 = vmatprep.subr.mxu0 0.0
  %245 = vmatpush2.msra.mxu0 0.0
  %246 = vmatprep.subr.mxu0 0.0
  %247 = vmatpush2.msra.mxu0 0.0
  %248 = vmatprep.subr.mxu0 0.0
  %249 = vmatpush2.msra.mxu0 0.0
  %250 = vmatprep.subr.mxu0 0.0
  %251 = vmatpush2.msra.mxu0 0.0
  %252 = vmatprep.subr.mxu0 0.0
  %253 = vmatpush2.msra.mxu0 0.0
  %254 = vmatprep.subr.mxu0 0.0
  %255 = vmatpush2.msra.mxu0 0.0
  %256 = vmatprep.subr.mxu0 0.0
  %257 = vmatpush2.msra.mxu0 0.0
  %258 = vmatprep.mubr.f32.mxu0 0.0
  %259 = vmatmul.mubr.f32.gmra.mxu0 %v180
  %v260 = vpop.f32.mrf.mxu0
  %v261 = vadd.f32 0.0, %v260
  %v262 = vpop.f32.mrf.mxu0
  %263 = vmatprep.mubr.f32.mxu0 0.0
  %264 = vmatmul.mubr.f32.gmra.mxu0 %v183
  %v265 = vpop.f32.mrf.mxu0
  %v266 = vadd.f32 0.0, %v265
  %v267 = vpop.f32.mrf.mxu0
  %268 = vmatprep.mubr.f32.mxu0 0.0
  %269 = vmatmul.mubr.f32.gmra.mxu0 %v186
  %v270 = vpop.f32.mrf.mxu0
  %v271 = vadd.f32 0.0, %v270
  %v272 = vpop.f32.mrf.mxu0
  %273 = vmatprep.mubr.f32.mxu0 0.0
  %274 = vmatmul.mubr.f32.gmra.mxu0 %v189
  %v275 = vpop.f32.mrf.mxu0
  %v276 = vadd.f32 0.0, %v275
  %v277 = vpop.f32.mrf.mxu0
  %278 = vdwg.mxu0
  %v280 = vsel %vm77, %v53, 0
  %v283 = vsel %vm77, %v54, 0
  %v286 = vsel %vm77, %v55, 0
  %v289 = vsel %vm77, %v56, 0
  %v292 = vsel %vm90, %v24, 0
  %294 = vmatprep.subr.mxu0 0.0
  %295 = vmatpush1.msra.mxu0 0.0
  %296 = vmatprep.subr.mxu0 0.0
  %297 = vmatpush1.msra.mxu0 0.0
  %298 = vmatprep.subr.mxu0 0.0
  %299 = vmatpush1.msra.mxu0 0.0
  %300 = vmatprep.subr.mxu0 0.0
  %301 = vmatpush1.msra.mxu0 0.0
  %302 = vmatprep.subr.mxu0 0.0
  %303 = vmatpush1.msra.mxu0 0.0
  %304 = vmatprep.subr.mxu0 0.0
  %305 = vmatpush1.msra.mxu0 0.0
  %306 = vmatprep.subr.mxu0 0.0
  %307 = vmatpush1.msra.mxu0 0.0
  %308 = vmatprep.subr.mxu0 0.0
  %309 = vmatpush1.msra.mxu0 0.0
  %310 = vmatprep.subr.mxu0 0.0
  %311 = vmatpush1.msra.mxu0 0.0
  %312 = vmatprep.subr.mxu0 0.0
  %313 = vmatpush1.msra.mxu0 0.0
  %314 = vmatprep.subr.mxu0 0.0
  %315 = vmatpush1.msra.mxu0 0.0
  %316 = vmatprep.subr.mxu0 0.0
  %317 = vmatpush1.msra.mxu0 0.0
  %318 = vmatprep.subr.mxu0 0.0
  %319 = vmatpush1.msra.mxu0 %v292
  %320 = vmatprep.subr.mxu0 0.0
  %321 = vmatpush1.msra.mxu0 %v23
  %322 = vmatprep.subr.mxu0 0.0
  %323 = vmatpush1.msra.mxu0 %v22
  %324 = vmatprep.subr.mxu0 0.0
  %325 = vmatpush1.msra.mxu0 %v21
  %326 = vmatprep.subr.mxu0 0.0
  %327 = vmatpush2.msra.mxu0 0.0
  %328 = vmatprep.subr.mxu0 0.0
  %329 = vmatpush2.msra.mxu0 0.0
  %330 = vmatprep.subr.mxu0 0.0
  %331 = vmatpush2.msra.mxu0 0.0
  %332 = vmatprep.subr.mxu0 0.0
  %333 = vmatpush2.msra.mxu0 0.0
  %334 = vmatprep.subr.mxu0 0.0
  %335 = vmatpush2.msra.mxu0 0.0
  %336 = vmatprep.subr.mxu0 0.0
  %337 = vmatpush2.msra.mxu0 0.0
  %338 = vmatprep.subr.mxu0 0.0
  %339 = vmatpush2.msra.mxu0 0.0
  %340 = vmatprep.subr.mxu0 0.0
  %341 = vmatpush2.msra.mxu0 0.0
  %342 = vmatprep.subr.mxu0 0.0
  %343 = vmatpush2.msra.mxu0 0.0
  %344 = vmatprep.subr.mxu0 0.0
  %345 = vmatpush2.msra.mxu0 0.0
  %346 = vmatprep.subr.mxu0 0.0
  %347 = vmatpush2.msra.mxu0 0.0
  %348 = vmatprep.subr.mxu0 0.0
  %349 = vmatpush2.msra.mxu0 0.0
  %350 = vmatprep.subr.mxu0 0.0
  %351 = vmatpush2.msra.mxu0 0.0
  %352 = vmatprep.subr.mxu0 0.0
  %353 = vmatpush2.msra.mxu0 0.0
  %354 = vmatprep.subr.mxu0 0.0
  %355 = vmatpush2.msra.mxu0 0.0
  %356 = vmatprep.subr.mxu0 0.0
  %357 = vmatpush2.msra.mxu0 0.0
  %358 = vmatprep.mubr.f32.mxu0 0.0
  %359 = vmatmul.mubr.f32.gmra.mxu0 %v280
  %v360 = vpop.f32.mrf.mxu0
  %v361 = vadd.f32 0.0, %v360
  %v362 = vpop.f32.mrf.mxu0
  %363 = vmatprep.mubr.f32.mxu0 0.0
  %364 = vmatmul.mubr.f32.gmra.mxu0 %v283
  %v365 = vpop.f32.mrf.mxu0
  %v366 = vadd.f32 0.0, %v365
  %v367 = vpop.f32.mrf.mxu0
  %368 = vmatprep.mubr.f32.mxu0 0.0
  %369 = vmatmul.mubr.f32.gmra.mxu0 %v286
  %v370 = vpop.f32.mrf.mxu0
  %v371 = vadd.f32 0.0, %v370
  %v372 = vpop.f32.mrf.mxu0
  %373 = vmatprep.mubr.f32.mxu0 0.0
  %374 = vmatmul.mubr.f32.gmra.mxu0 %v289
  %v375 = vpop.f32.mrf.mxu0
  %v376 = vadd.f32 0.0, %v375
  %v377 = vpop.f32.mrf.mxu0
  %378 = vdwg.mxu0
  %v380 = vsel %vm77, %v57, 0
  %v383 = vsel %vm77, %v58, 0
  %v386 = vsel %vm77, %v59, 0
  %v389 = vsel %vm77, %v60, 0
  %v392 = vsel %vm90, %v28, 0
  %394 = vmatprep.subr.mxu0 0.0
  %395 = vmatpush1.msra.mxu0 0.0
  %396 = vmatprep.subr.mxu0 0.0
  %397 = vmatpush1.msra.mxu0 0.0
  %398 = vmatprep.subr.mxu0 0.0
  %399 = vmatpush1.msra.mxu0 0.0
  %400 = vmatprep.subr.mxu0 0.0
  %401 = vmatpush1.msra.mxu0 0.0
  %402 = vmatprep.subr.mxu0 0.0
  %403 = vmatpush1.msra.mxu0 0.0
  %404 = vmatprep.subr.mxu0 0.0
  %405 = vmatpush1.msra.mxu0 0.0
  %406 = vmatprep.subr.mxu0 0.0
  %407 = vmatpush1.msra.mxu0 0.0
  %408 = vmatprep.subr.mxu0 0.0
  %409 = vmatpush1.msra.mxu0 0.0
  %410 = vmatprep.subr.mxu0 0.0
  %411 = vmatpush1.msra.mxu0 0.0
  %412 = vmatprep.subr.mxu0 0.0
  %413 = vmatpush1.msra.mxu0 0.0
  %414 = vmatprep.subr.mxu0 0.0
  %415 = vmatpush1.msra.mxu0 0.0
  %416 = vmatprep.subr.mxu0 0.0
  %417 = vmatpush1.msra.mxu0 0.0
  %418 = vmatprep.subr.mxu0 0.0
  %419 = vmatpush1.msra.mxu0 %v392
  %420 = vmatprep.subr.mxu0 0.0
  %421 = vmatpush1.msra.mxu0 %v27
  %422 = vmatprep.subr.mxu0 0.0
  %423 = vmatpush1.msra.mxu0 %v26
  %424 = vmatprep.subr.mxu0 0.0
  %425 = vmatpush1.msra.mxu0 %v25
  %426 = vmatprep.subr.mxu0 0.0
  %427 = vmatpush2.msra.mxu0 0.0
  %428 = vmatprep.subr.mxu0 0.0
  %429 = vmatpush2.msra.mxu0 0.0
  %430 = vmatprep.subr.mxu0 0.0
  %431 = vmatpush2.msra.mxu0 0.0
  %432 = vmatprep.subr.mxu0 0.0
  %433 = vmatpush2.msra.mxu0 0.0
  %434 = vmatprep.subr.mxu0 0.0
  %435 = vmatpush2.msra.mxu0 0.0
  %436 = vmatprep.subr.mxu0 0.0
  %437 = vmatpush2.msra.mxu0 0.0
  %438 = vmatprep.subr.mxu0 0.0
  %439 = vmatpush2.msra.mxu0 0.0
  %440 = vmatprep.subr.mxu0 0.0
  %441 = vmatpush2.msra.mxu0 0.0
  %442 = vmatprep.subr.mxu0 0.0
  %443 = vmatpush2.msra.mxu0 0.0
  %444 = vmatprep.subr.mxu0 0.0
  %445 = vmatpush2.msra.mxu0 0.0
  %446 = vmatprep.subr.mxu0 0.0
  %447 = vmatpush2.msra.mxu0 0.0
  %448 = vmatprep.subr.mxu0 0.0
  %449 = vmatpush2.msra.mxu0 0.0
  %450 = vmatprep.subr.mxu0 0.0
  %451 = vmatpush2.msra.mxu0 0.0
  %452 = vmatprep.subr.mxu0 0.0
  %453 = vmatpush2.msra.mxu0 0.0
  %454 = vmatprep.subr.mxu0 0.0
  %455 = vmatpush2.msra.mxu0 0.0
  %456 = vmatprep.subr.mxu0 0.0
  %457 = vmatpush2.msra.mxu0 0.0
  %458 = vmatprep.mubr.f32.mxu0 0.0
  %459 = vmatmul.mubr.f32.gmra.mxu0 %v380
  %v460 = vpop.f32.mrf.mxu0
  %v461 = vadd.f32 0.0, %v460
  %v462 = vpop.f32.mrf.mxu0
  %463 = vmatprep.mubr.f32.mxu0 0.0
  %464 = vmatmul.mubr.f32.gmra.mxu0 %v383
  %v465 = vpop.f32.mrf.mxu0
  %v466 = vadd.f32 0.0, %v465
  %v467 = vpop.f32.mrf.mxu0
  %468 = vmatprep.mubr.f32.mxu0 0.0
  %469 = vmatmul.mubr.f32.gmra.mxu0 %v386
  %v470 = vpop.f32.mrf.mxu0
  %v471 = vadd.f32 0.0, %v470
  %v472 = vpop.f32.mrf.mxu0
  %473 = vmatprep.mubr.f32.mxu0 0.0
  %474 = vmatmul.mubr.f32.gmra.mxu0 %v389
  %v475 = vpop.f32.mrf.mxu0
  %v476 = vadd.f32 0.0, %v475
  %v477 = vpop.f32.mrf.mxu0
  %478 = vdwg.mxu0
  %v480 = vsel %vm77, %v61, 0
  %v483 = vsel %vm77, %v62, 0
  %v486 = vsel %vm77, %v63, 0
  %v489 = vsel %vm77, %v64, 0
  %v492 = vsel %vm90, %v32, 0
  %494 = vmatprep.subr.mxu0 0.0
  %495 = vmatpush1.msra.mxu0 0.0
  %496 = vmatprep.subr.mxu0 0.0
  %497 = vmatpush1.msra.mxu0 0.0
  %498 = vmatprep.subr.mxu0 0.0
  %499 = vmatpush1.msra.mxu0 0.0
  %500 = vmatprep.subr.mxu0 0.0
  %501 = vmatpush1.msra.mxu0 0.0
  %502 = vmatprep.subr.mxu0 0.0
  %503 = vmatpush1.msra.mxu0 0.0
  %504 = vmatprep.subr.mxu0 0.0
  %505 = vmatpush1.msra.mxu0 0.0
  %506 = vmatprep.subr.mxu0 0.0
  %507 = vmatpush1.msra.mxu0 0.0
  %508 = vmatprep.subr.mxu0 0.0
  %509 = vmatpush1.msra.mxu0 0.0
  %510 = vmatprep.subr.mxu0 0.0
  %511 = vmatpush1.msra.mxu0 0.0
  %512 = vmatprep.subr.mxu0 0.0
  %513 = vmatpush1.msra.mxu0 0.0
  %514 = vmatprep.subr.mxu0 0.0
  %515 = vmatpush1.msra.mxu0 0.0
  %516 = vmatprep.subr.mxu0 0.0
  %517 = vmatpush1.msra.mxu0 0.0
  %518 = vmatprep.subr.mxu0 0.0
  %519 = vmatpush1.msra.mxu0 %v492
  %520 = vmatprep.subr.mxu0 0.0
  %521 = vmatpush1.msra.mxu0 %v31
  %522 = vmatprep.subr.mxu0 0.0
  %523 = vmatpush1.msra.mxu0 %v30
  %524 = vmatprep.subr.mxu0 0.0
  %525 = vmatpush1.msra.mxu0 %v29
  %526 = vmatprep.subr.mxu0 0.0
  %527 = vmatpush2.msra.mxu0 0.0
  %528 = vmatprep.subr.mxu0 0.0
  %529 = vmatpush2.msra.mxu0 0.0
  %530 = vmatprep.subr.mxu0 0.0
  %531 = vmatpush2.msra.mxu0 0.0
  %532 = vmatprep.subr.mxu0 0.0
  %533 = vmatpush2.msra.mxu0 0.0
  %534 = vmatprep.subr.mxu0 0.0
  %535 = vmatpush2.msra.mxu0 0.0
  %536 = vmatprep.subr.mxu0 0.0
  %537 = vmatpush2.msra.mxu0 0.0
  %538 = vmatprep.subr.mxu0 0.0
  %539 = vmatpush2.msra.mxu0 0.0
  %540 = vmatprep.subr.mxu0 0.0
  %541 = vmatpush2.msra.mxu0 0.0
  %542 = vmatprep.subr.mxu0 0.0
  %543 = vmatpush2.msra.mxu0 0.0
  %544 = vmatprep.subr.mxu0 0.0
  %545 = vmatpush2.msra.mxu0 0.0
  %546 = vmatprep.subr.mxu0 0.0
  %547 = vmatpush2.msra.mxu0 0.0
  %548 = vmatprep.subr.mxu0 0.0
  %549 = vmatpush2.msra.mxu0 0.0
  %550 = vmatprep.subr.mxu0 0.0
  %551 = vmatpush2.msra.mxu0 0.0
  %552 = vmatprep.subr.mxu0 0.0
  %553 = vmatpush2.msra.mxu0 0.0
  %554 = vmatprep.subr.mxu0 0.0
  %555 = vmatpush2.msra.mxu0 0.0
  %556 = vmatprep.subr.mxu0 0.0
  %557 = vmatpush2.msra.mxu0 0.0
  %558 = vmatprep.mubr.f32.mxu0 0.0
  %559 = vmatmul.mubr.f32.gmra.mxu0 %v480
  %v560 = vpop.f32.mrf.mxu0
  %v561 = vadd.f32 0.0, %v560
  %v562 = vpop.f32.mrf.mxu0
  %563 = vmatprep.mubr.f32.mxu0 0.0
  %564 = vmatmul.mubr.f32.gmra.mxu0 %v483
  %v565 = vpop.f32.mrf.mxu0
  %v566 = vadd.f32 0.0, %v565
  %v567 = vpop.f32.mrf.mxu0
  %568 = vmatprep.mubr.f32.mxu0 0.0
  %569 = vmatmul.mubr.f32.gmra.mxu0 %v486
  %v570 = vpop.f32.mrf.mxu0
  %v571 = vadd.f32 0.0, %v570
  %v572 = vpop.f32.mrf.mxu0
  %573 = vmatprep.mubr.f32.mxu0 0.0
  %574 = vmatmul.mubr.f32.gmra.mxu0 %v489
  %v575 = vpop.f32.mrf.mxu0
  %v576 = vadd.f32 0.0, %v575
  %v577 = vpop.f32.mrf.mxu0
  %578 = vdwg.mxu0
  %v580 = vsel %vm77, %v65, 0
  %v583 = vsel %vm77, %v66, 0
  %v586 = vsel %vm77, %v67, 0
  %v589 = vsel %vm77, %v68, 0
  %v592 = vsel %vm90, %v36, 0
  %594 = vmatprep.subr.mxu0 0.0
  %595 = vmatpush1.msra.mxu0 0.0
  %596 = vmatprep.subr.mxu0 0.0
  %597 = vmatpush1.msra.mxu0 0.0
  %598 = vmatprep.subr.mxu0 0.0
  %599 = vmatpush1.msra.mxu0 0.0
  %600 = vmatprep.subr.mxu0 0.0
  %601 = vmatpush1.msra.mxu0 0.0
  %602 = vmatprep.subr.mxu0 0.0
  %603 = vmatpush1.msra.mxu0 0.0
  %604 = vmatprep.subr.mxu0 0.0
  %605 = vmatpush1.msra.mxu0 0.0
  %606 = vmatprep.subr.mxu0 0.0
  %607 = vmatpush1.msra.mxu0 0.0
  %608 = vmatprep.subr.mxu0 0.0
  %609 = vmatpush1.msra.mxu0 0.0
  %610 = vmatprep.subr.mxu0 0.0
  %611 = vmatpush1.msra.mxu0 0.0
  %612 = vmatprep.subr.mxu0 0.0
  %613 = vmatpush1.msra.mxu0 0.0
  %614 = vmatprep.subr.mxu0 0.0
  %615 = vmatpush1.msra.mxu0 0.0
  %616 = vmatprep.subr.mxu0 0.0
  %617 = vmatpush1.msra.mxu0 0.0
  %618 = vmatprep.subr.mxu0 0.0
  %619 = vmatpush1.msra.mxu0 %v592
  %620 = vmatprep.subr.mxu0 0.0
  %621 = vmatpush1.msra.mxu0 %v35
  %622 = vmatprep.subr.mxu0 0.0
  %623 = vmatpush1.msra.mxu0 %v34
  %624 = vmatprep.subr.mxu0 0.0
  %625 = vmatpush1.msra.mxu0 %v33
  %626 = vmatprep.subr.mxu0 0.0
  %627 = vmatpush2.msra.mxu0 0.0
  %628 = vmatprep.subr.mxu0 0.0
  %629 = vmatpush2.msra.mxu0 0.0
  %630 = vmatprep.subr.mxu0 0.0
  %631 = vmatpush2.msra.mxu0 0.0
  %632 = vmatprep.subr.mxu0 0.0
  %633 = vmatpush2.msra.mxu0 0.0
  %634 = vmatprep.subr.mxu0 0.0
  %635 = vmatpush2.msra.mxu0 0.0
  %636 = vmatprep.subr.mxu0 0.0
  %637 = vmatpush2.msra.mxu0 0.0
  %638 = vmatprep.subr.mxu0 0.0
  %639 = vmatpush2.msra.mxu0 0.0
  %640 = vmatprep.subr.mxu0 0.0
  %641 = vmatpush2.msra.mxu0 0.0
  %642 = vmatprep.subr.mxu0 0.0
  %643 = vmatpush2.msra.mxu0 0.0
  %644 = vmatprep.subr.mxu0 0.0
  %645 = vmatpush2.msra.mxu0 0.0
  %646 = vmatprep.subr.mxu0 0.0
  %647 = vmatpush2.msra.mxu0 0.0
  %648 = vmatprep.subr.mxu0 0.0
  %649 = vmatpush2.msra.mxu0 0.0
  %650 = vmatprep.subr.mxu0 0.0
  %651 = vmatpush2.msra.mxu0 0.0
  %652 = vmatprep.subr.mxu0 0.0
  %653 = vmatpush2.msra.mxu0 0.0
  %654 = vmatprep.subr.mxu0 0.0
  %655 = vmatpush2.msra.mxu0 0.0
  %656 = vmatprep.subr.mxu0 0.0
  %657 = vmatpush2.msra.mxu0 0.0
  %658 = vmatprep.mubr.f32.mxu0 0.0
  %659 = vmatmul.mubr.f32.gmra.mxu0 %v580
  %v660 = vpop.f32.mrf.mxu0
  %v661 = vadd.f32 0.0, %v660
  %v662 = vpop.f32.mrf.mxu0
  %663 = vmatprep.mubr.f32.mxu0 0.0
  %664 = vmatmul.mubr.f32.gmra.mxu0 %v583
  %v665 = vpop.f32.mrf.mxu0
  %v666 = vadd.f32 0.0, %v665
  %v667 = vpop.f32.mrf.mxu0
  %668 = vmatprep.mubr.f32.mxu0 0.0
  %669 = vmatmul.mubr.f32.gmra.mxu0 %v586
  %v670 = vpop.f32.mrf.mxu0
  %v671 = vadd.f32 0.0, %v670
  %v672 = vpop.f32.mrf.mxu0
  %673 = vmatprep.mubr.f32.mxu0 0.0
  %674 = vmatmul.mubr.f32.gmra.mxu0 %v589
  %v675 = vpop.f32.mrf.mxu0
  %v676 = vadd.f32 0.0, %v675
  %v677 = vpop.f32.mrf.mxu0
  %678 = vdwg.mxu0
  %v680 = vsel %vm77, %v69, 0
  %v683 = vsel %vm77, %v70, 0
  %v686 = vsel %vm77, %v71, 0
  %v689 = vsel %vm77, %v72, 0
  %v692 = vsel %vm90, %v40, 0
  %694 = vmatprep.subr.mxu0 0.0
  %695 = vmatpush1.msra.mxu0 0.0
  %696 = vmatprep.subr.mxu0 0.0
  %697 = vmatpush1.msra.mxu0 0.0
  %698 = vmatprep.subr.mxu0 0.0
  %699 = vmatpush1.msra.mxu0 0.0
  %700 = vmatprep.subr.mxu0 0.0
  %701 = vmatpush1.msra.mxu0 0.0
  %702 = vmatprep.subr.mxu0 0.0
  %703 = vmatpush1.msra.mxu0 0.0
  %704 = vmatprep.subr.mxu0 0.0
  %705 = vmatpush1.msra.mxu0 0.0
  %706 = vmatprep.subr.mxu0 0.0
  %707 = vmatpush1.msra.mxu0 0.0
  %708 = vmatprep.subr.mxu0 0.0
  %709 = vmatpush1.msra.mxu0 0.0
  %710 = vmatprep.subr.mxu0 0.0
  %711 = vmatpush1.msra.mxu0 0.0
  %712 = vmatprep.subr.mxu0 0.0
  %713 = vmatpush1.msra.mxu0 0.0
  %714 = vmatprep.subr.mxu0 0.0
  %715 = vmatpush1.msra.mxu0 0.0
  %716 = vmatprep.subr.mxu0 0.0
  %717 = vmatpush1.msra.mxu0 0.0
  %718 = vmatprep.subr.mxu0 0.0
  %719 = vmatpush1.msra.mxu0 %v692
  %720 = vmatprep.subr.mxu0 0.0
  %721 = vmatpush1.msra.mxu0 %v39
  %722 = vmatprep.subr.mxu0 0.0
  %723 = vmatpush1.msra.mxu0 %v38
  %724 = vmatprep.subr.mxu0 0.0
  %725 = vmatpush1.msra.mxu0 %v37
  %726 = vmatprep.subr.mxu0 0.0
  %727 = vmatpush2.msra.mxu0 0.0
  %728 = vmatprep.subr.mxu0 0.0
  %729 = vmatpush2.msra.mxu0 0.0
  %730 = vmatprep.subr.mxu0 0.0
  %731 = vmatpush2.msra.mxu0 0.0
  %732 = vmatprep.subr.mxu0 0.0
  %733 = vmatpush2.msra.mxu0 0.0
  %734 = vmatprep.subr.mxu0 0.0
  %735 = vmatpush2.msra.mxu0 0.0
  %736 = vmatprep.subr.mxu0 0.0
  %737 = vmatpush2.msra.mxu0 0.0
  %738 = vmatprep.subr.mxu0 0.0
  %739 = vmatpush2.msra.mxu0 0.0
  %740 = vmatprep.subr.mxu0 0.0
  %741 = vmatpush2.msra.mxu0 0.0
  %742 = vmatprep.subr.mxu0 0.0
  %743 = vmatpush2.msra.mxu0 0.0
  %744 = vmatprep.subr.mxu0 0.0
  %745 = vmatpush2.msra.mxu0 0.0
  %746 = vmatprep.subr.mxu0 0.0
  %747 = vmatpush2.msra.mxu0 0.0
  %748 = vmatprep.subr.mxu0 0.0
  %749 = vmatpush2.msra.mxu0 0.0
  %750 = vmatprep.subr.mxu0 0.0
  %751 = vmatpush2.msra.mxu0 0.0
  %752 = vmatprep.subr.mxu0 0.0
  %753 = vmatpush2.msra.mxu0 0.0
  %754 = vmatprep.subr.mxu0 0.0
  %755 = vmatpush2.msra.mxu0 0.0
  %756 = vmatprep.subr.mxu0 0.0
  %757 = vmatpush2.msra.mxu0 0.0
  %758 = vmatprep.mubr.f32.mxu0 0.0
  %759 = vmatmul.mubr.f32.gmra.mxu0 %v680
  %v760 = vpop.f32.mrf.mxu0
  %v761 = vadd.f32 0.0, %v760
  %v762 = vpop.f32.mrf.mxu0
  %763 = vmatprep.mubr.f32.mxu0 0.0
  %764 = vmatmul.mubr.f32.gmra.mxu0 %v683
  %v765 = vpop.f32.mrf.mxu0
  %v766 = vadd.f32 0.0, %v765
  %v767 = vpop.f32.mrf.mxu0
  %768 = vmatprep.mubr.f32.mxu0 0.0
  %769 = vmatmul.mubr.f32.gmra.mxu0 %v686
  %v770 = vpop.f32.mrf.mxu0
  %v771 = vadd.f32 0.0, %v770
  %v772 = vpop.f32.mrf.mxu0
  %773 = vmatprep.mubr.f32.mxu0 0.0
  %774 = vmatmul.mubr.f32.gmra.mxu0 %v689
  %v775 = vpop.f32.mrf.mxu0
  %v776 = vadd.f32 0.0, %v775
  %v777 = vpop.f32.mrf.mxu0
  %778 = vdwg.mxu0
  %v780 = vsel %vm77, %v73, 0
  %v783 = vsel %vm77, %v74, 0
  %v786 = vsel %vm77, %v75, 0
  %v789 = vsel %vm77, %v76, 0
  %v792 = vsel %vm90, %v44, 0
  %794 = vmatprep.subr.mxu0 0.0
  %795 = vmatpush1.msra.mxu0 0.0
  %796 = vmatprep.subr.mxu0 0.0
  %797 = vmatpush1.msra.mxu0 0.0
  %798 = vmatprep.subr.mxu0 0.0
  %799 = vmatpush1.msra.mxu0 0.0
  %800 = vmatprep.subr.mxu0 0.0
  %801 = vmatpush1.msra.mxu0 0.0
  %802 = vmatprep.subr.mxu0 0.0
  %803 = vmatpush1.msra.mxu0 0.0
  %804 = vmatprep.subr.mxu0 0.0
  %805 = vmatpush1.msra.mxu0 0.0
  %806 = vmatprep.subr.mxu0 0.0
  %807 = vmatpush1.msra.mxu0 0.0
  %808 = vmatprep.subr.mxu0 0.0
  %809 = vmatpush1.msra.mxu0 0.0
  %810 = vmatprep.subr.mxu0 0.0
  %811 = vmatpush1.msra.mxu0 0.0
  %812 = vmatprep.subr.mxu0 0.0
  %813 = vmatpush1.msra.mxu0 0.0
  %814 = vmatprep.subr.mxu0 0.0
  %815 = vmatpush1.msra.mxu0 0.0
  %816 = vmatprep.subr.mxu0 0.0
  %817 = vmatpush1.msra.mxu0 0.0
  %818 = vmatprep.subr.mxu0 0.0
  %819 = vmatpush1.msra.mxu0 %v792
  %820 = vmatprep.subr.mxu0 0.0
  %821 = vmatpush1.msra.mxu0 %v43
  %822 = vmatprep.subr.mxu0 0.0
  %823 = vmatpush1.msra.mxu0 %v42
  %824 = vmatprep.subr.mxu0 0.0
  %825 = vmatpush1.msra.mxu0 %v41
  %826 = vmatprep.subr.mxu0 0.0
  %827 = vmatpush2.msra.mxu0 0.0
  %828 = vmatprep.subr.mxu0 0.0
  %829 = vmatpush2.msra.mxu0 0.0
  %830 = vmatprep.subr.mxu0 0.0
  %831 = vmatpush2.msra.mxu0 0.0
  %832 = vmatprep.subr.mxu0 0.0
  %833 = vmatpush2.msra.mxu0 0.0
  %834 = vmatprep.subr.mxu0 0.0
  %835 = vmatpush2.msra.mxu0 0.0
  %836 = vmatprep.subr.mxu0 0.0
  %837 = vmatpush2.msra.mxu0 0.0
  %838 = vmatprep.subr.mxu0 0.0
  %839 = vmatpush2.msra.mxu0 0.0
  %840 = vmatprep.subr.mxu0 0.0
  %841 = vmatpush2.msra.mxu0 0.0
  %842 = vmatprep.subr.mxu0 0.0
  %843 = vmatpush2.msra.mxu0 0.0
  %844 = vmatprep.subr.mxu0 0.0
  %845 = vmatpush2.msra.mxu0 0.0
  %846 = vmatprep.subr.mxu0 0.0
  %847 = vmatpush2.msra.mxu0 0.0
  %848 = vmatprep.subr.mxu0 0.0
  %849 = vmatpush2.msra.mxu0 0.0
  %850 = vmatprep.subr.mxu0 0.0
  %851 = vmatpush2.msra.mxu0 0.0
  %852 = vmatprep.subr.mxu0 0.0
  %853 = vmatpush2.msra.mxu0 0.0
  %854 = vmatprep.subr.mxu0 0.0
  %855 = vmatpush2.msra.mxu0 0.0
  %856 = vmatprep.subr.mxu0 0.0
  %857 = vmatpush2.msra.mxu0 0.0
  %858 = vmatprep.mubr.f32.mxu0 0.0
  %859 = vmatmul.mubr.f32.gmra.mxu0 %v780
  %v860 = vpop.f32.mrf.mxu0
  %v861 = vadd.f32 0.0, %v860
  %v862 = vpop.f32.mrf.mxu0
  %863 = vmatprep.mubr.f32.mxu0 0.0
  %864 = vmatmul.mubr.f32.gmra.mxu0 %v783
  %v865 = vpop.f32.mrf.mxu0
  %v866 = vadd.f32 0.0, %v865
  %v867 = vpop.f32.mrf.mxu0
  %868 = vmatprep.mubr.f32.mxu0 0.0
  %869 = vmatmul.mubr.f32.gmra.mxu0 %v786
  %v870 = vpop.f32.mrf.mxu0
  %v871 = vadd.f32 0.0, %v870
  %v872 = vpop.f32.mrf.mxu0
  %873 = vmatprep.mubr.f32.mxu0 0.0
  %874 = vmatmul.mubr.f32.gmra.mxu0 %v789
  %v875 = vpop.f32.mrf.mxu0
  %v876 = vadd.f32 0.0, %v875
  %v877 = vpop.f32.mrf.mxu0
  %878 = vdwg.mxu0
  %879 = vst [vmem:[%s2] sm:$0xff] %v161
  %880 = vst [vmem:[%s2 + $0x8] sm:$0xff] %v166
  %881 = vst [vmem:[%s2 + $0x10] sm:$0xff] %v171
  %882 = vst [vmem:[%s2 + $0x18] sm:$0xf] %v176
  %883 = vst [vmem:[%s2 + $0x20] sm:$0xff] %v261
  %884 = vst [vmem:[%s2 + $0x28] sm:$0xff] %v266
  %885 = vst [vmem:[%s2 + $0x30] sm:$0xff] %v271
  %886 = vst [vmem:[%s2 + $0x38] sm:$0xf] %v276
  %887 = vst [vmem:[%s2 + $0x40] sm:$0xff] %v361
  %888 = vst [vmem:[%s2 + $0x48] sm:$0xff] %v366
  %889 = vst [vmem:[%s2 + $0x50] sm:$0xff] %v371
  %890 = vst [vmem:[%s2 + $0x58] sm:$0xf] %v376
  %891 = vst [vmem:[%s2 + $0x60] sm:$0xff] %v461
  %892 = vst [vmem:[%s2 + $0x68] sm:$0xff] %v466
  %893 = vst [vmem:[%s2 + $0x70] sm:$0xff] %v471
  %894 = vst [vmem:[%s2 + $0x78] sm:$0xf] %v476
  %895 = vst [vmem:[%s2 + $0x80] sm:$0xff] %v561
  %896 = vst [vmem:[%s2 + $0x88] sm:$0xff] %v566
  %897 = vst [vmem:[%s2 + $0x90] sm:$0xff] %v571
  %898 = vst [vmem:[%s2 + $0x98] sm:$0xf] %v576
  %899 = vst [vmem:[%s2 + $0xa0] sm:$0xff] %v661
  %900 = vst [vmem:[%s2 + $0xa8] sm:$0xff] %v666
  %901 = vst [vmem:[%s2 + $0xb0] sm:$0xff] %v671
  %902 = vst [vmem:[%s2 + $0xb8] sm:$0xf] %v676
  %903 = vst [vmem:[%s2 + $0xc0] sm:$0xff] %v761
  %904 = vst [vmem:[%s2 + $0xc8] sm:$0xff] %v766
  %905 = vst [vmem:[%s2 + $0xd0] sm:$0xff] %v771
  %906 = vst [vmem:[%s2 + $0xd8] sm:$0xf] %v776
  %907 = vst [vmem:[%s2 + $0xe0] sm:$0xff] %v861
  %908 = vst [vmem:[%s2 + $0xe8] sm:$0xff] %v866
  %909 = vst [vmem:[%s2 + $0xf0] sm:$0xff] %v871
  %910 = vst [vmem:[%s2 + $0xf8] sm:$0xf] %v876
  %911 = vmatprep.subr.mxu0 0.0
  %912 = vmatpush1.xpose.msra.mxu0 0.0
  %913 = vmatprep.subr.mxu0 0.0
  %914 = vmatpush1.xpose.msra.mxu0 0.0
  %915 = vmatprep.subr.mxu0 0.0
  %916 = vmatpush1.xpose.msra.mxu0 0.0
  %917 = vmatprep.subr.mxu0 0.0
  %918 = vmatpush1.xpose.msra.mxu0 0.0
  %919 = vmatprep.subr.mxu0 0.0
  %920 = vmatpush1.xpose.msra.mxu0 0.0
  %921 = vmatprep.subr.mxu0 0.0
  %922 = vmatpush1.xpose.msra.mxu0 0.0
  %923 = vmatprep.subr.mxu0 0.0
  %924 = vmatpush1.xpose.msra.mxu0 0.0
  %925 = vmatprep.subr.mxu0 0.0
  %926 = vmatpush1.xpose.msra.mxu0 0.0
  %927 = vmatprep.subr.mxu0 0.0
  %928 = vmatpush1.xpose.msra.mxu0 0.0
  %929 = vmatprep.subr.mxu0 0.0
  %930 = vmatpush1.xpose.msra.mxu0 0.0
  %931 = vmatprep.subr.mxu0 0.0
  %932 = vmatpush1.xpose.msra.mxu0 0.0
  %933 = vmatprep.subr.mxu0 0.0
  %934 = vmatpush1.xpose.msra.mxu0 0.0
  %935 = vmatprep.subr.mxu0 0.0
  %936 = vmatpush1.xpose.msra.mxu0 %v176
  %937 = vmatprep.subr.mxu0 0.0
  %938 = vmatpush1.xpose.msra.mxu0 %v171
  %939 = vmatprep.subr.mxu0 0.0
  %940 = vmatpush1.xpose.msra.mxu0 %v166
  %941 = vmatprep.subr.mxu0 0.0
  %942 = vmatpush1.xpose.msra.mxu0 %v161
  %943 = vmatprep.subr.mxu0 0.0
  %944 = vmatpush2.xpose.msra.mxu0 0.0
  %945 = vmatprep.subr.mxu0 0.0
  %946 = vmatpush2.xpose.msra.mxu0 0.0
  %947 = vmatprep.subr.mxu0 0.0
  %948 = vmatpush2.xpose.msra.mxu0 0.0
  %949 = vmatprep.subr.mxu0 0.0
  %950 = vmatpush2.xpose.msra.mxu0 0.0
  %951 = vmatprep.subr.mxu0 0.0
  %952 = vmatpush2.xpose.msra.mxu0 0.0
  %953 = vmatprep.subr.mxu0 0.0
  %954 = vmatpush2.xpose.msra.mxu0 0.0
  %955 = vmatprep.subr.mxu0 0.0
  %956 = vmatpush2.xpose.msra.mxu0 0.0
  %957 = vmatprep.subr.mxu0 0.0
  %958 = vmatpush2.xpose.msra.mxu0 0.0
  %959 = vmatprep.subr.mxu0 0.0
  %960 = vmatpush2.xpose.msra.mxu0 0.0
  %961 = vmatprep.subr.mxu0 0.0
  %962 = vmatpush2.xpose.msra.mxu0 0.0
  %963 = vmatprep.subr.mxu0 0.0
  %964 = vmatpush2.xpose.msra.mxu0 0.0
  %965 = vmatprep.subr.mxu0 0.0
  %966 = vmatpush2.xpose.msra.mxu0 0.0
  %967 = vmatprep.subr.mxu0 0.0
  %968 = vmatpush2.xpose.msra.mxu0 0.0
  %969 = vmatprep.subr.mxu0 0.0
  %970 = vmatpush2.xpose.msra.mxu0 0.0
  %971 = vmatprep.subr.mxu0 0.0
  %972 = vmatpush2.xpose.msra.mxu0 0.0
  %973 = vmatprep.subr.mxu0 0.0
  %974 = vmatpush2.xpose.msra.mxu0 0.0
  %975 = vmatprep.mubr.f32.mxu0 0.0
  %976 = vmatmul.mubr.f32.gmra.mxu0 %v13
  %v977 = vpop.f32.mrf.mxu0
  %v978 = vadd.f32 0.0, %v977
  %v979 = vpop.f32.mrf.mxu0
  %980 = vmatprep.mubr.f32.mxu0 0.0
  %981 = vmatmul.mubr.f32.gmra.mxu0 %v14
  %v982 = vpop.f32.mrf.mxu0
  %v983 = vadd.f32 0.0, %v982
  %v984 = vpop.f32.mrf.mxu0
  %985 = vmatprep.mubr.f32.mxu0 0.0
  %986 = vmatmul.mubr.f32.gmra.mxu0 %v15
  %v987 = vpop.f32.mrf.mxu0
  %v988 = vadd.f32 0.0, %v987
  %v989 = vpop.f32.mrf.mxu0
  %990 = vmatprep.mubr.f32.mxu0 0.0
  %991 = vmatmul.mubr.f32.gmra.mxu0 %v16
  %v992 = vpop.f32.mrf.mxu0
  %v993 = vadd.f32 0.0, %v992
  %v994 = vpop.f32.mrf.mxu0
  %995 = vdwg.mxu0
  %996 = vmatprep.subr.mxu0 0.0
  %997 = vmatpush1.xpose.msra.mxu0 0.0
  %998 = vmatprep.subr.mxu0 0.0
  %999 = vmatpush1.xpose.msra.mxu0 0.0
  %1000 = vmatprep.subr.mxu0 0.0
  %1001 = vmatpush1.xpose.msra.mxu0 0.0
  %1002 = vmatprep.subr.mxu0 0.0
  %1003 = vmatpush1.xpose.msra.mxu0 0.0
  %1004 = vmatprep.subr.mxu0 0.0
  %1005 = vmatpush1.xpose.msra.mxu0 0.0
  %1006 = vmatprep.subr.mxu0 0.0
  %1007 = vmatpush1.xpose.msra.mxu0 0.0
  %1008 = vmatprep.subr.mxu0 0.0
  %1009 = vmatpush1.xpose.msra.mxu0 0.0
  %1010 = vmatprep.subr.mxu0 0.0
  %1011 = vmatpush1.xpose.msra.mxu0 0.0
  %1012 = vmatprep.subr.mxu0 0.0
  %1013 = vmatpush1.xpose.msra.mxu0 0.0
  %1014 = vmatprep.subr.mxu0 0.0
  %1015 = vmatpush1.xpose.msra.mxu0 0.0
  %1016 = vmatprep.subr.mxu0 0.0
  %1017 = vmatpush1.xpose.msra.mxu0 0.0
  %1018 = vmatprep.subr.mxu0 0.0
  %1019 = vmatpush1.xpose.msra.mxu0 0.0
  %1020 = vmatprep.subr.mxu0 0.0
  %1021 = vmatpush1.xpose.msra.mxu0 %v276
  %1022 = vmatprep.subr.mxu0 0.0
  %1023 = vmatpush1.xpose.msra.mxu0 %v271
  %1024 = vmatprep.subr.mxu0 0.0
  %1025 = vmatpush1.xpose.msra.mxu0 %v266
  %1026 = vmatprep.subr.mxu0 0.0
  %1027 = vmatpush1.xpose.msra.mxu0 %v261
  %1028 = vmatprep.subr.mxu0 0.0
  %1029 = vmatpush2.xpose.msra.mxu0 0.0
  %1030 = vmatprep.subr.mxu0 0.0
  %1031 = vmatpush2.xpose.msra.mxu0 0.0
  %1032 = vmatprep.subr.mxu0 0.0
  %1033 = vmatpush2.xpose.msra.mxu0 0.0
  %1034 = vmatprep.subr.mxu0 0.0
  %1035 = vmatpush2.xpose.msra.mxu0 0.0
  %1036 = vmatprep.subr.mxu0 0.0
  %1037 = vmatpush2.xpose.msra.mxu0 0.0
  %1038 = vmatprep.subr.mxu0 0.0
  %1039 = vmatpush2.xpose.msra.mxu0 0.0
  %1040 = vmatprep.subr.mxu0 0.0
  %1041 = vmatpush2.xpose.msra.mxu0 0.0
  %1042 = vmatprep.subr.mxu0 0.0
  %1043 = vmatpush2.xpose.msra.mxu0 0.0
  %1044 = vmatprep.subr.mxu0 0.0
  %1045 = vmatpush2.xpose.msra.mxu0 0.0
  %1046 = vmatprep.subr.mxu0 0.0
  %1047 = vmatpush2.xpose.msra.mxu0 0.0
  %1048 = vmatprep.subr.mxu0 0.0
  %1049 = vmatpush2.xpose.msra.mxu0 0.0
  %1050 = vmatprep.subr.mxu0 0.0
  %1051 = vmatpush2.xpose.msra.mxu0 0.0
  %1052 = vmatprep.subr.mxu0 0.0
  %1053 = vmatpush2.xpose.msra.mxu0 0.0
  %1054 = vmatprep.subr.mxu0 0.0
  %1055 = vmatpush2.xpose.msra.mxu0 0.0
  %1056 = vmatprep.subr.mxu0 0.0
  %1057 = vmatpush2.xpose.msra.mxu0 0.0
  %1058 = vmatprep.subr.mxu0 0.0
  %1059 = vmatpush2.xpose.msra.mxu0 0.0
  %1060 = vmatprep.mubr.f32.mxu0 0.0
  %1061 = vmatmul.mubr.f32.gmra.mxu0 %v17
  %v1062 = vpop.f32.mrf.mxu0
  %v1063 = vadd.f32 0.0, %v1062
  %v1064 = vpop.f32.mrf.mxu0
  %1065 = vmatprep.mubr.f32.mxu0 0.0
  %1066 = vmatmul.mubr.f32.gmra.mxu0 %v18
  %v1067 = vpop.f32.mrf.mxu0
  %v1068 = vadd.f32 0.0, %v1067
  %v1069 = vpop.f32.mrf.mxu0
  %1070 = vmatprep.mubr.f32.mxu0 0.0
  %1071 = vmatmul.mubr.f32.gmra.mxu0 %v19
  %v1072 = vpop.f32.mrf.mxu0
  %v1073 = vadd.f32 0.0, %v1072
  %v1074 = vpop.f32.mrf.mxu0
  %1075 = vmatprep.mubr.f32.mxu0 0.0
  %1076 = vmatmul.mubr.f32.gmra.mxu0 %v20
  %v1077 = vpop.f32.mrf.mxu0
  %v1078 = vadd.f32 0.0, %v1077
  %v1079 = vpop.f32.mrf.mxu0
  %1080 = vdwg.mxu0
  %1081 = vmatprep.subr.mxu0 0.0
  %1082 = vmatpush1.xpose.msra.mxu0 0.0
  %1083 = vmatprep.subr.mxu0 0.0
  %1084 = vmatpush1.xpose.msra.mxu0 0.0
  %1085 = vmatprep.subr.mxu0 0.0
  %1086 = vmatpush1.xpose.msra.mxu0 0.0
  %1087 = vmatprep.subr.mxu0 0.0
  %1088 = vmatpush1.xpose.msra.mxu0 0.0
  %1089 = vmatprep.subr.mxu0 0.0
  %1090 = vmatpush1.xpose.msra.mxu0 0.0
  %1091 = vmatprep.subr.mxu0 0.0
  %1092 = vmatpush1.xpose.msra.mxu0 0.0
  %1093 = vmatprep.subr.mxu0 0.0
  %1094 = vmatpush1.xpose.msra.mxu0 0.0
  %1095 = vmatprep.subr.mxu0 0.0
  %1096 = vmatpush1.xpose.msra.mxu0 0.0
  %1097 = vmatprep.subr.mxu0 0.0
  %1098 = vmatpush1.xpose.msra.mxu0 0.0
  %1099 = vmatprep.subr.mxu0 0.0
  %1100 = vmatpush1.xpose.msra.mxu0 0.0
  %1101 = vmatprep.subr.mxu0 0.0
  %1102 = vmatpush1.xpose.msra.mxu0 0.0
  %1103 = vmatprep.subr.mxu0 0.0
  %1104 = vmatpush1.xpose.msra.mxu0 0.0
  %1105 = vmatprep.subr.mxu0 0.0
  %1106 = vmatpush1.xpose.msra.mxu0 %v376
  %1107 = vmatprep.subr.mxu0 0.0
  %1108 = vmatpush1.xpose.msra.mxu0 %v371
  %1109 = vmatprep.subr.mxu0 0.0
  %1110 = vmatpush1.xpose.msra.mxu0 %v366
  %1111 = vmatprep.subr.mxu0 0.0
  %1112 = vmatpush1.xpose.msra.mxu0 %v361
  %1113 = vmatprep.subr.mxu0 0.0
  %1114 = vmatpush2.xpose.msra.mxu0 0.0
  %1115 = vmatprep.subr.mxu0 0.0
  %1116 = vmatpush2.xpose.msra.mxu0 0.0
  %1117 = vmatprep.subr.mxu0 0.0
  %1118 = vmatpush2.xpose.msra.mxu0 0.0
  %1119 = vmatprep.subr.mxu0 0.0
  %1120 = vmatpush2.xpose.msra.mxu0 0.0
  %1121 = vmatprep.subr.mxu0 0.0
  %1122 = vmatpush2.xpose.msra.mxu0 0.0
  %1123 = vmatprep.subr.mxu0 0.0
  %1124 = vmatpush2.xpose.msra.mxu0 0.0
  %1125 = vmatprep.subr.mxu0 0.0
  %1126 = vmatpush2.xpose.msra.mxu0 0.0
  %1127 = vmatprep.subr.mxu0 0.0
  %1128 = vmatpush2.xpose.msra.mxu0 0.0
  %1129 = vmatprep.subr.mxu0 0.0
  %1130 = vmatpush2.xpose.msra.mxu0 0.0
  %1131 = vmatprep.subr.mxu0 0.0
  %1132 = vmatpush2.xpose.msra.mxu0 0.0
  %1133 = vmatprep.subr.mxu0 0.0
  %1134 = vmatpush2.xpose.msra.mxu0 0.0
  %1135 = vmatprep.subr.mxu0 0.0
  %1136 = vmatpush2.xpose.msra.mxu0 0.0
  %1137 = vmatprep.subr.mxu0 0.0
  %1138 = vmatpush2.xpose.msra.mxu0 0.0
  %1139 = vmatprep.subr.mxu0 0.0
  %1140 = vmatpush2.xpose.msra.mxu0 0.0
  %1141 = vmatprep.subr.mxu0 0.0
  %1142 = vmatpush2.xpose.msra.mxu0 0.0
  %1143 = vmatprep.subr.mxu0 0.0
  %1144 = vmatpush2.xpose.msra.mxu0 0.0
  %1145 = vmatprep.mubr.f32.mxu0 0.0
  %1146 = vmatmul.mubr.f32.gmra.mxu0 %v21
  %v1147 = vpop.f32.mrf.mxu0
  %v1148 = vadd.f32 0.0, %v1147
  %v1149 = vpop.f32.mrf.mxu0
  %1150 = vmatprep.mubr.f32.mxu0 0.0
  %1151 = vmatmul.mubr.f32.gmra.mxu0 %v22
  %v1152 = vpop.f32.mrf.mxu0
  %v1153 = vadd.f32 0.0, %v1152
  %v1154 = vpop.f32.mrf.mxu0
  %1155 = vmatprep.mubr.f32.mxu0 0.0
  %1156 = vmatmul.mubr.f32.gmra.mxu0 %v23
  %v1157 = vpop.f32.mrf.mxu0
  %v1158 = vadd.f32 0.0, %v1157
  %v1159 = vpop.f32.mrf.mxu0
  %1160 = vmatprep.mubr.f32.mxu0 0.0
  %1161 = vmatmul.mubr.f32.gmra.mxu0 %v24
  %v1162 = vpop.f32.mrf.mxu0
  %v1163 = vadd.f32 0.0, %v1162
  %v1164 = vpop.f32.mrf.mxu0
  %1165 = vdwg.mxu0
  %1166 = vmatprep.subr.mxu0 0.0
  %1167 = vmatpush1.xpose.msra.mxu0 0.0
  %1168 = vmatprep.subr.mxu0 0.0
  %1169 = vmatpush1.xpose.msra.mxu0 0.0
  %1170 = vmatprep.subr.mxu0 0.0
  %1171 = vmatpush1.xpose.msra.mxu0 0.0
  %1172 = vmatprep.subr.mxu0 0.0
  %1173 = vmatpush1.xpose.msra.mxu0 0.0
  %1174 = vmatprep.subr.mxu0 0.0
  %1175 = vmatpush1.xpose.msra.mxu0 0.0
  %1176 = vmatprep.subr.mxu0 0.0
  %1177 = vmatpush1.xpose.msra.mxu0 0.0
  %1178 = vmatprep.subr.mxu0 0.0
  %1179 = vmatpush1.xpose.msra.mxu0 0.0
  %1180 = vmatprep.subr.mxu0 0.0
  %1181 = vmatpush1.xpose.msra.mxu0 0.0
  %1182 = vmatprep.subr.mxu0 0.0
  %1183 = vmatpush1.xpose.msra.mxu0 0.0
  %1184 = vmatprep.subr.mxu0 0.0
  %1185 = vmatpush1.xpose.msra.mxu0 0.0
  %1186 = vmatprep.subr.mxu0 0.0
  %1187 = vmatpush1.xpose.msra.mxu0 0.0
  %1188 = vmatprep.subr.mxu0 0.0
  %1189 = vmatpush1.xpose.msra.mxu0 0.0
  %1190 = vmatprep.subr.mxu0 0.0
  %1191 = vmatpush1.xpose.msra.mxu0 %v476
  %1192 = vmatprep.subr.mxu0 0.0
  %1193 = vmatpush1.xpose.msra.mxu0 %v471
  %1194 = vmatprep.subr.mxu0 0.0
  %1195 = vmatpush1.xpose.msra.mxu0 %v466
  %1196 = vmatprep.subr.mxu0 0.0
  %1197 = vmatpush1.xpose.msra.mxu0 %v461
  %1198 = vmatprep.subr.mxu0 0.0
  %1199 = vmatpush2.xpose.msra.mxu0 0.0
  %1200 = vmatprep.subr.mxu0 0.0
  %1201 = vmatpush2.xpose.msra.mxu0 0.0
  %1202 = vmatprep.subr.mxu0 0.0
  %1203 = vmatpush2.xpose.msra.mxu0 0.0
  %1204 = vmatprep.subr.mxu0 0.0
  %1205 = vmatpush2.xpose.msra.mxu0 0.0
  %1206 = vmatprep.subr.mxu0 0.0
  %1207 = vmatpush2.xpose.msra.mxu0 0.0
  %1208 = vmatprep.subr.mxu0 0.0
  %1209 = vmatpush2.xpose.msra.mxu0 0.0
  %1210 = vmatprep.subr.mxu0 0.0
  %1211 = vmatpush2.xpose.msra.mxu0 0.0
  %1212 = vmatprep.subr.mxu0 0.0
  %1213 = vmatpush2.xpose.msra.mxu0 0.0
  %1214 = vmatprep.subr.mxu0 0.0
  %1215 = vmatpush2.xpose.msra.mxu0 0.0
  %1216 = vmatprep.subr.mxu0 0.0
  %1217 = vmatpush2.xpose.msra.mxu0 0.0
  %1218 = vmatprep.subr.mxu0 0.0
  %1219 = vmatpush2.xpose.msra.mxu0 0.0
  %1220 = vmatprep.subr.mxu0 0.0
  %1221 = vmatpush2.xpose.msra.mxu0 0.0
  %1222 = vmatprep.subr.mxu0 0.0
  %1223 = vmatpush2.xpose.msra.mxu0 0.0
  %1224 = vmatprep.subr.mxu0 0.0
  %1225 = vmatpush2.xpose.msra.mxu0 0.0
  %1226 = vmatprep.subr.mxu0 0.0
  %1227 = vmatpush2.xpose.msra.mxu0 0.0
  %1228 = vmatprep.subr.mxu0 0.0
  %1229 = vmatpush2.xpose.msra.mxu0 0.0
  %1230 = vmatprep.mubr.f32.mxu0 0.0
  %1231 = vmatmul.mubr.f32.gmra.mxu0 %v25
  %v1232 = vpop.f32.mrf.mxu0
  %v1233 = vadd.f32 0.0, %v1232
  %v1234 = vpop.f32.mrf.mxu0
  %1235 = vmatprep.mubr.f32.mxu0 0.0
  %1236 = vmatmul.mubr.f32.gmra.mxu0 %v26
  %v1237 = vpop.f32.mrf.mxu0
  %v1238 = vadd.f32 0.0, %v1237
  %v1239 = vpop.f32.mrf.mxu0
  %1240 = vmatprep.mubr.f32.mxu0 0.0
  %1241 = vmatmul.mubr.f32.gmra.mxu0 %v27
  %v1242 = vpop.f32.mrf.mxu0
  %v1243 = vadd.f32 0.0, %v1242
  %v1244 = vpop.f32.mrf.mxu0
  %1245 = vmatprep.mubr.f32.mxu0 0.0
  %1246 = vmatmul.mubr.f32.gmra.mxu0 %v28
  %v1247 = vpop.f32.mrf.mxu0
  %v1248 = vadd.f32 0.0, %v1247
  %v1249 = vpop.f32.mrf.mxu0
  %1250 = vdwg.mxu0
  %1251 = vmatprep.subr.mxu0 0.0
  %1252 = vmatpush1.xpose.msra.mxu0 0.0
  %1253 = vmatprep.subr.mxu0 0.0
  %1254 = vmatpush1.xpose.msra.mxu0 0.0
  %1255 = vmatprep.subr.mxu0 0.0
  %1256 = vmatpush1.xpose.msra.mxu0 0.0
  %1257 = vmatprep.subr.mxu0 0.0
  %1258 = vmatpush1.xpose.msra.mxu0 0.0
  %1259 = vmatprep.subr.mxu0 0.0
  %1260 = vmatpush1.xpose.msra.mxu0 0.0
  %1261 = vmatprep.subr.mxu0 0.0
  %1262 = vmatpush1.xpose.msra.mxu0 0.0
  %1263 = vmatprep.subr.mxu0 0.0
  %1264 = vmatpush1.xpose.msra.mxu0 0.0
  %1265 = vmatprep.subr.mxu0 0.0
  %1266 = vmatpush1.xpose.msra.mxu0 0.0
  %1267 = vmatprep.subr.mxu0 0.0
  %1268 = vmatpush1.xpose.msra.mxu0 0.0
  %1269 = vmatprep.subr.mxu0 0.0
  %1270 = vmatpush1.xpose.msra.mxu0 0.0
  %1271 = vmatprep.subr.mxu0 0.0
  %1272 = vmatpush1.xpose.msra.mxu0 0.0
  %1273 = vmatprep.subr.mxu0 0.0
  %1274 = vmatpush1.xpose.msra.mxu0 0.0
  %1275 = vmatprep.subr.mxu0 0.0
  %1276 = vmatpush1.xpose.msra.mxu0 %v576
  %1277 = vmatprep.subr.mxu0 0.0
  %1278 = vmatpush1.xpose.msra.mxu0 %v571
  %1279 = vmatprep.subr.mxu0 0.0
  %1280 = vmatpush1.xpose.msra.mxu0 %v566
  %1281 = vmatprep.subr.mxu0 0.0
  %1282 = vmatpush1.xpose.msra.mxu0 %v561
  %1283 = vmatprep.subr.mxu0 0.0
  %1284 = vmatpush2.xpose.msra.mxu0 0.0
  %1285 = vmatprep.subr.mxu0 0.0
  %1286 = vmatpush2.xpose.msra.mxu0 0.0
  %1287 = vmatprep.subr.mxu0 0.0
  %1288 = vmatpush2.xpose.msra.mxu0 0.0
  %1289 = vmatprep.subr.mxu0 0.0
  %1290 = vmatpush2.xpose.msra.mxu0 0.0
  %1291 = vmatprep.subr.mxu0 0.0
  %1292 = vmatpush2.xpose.msra.mxu0 0.0
  %1293 = vmatprep.subr.mxu0 0.0
  %1294 = vmatpush2.xpose.msra.mxu0 0.0
  %1295 = vmatprep.subr.mxu0 0.0
  %1296 = vmatpush2.xpose.msra.mxu0 0.0
  %1297 = vmatprep.subr.mxu0 0.0
  %1298 = vmatpush2.xpose.msra.mxu0 0.0
  %1299 = vmatprep.subr.mxu0 0.0
  %1300 = vmatpush2.xpose.msra.mxu0 0.0
  %1301 = vmatprep.subr.mxu0 0.0
  %1302 = vmatpush2.xpose.msra.mxu0 0.0
  %1303 = vmatprep.subr.mxu0 0.0
  %1304 = vmatpush2.xpose.msra.mxu0 0.0
  %1305 = vmatprep.subr.mxu0 0.0
  %1306 = vmatpush2.xpose.msra.mxu0 0.0
  %1307 = vmatprep.subr.mxu0 0.0
  %1308 = vmatpush2.xpose.msra.mxu0 0.0
  %1309 = vmatprep.subr.mxu0 0.0
  %1310 = vmatpush2.xpose.msra.mxu0 0.0
  %1311 = vmatprep.subr.mxu0 0.0
  %1312 = vmatpush2.xpose.msra.mxu0 0.0
  %1313 = vmatprep.subr.mxu0 0.0
  %1314 = vmatpush2.xpose.msra.mxu0 0.0
  %1315 = vmatprep.mubr.f32.mxu0 0.0
  %1316 = vmatmul.mubr.f32.gmra.mxu0 %v29
  %v1317 = vpop.f32.mrf.mxu0
  %v1318 = vadd.f32 0.0, %v1317
  %v1319 = vpop.f32.mrf.mxu0
  %1320 = vmatprep.mubr.f32.mxu0 0.0
  %1321 = vmatmul.mubr.f32.gmra.mxu0 %v30
  %v1322 = vpop.f32.mrf.mxu0
  %v1323 = vadd.f32 0.0, %v1322
  %v1324 = vpop.f32.mrf.mxu0
  %1325 = vmatprep.mubr.f32.mxu0 0.0
  %1326 = vmatmul.mubr.f32.gmra.mxu0 %v31
  %v1327 = vpop.f32.mrf.mxu0
  %v1328 = vadd.f32 0.0, %v1327
  %v1329 = vpop.f32.mrf.mxu0
  %1330 = vmatprep.mubr.f32.mxu0 0.0
  %1331 = vmatmul.mubr.f32.gmra.mxu0 %v32
  %v1332 = vpop.f32.mrf.mxu0
  %v1333 = vadd.f32 0.0, %v1332
  %v1334 = vpop.f32.mrf.mxu0
  %1335 = vdwg.mxu0
  %1336 = vmatprep.subr.mxu0 0.0
  %1337 = vmatpush1.xpose.msra.mxu0 0.0
  %1338 = vmatprep.subr.mxu0 0.0
  %1339 = vmatpush1.xpose.msra.mxu0 0.0
  %1340 = vmatprep.subr.mxu0 0.0
  %1341 = vmatpush1.xpose.msra.mxu0 0.0
  %1342 = vmatprep.subr.mxu0 0.0
  %1343 = vmatpush1.xpose.msra.mxu0 0.0
  %1344 = vmatprep.subr.mxu0 0.0
  %1345 = vmatpush1.xpose.msra.mxu0 0.0
  %1346 = vmatprep.subr.mxu0 0.0
  %1347 = vmatpush1.xpose.msra.mxu0 0.0
  %1348 = vmatprep.subr.mxu0 0.0
  %1349 = vmatpush1.xpose.msra.mxu0 0.0
  %1350 = vmatprep.subr.mxu0 0.0
  %1351 = vmatpush1.xpose.msra.mxu0 0.0
  %1352 = vmatprep.subr.mxu0 0.0
  %1353 = vmatpush1.xpose.msra.mxu0 0.0
  %1354 = vmatprep.subr.mxu0 0.0
  %1355 = vmatpush1.xpose.msra.mxu0 0.0
  %1356 = vmatprep.subr.mxu0 0.0
  %1357 = vmatpush1.xpose.msra.mxu0 0.0
  %1358 = vmatprep.subr.mxu0 0.0
  %1359 = vmatpush1.xpose.msra.mxu0 0.0
  %1360 = vmatprep.subr.mxu0 0.0
  %1361 = vmatpush1.xpose.msra.mxu0 %v676
  %1362 = vmatprep.subr.mxu0 0.0
  %1363 = vmatpush1.xpose.msra.mxu0 %v671
  %1364 = vmatprep.subr.mxu0 0.0
  %1365 = vmatpush1.xpose.msra.mxu0 %v666
  %1366 = vmatprep.subr.mxu0 0.0
  %1367 = vmatpush1.xpose.msra.mxu0 %v661
  %1368 = vmatprep.subr.mxu0 0.0
  %1369 = vmatpush2.xpose.msra.mxu0 0.0
  %1370 = vmatprep.subr.mxu0 0.0
  %1371 = vmatpush2.xpose.msra.mxu0 0.0
  %1372 = vmatprep.subr.mxu0 0.0
  %1373 = vmatpush2.xpose.msra.mxu0 0.0
  %1374 = vmatprep.subr.mxu0 0.0
  %1375 = vmatpush2.xpose.msra.mxu0 0.0
  %1376 = vmatprep.subr.mxu0 0.0
  %1377 = vmatpush2.xpose.msra.mxu0 0.0
  %1378 = vmatprep.subr.mxu0 0.0
  %1379 = vmatpush2.xpose.msra.mxu0 0.0
  %1380 = vmatprep.subr.mxu0 0.0
  %1381 = vmatpush2.xpose.msra.mxu0 0.0
  %1382 = vmatprep.subr.mxu0 0.0
  %1383 = vmatpush2.xpose.msra.mxu0 0.0
  %1384 = vmatprep.subr.mxu0 0.0
  %1385 = vmatpush2.xpose.msra.mxu0 0.0
  %1386 = vmatprep.subr.mxu0 0.0
  %1387 = vmatpush2.xpose.msra.mxu0 0.0
  %1388 = vmatprep.subr.mxu0 0.0
  %1389 = vmatpush2.xpose.msra.mxu0 0.0
  %1390 = vmatprep.subr.mxu0 0.0
  %1391 = vmatpush2.xpose.msra.mxu0 0.0
  %1392 = vmatprep.subr.mxu0 0.0
  %1393 = vmatpush2.xpose.msra.mxu0 0.0
  %1394 = vmatprep.subr.mxu0 0.0
  %1395 = vmatpush2.xpose.msra.mxu0 0.0
  %1396 = vmatprep.subr.mxu0 0.0
  %1397 = vmatpush2.xpose.msra.mxu0 0.0
  %1398 = vmatprep.subr.mxu0 0.0
  %1399 = vmatpush2.xpose.msra.mxu0 0.0
  %1400 = vmatprep.mubr.f32.mxu0 0.0
  %1401 = vmatmul.mubr.f32.gmra.mxu0 %v33
  %v1402 = vpop.f32.mrf.mxu0
  %v1403 = vadd.f32 0.0, %v1402
  %v1404 = vpop.f32.mrf.mxu0
  %1405 = vmatprep.mubr.f32.mxu0 0.0
  %1406 = vmatmul.mubr.f32.gmra.mxu0 %v34
  %v1407 = vpop.f32.mrf.mxu0
  %v1408 = vadd.f32 0.0, %v1407
  %v1409 = vpop.f32.mrf.mxu0
  %1410 = vmatprep.mubr.f32.mxu0 0.0
  %1411 = vmatmul.mubr.f32.gmra.mxu0 %v35
  %v1412 = vpop.f32.mrf.mxu0
  %v1413 = vadd.f32 0.0, %v1412
  %v1414 = vpop.f32.mrf.mxu0
  %1415 = vmatprep.mubr.f32.mxu0 0.0
  %1416 = vmatmul.mubr.f32.gmra.mxu0 %v36
  %v1417 = vpop.f32.mrf.mxu0
  %v1418 = vadd.f32 0.0, %v1417
  %v1419 = vpop.f32.mrf.mxu0
  %1420 = vdwg.mxu0
  %1421 = vmatprep.subr.mxu0 0.0
  %1422 = vmatpush1.xpose.msra.mxu0 0.0
  %1423 = vmatprep.subr.mxu0 0.0
  %1424 = vmatpush1.xpose.msra.mxu0 0.0
  %1425 = vmatprep.subr.mxu0 0.0
  %1426 = vmatpush1.xpose.msra.mxu0 0.0
  %1427 = vmatprep.subr.mxu0 0.0
  %1428 = vmatpush1.xpose.msra.mxu0 0.0
  %1429 = vmatprep.subr.mxu0 0.0
  %1430 = vmatpush1.xpose.msra.mxu0 0.0
  %1431 = vmatprep.subr.mxu0 0.0
  %1432 = vmatpush1.xpose.msra.mxu0 0.0
  %1433 = vmatprep.subr.mxu0 0.0
  %1434 = vmatpush1.xpose.msra.mxu0 0.0
  %1435 = vmatprep.subr.mxu0 0.0
  %1436 = vmatpush1.xpose.msra.mxu0 0.0
  %1437 = vmatprep.subr.mxu0 0.0
  %1438 = vmatpush1.xpose.msra.mxu0 0.0
  %1439 = vmatprep.subr.mxu0 0.0
  %1440 = vmatpush1.xpose.msra.mxu0 0.0
  %1441 = vmatprep.subr.mxu0 0.0
  %1442 = vmatpush1.xpose.msra.mxu0 0.0
  %1443 = vmatprep.subr.mxu0 0.0
  %1444 = vmatpush1.xpose.msra.mxu0 0.0
  %1445 = vmatprep.subr.mxu0 0.0
  %1446 = vmatpush1.xpose.msra.mxu0 %v776
  %1447 = vmatprep.subr.mxu0 0.0
  %1448 = vmatpush1.xpose.msra.mxu0 %v771
  %1449 = vmatprep.subr.mxu0 0.0
  %1450 = vmatpush1.xpose.msra.mxu0 %v766
  %1451 = vmatprep.subr.mxu0 0.0
  %1452 = vmatpush1.xpose.msra.mxu0 %v761
  %1453 = vmatprep.subr.mxu0 0.0
  %1454 = vmatpush2.xpose.msra.mxu0 0.0
  %1455 = vmatprep.subr.mxu0 0.0
  %1456 = vmatpush2.xpose.msra.mxu0 0.0
  %1457 = vmatprep.subr.mxu0 0.0
  %1458 = vmatpush2.xpose.msra.mxu0 0.0
  %1459 = vmatprep.subr.mxu0 0.0
  %1460 = vmatpush2.xpose.msra.mxu0 0.0
  %1461 = vmatprep.subr.mxu0 0.0
  %1462 = vmatpush2.xpose.msra.mxu0 0.0
  %1463 = vmatprep.subr.mxu0 0.0
  %1464 = vmatpush2.xpose.msra.mxu0 0.0
  %1465 = vmatprep.subr.mxu0 0.0
  %1466 = vmatpush2.xpose.msra.mxu0 0.0
  %1467 = vmatprep.subr.mxu0 0.0
  %1468 = vmatpush2.xpose.msra.mxu0 0.0
  %1469 = vmatprep.subr.mxu0 0.0
  %1470 = vmatpush2.xpose.msra.mxu0 0.0
  %1471 = vmatprep.subr.mxu0 0.0
  %1472 = vmatpush2.xpose.msra.mxu0 0.0
  %1473 = vmatprep.subr.mxu0 0.0
  %1474 = vmatpush2.xpose.msra.mxu0 0.0
  %1475 = vmatprep.subr.mxu0 0.0
  %1476 = vmatpush2.xpose.msra.mxu0 0.0
  %1477 = vmatprep.subr.mxu0 0.0
  %1478 = vmatpush2.xpose.msra.mxu0 0.0
  %1479 = vmatprep.subr.mxu0 0.0
  %1480 = vmatpush2.xpose.msra.mxu0 0.0
  %1481 = vmatprep.subr.mxu0 0.0
  %1482 = vmatpush2.xpose.msra.mxu0 0.0
  %1483 = vmatprep.subr.mxu0 0.0
  %1484 = vmatpush2.xpose.msra.mxu0 0.0
  %1485 = vmatprep.mubr.f32.mxu0 0.0
  %1486 = vmatmul.mubr.f32.gmra.mxu0 %v37
  %v1487 = vpop.f32.mrf.mxu0
  %v1488 = vadd.f32 0.0, %v1487
  %v1489 = vpop.f32.mrf.mxu0
  %1490 = vmatprep.mubr.f32.mxu0 0.0
  %1491 = vmatmul.mubr.f32.gmra.mxu0 %v38
  %v1492 = vpop.f32.mrf.mxu0
  %v1493 = vadd.f32 0.0, %v1492
  %v1494 = vpop.f32.mrf.mxu0
  %1495 = vmatprep.mubr.f32.mxu0 0.0
  %1496 = vmatmul.mubr.f32.gmra.mxu0 %v39
  %v1497 = vpop.f32.mrf.mxu0
  %v1498 = vadd.f32 0.0, %v1497
  %v1499 = vpop.f32.mrf.mxu0
  %1500 = vmatprep.mubr.f32.mxu0 0.0
  %1501 = vmatmul.mubr.f32.gmra.mxu0 %v40
  %v1502 = vpop.f32.mrf.mxu0
  %v1503 = vadd.f32 0.0, %v1502
  %v1504 = vpop.f32.mrf.mxu0
  %1505 = vdwg.mxu0
  %1506 = vmatprep.subr.mxu0 0.0
  %1507 = vmatpush1.xpose.msra.mxu0 0.0
  %1508 = vmatprep.subr.mxu0 0.0
  %1509 = vmatpush1.xpose.msra.mxu0 0.0
  %1510 = vmatprep.subr.mxu0 0.0
  %1511 = vmatpush1.xpose.msra.mxu0 0.0
  %1512 = vmatprep.subr.mxu0 0.0
  %1513 = vmatpush1.xpose.msra.mxu0 0.0
  %1514 = vmatprep.subr.mxu0 0.0
  %1515 = vmatpush1.xpose.msra.mxu0 0.0
  %1516 = vmatprep.subr.mxu0 0.0
  %1517 = vmatpush1.xpose.msra.mxu0 0.0
  %1518 = vmatprep.subr.mxu0 0.0
  %1519 = vmatpush1.xpose.msra.mxu0 0.0
  %1520 = vmatprep.subr.mxu0 0.0
  %1521 = vmatpush1.xpose.msra.mxu0 0.0
  %1522 = vmatprep.subr.mxu0 0.0
  %1523 = vmatpush1.xpose.msra.mxu0 0.0
  %1524 = vmatprep.subr.mxu0 0.0
  %1525 = vmatpush1.xpose.msra.mxu0 0.0
  %1526 = vmatprep.subr.mxu0 0.0
  %1527 = vmatpush1.xpose.msra.mxu0 0.0
  %1528 = vmatprep.subr.mxu0 0.0
  %1529 = vmatpush1.xpose.msra.mxu0 0.0
  %1530 = vmatprep.subr.mxu0 0.0
  %1531 = vmatpush1.xpose.msra.mxu0 %v876
  %1532 = vmatprep.subr.mxu0 0.0
  %1533 = vmatpush1.xpose.msra.mxu0 %v871
  %1534 = vmatprep.subr.mxu0 0.0
  %1535 = vmatpush1.xpose.msra.mxu0 %v866
  %1536 = vmatprep.subr.mxu0 0.0
  %1537 = vmatpush1.xpose.msra.mxu0 %v861
  %1538 = vmatprep.subr.mxu0 0.0
  %1539 = vmatpush2.xpose.msra.mxu0 0.0
  %1540 = vmatprep.subr.mxu0 0.0
  %1541 = vmatpush2.xpose.msra.mxu0 0.0
  %1542 = vmatprep.subr.mxu0 0.0
  %1543 = vmatpush2.xpose.msra.mxu0 0.0
  %1544 = vmatprep.subr.mxu0 0.0
  %1545 = vmatpush2.xpose.msra.mxu0 0.0
  %1546 = vmatprep.subr.mxu0 0.0
  %1547 = vmatpush2.xpose.msra.mxu0 0.0
  %1548 = vmatprep.subr.mxu0 0.0
  %1549 = vmatpush2.xpose.msra.mxu0 0.0
  %1550 = vmatprep.subr.mxu0 0.0
  %1551 = vmatpush2.xpose.msra.mxu0 0.0
  %1552 = vmatprep.subr.mxu0 0.0
  %1553 = vmatpush2.xpose.msra.mxu0 0.0
  %1554 = vmatprep.subr.mxu0 0.0
  %1555 = vmatpush2.xpose.msra.mxu0 0.0
  %1556 = vmatprep.subr.mxu0 0.0
  %1557 = vmatpush2.xpose.msra.mxu0 0.0
  %1558 = vmatprep.subr.mxu0 0.0
  %1559 = vmatpush2.xpose.msra.mxu0 0.0
  %1560 = vmatprep.subr.mxu0 0.0
  %1561 = vmatpush2.xpose.msra.mxu0 0.0
  %1562 = vmatprep.subr.mxu0 0.0
  %1563 = vmatpush2.xpose.msra.mxu0 0.0
  %1564 = vmatprep.subr.mxu0 0.0
  %1565 = vmatpush2.xpose.msra.mxu0 0.0
  %1566 = vmatprep.subr.mxu0 0.0
  %1567 = vmatpush2.xpose.msra.mxu0 0.0
  %1568 = vmatprep.subr.mxu0 0.0
  %1569 = vmatpush2.xpose.msra.mxu0 0.0
  %1570 = vmatprep.mubr.f32.mxu0 0.0
  %1571 = vmatmul.mubr.f32.gmra.mxu0 %v41
  %v1572 = vpop.f32.mrf.mxu0
  %v1573 = vadd.f32 0.0, %v1572
  %v1574 = vpop.f32.mrf.mxu0
  %1575 = vmatprep.mubr.f32.mxu0 0.0
  %1576 = vmatmul.mubr.f32.gmra.mxu0 %v42
  %v1577 = vpop.f32.mrf.mxu0
  %v1578 = vadd.f32 0.0, %v1577
  %v1579 = vpop.f32.mrf.mxu0
  %1580 = vmatprep.mubr.f32.mxu0 0.0
  %1581 = vmatmul.mubr.f32.gmra.mxu0 %v43
  %v1582 = vpop.f32.mrf.mxu0
  %v1583 = vadd.f32 0.0, %v1582
  %v1584 = vpop.f32.mrf.mxu0
  %1585 = vmatprep.mubr.f32.mxu0 0.0
  %1586 = vmatmul.mubr.f32.gmra.mxu0 %v44
  %v1587 = vpop.f32.mrf.mxu0
  %v1588 = vadd.f32 0.0, %v1587
  %v1589 = vpop.f32.mrf.mxu0
  %1590 = vdwg.mxu0
  %1591 = vst.msk [vmem:[%s3] sm:$0xff] %vm77, %v978
  %1592 = vst.msk [vmem:[%s3 + $0x8] sm:$0xff] %vm77, %v983
  %1593 = vst.msk [vmem:[%s3 + $0x10] sm:$0xff] %vm77, %v988
  %vm1594 = vcmask 224256
  %1595 = vst.msk [vmem:[%s3 + $0x18] sm:$0xf] %vm1594, %v993
  %1596 = vst.msk [vmem:[%s3 + $0x20] sm:$0xff] %vm77, %v1063
  %1597 = vst.msk [vmem:[%s3 + $0x28] sm:$0xff] %vm77, %v1068
  %1598 = vst.msk [vmem:[%s3 + $0x30] sm:$0xff] %vm77, %v1073
  %1599 = vst.msk [vmem:[%s3 + $0x38] sm:$0xf] %vm1594, %v1078
  %1600 = vst.msk [vmem:[%s3 + $0x40] sm:$0xff] %vm77, %v1148
  %1601 = vst.msk [vmem:[%s3 + $0x48] sm:$0xff] %vm77, %v1153
  %1602 = vst.msk [vmem:[%s3 + $0x50] sm:$0xff] %vm77, %v1158
  %1603 = vst.msk [vmem:[%s3 + $0x58] sm:$0xf] %vm1594, %v1163
  %1604 = vst.msk [vmem:[%s3 + $0x60] sm:$0xff] %vm77, %v1233
  %1605 = vst.msk [vmem:[%s3 + $0x68] sm:$0xff] %vm77, %v1238
  %1606 = vst.msk [vmem:[%s3 + $0x70] sm:$0xff] %vm77, %v1243
  %1607 = vst.msk [vmem:[%s3 + $0x78] sm:$0xf] %vm1594, %v1248
  %1608 = vst.msk [vmem:[%s3 + $0x80] sm:$0xff] %vm77, %v1318
  %1609 = vst.msk [vmem:[%s3 + $0x88] sm:$0xff] %vm77, %v1323
  %1610 = vst.msk [vmem:[%s3 + $0x90] sm:$0xff] %vm77, %v1328
  %1611 = vst.msk [vmem:[%s3 + $0x98] sm:$0xf] %vm1594, %v1333
  %1612 = vst.msk [vmem:[%s3 + $0xa0] sm:$0xff] %vm77, %v1403
  %1613 = vst.msk [vmem:[%s3 + $0xa8] sm:$0xff] %vm77, %v1408
  %1614 = vst.msk [vmem:[%s3 + $0xb0] sm:$0xff] %vm77, %v1413
  %1615 = vst.msk [vmem:[%s3 + $0xb8] sm:$0xf] %vm1594, %v1418
  %1616 = vst.msk [vmem:[%s3 + $0xc0] sm:$0xff] %vm77, %v1488
  %1617 = vst.msk [vmem:[%s3 + $0xc8] sm:$0xff] %vm77, %v1493
  %1618 = vst.msk [vmem:[%s3 + $0xd0] sm:$0xff] %vm77, %v1498
  %1619 = vst.msk [vmem:[%s3 + $0xd8] sm:$0xf] %vm1594, %v1503
  %1620 = vst.msk [vmem:[%s3 + $0xe0] sm:$0xff] %vm77, %v1573
  %1621 = vst.msk [vmem:[%s3 + $0xe8] sm:$0xff] %vm77, %v1578
  %1622 = vst.msk [vmem:[%s3 + $0xf0] sm:$0xff] %vm77, %v1583
  %1623 = vst.msk [vmem:[%s3 + $0xf8] sm:$0xf] %vm1594, %v1588
  // Predicated region
  $region10: #{elm_ae_forward.5} parent=0 // pred_check
    _
  $region11: #{elm_ae_forward.5} parent=0 // pred_check_branch
    %1625 = sbr.rel (0) target = $region13
  $region12: #{elm_ae_forward.5} parent=0 // pred_region
    _
  $region13: #{elm_ae_forward.5} parent=0 // pred_fallthru
    _
  // Predicated region
  $region14: #{elm_ae_forward.5} parent=0 // pred_check
    _
  $region15: #{elm_ae_forward.5} parent=0 // pred_check_branch
    %1627 = sbr.rel (0) target = $region17
  $region16: #{elm_ae_forward.5} parent=0 // pred_region
    _
  $region17: #{elm_ae_forward.5} parent=0 // pred_fallthru
    _
  // Predicated region
  $region18: #{elm_ae_forward.5} parent=0 // pred_check
    _
  $region19: #{elm_ae_forward.5} parent=0 // pred_check_branch
    %1629 = sbr.rel (0) target = $region21
  $region20: #{elm_ae_forward.5} parent=0 // pred_region
    _
  $region21: #{elm_ae_forward.5} parent=0 // pred_fallthru
    _
  // Predicated region
  $region22: #{elm_ae_forward.5} parent=0 // pred_check
    _
  $region23: #{elm_ae_forward.5} parent=0 // pred_check_branch
    %1631 = sbr.rel (0) target = $region25
  $region24: #{elm_ae_forward.5} parent=0 // pred_region
    _
  $region25: #{elm_ae_forward.5} parent=0 // pred_fallthru
    _

</llo_original>
